<compile_context>
chip_gen: v7x
topology: tpu7x:2x2x1
jax: 0.10.0
libtpu: 0.0.40
codegen_flags: <defaults>
</compile_context>

<pallas_src>
import functools

import jax
import jax.numpy as jnp
from jax.experimental import pallas as pl
from jax.experimental.pallas import tpu as pltpu

N_FEATURES = 100
H0, H1, H2 = 256, 512, 1024
N_OUT = 526

K_PAD = 128     # 100 -> full lane group (do NOT pad to 256; layer 0 is ~2.4% of MACs)
OUT_PAD = 640   # 526 -> multiple of 128 (lane-dense output stores)


def _leaky_relu(x, alpha=0.2):
    # for alpha < 1, leaky_relu(x) == max(x, alpha * x)
    return jnp.maximum(x, alpha * x)


def _round_up(v, m):
    return ((v + m - 1) // m) * m


def generator_kernel(x_ref,
                     w0_ref, b0_ref,
                     w1_ref, b1_ref,
                     w2_ref, b2_ref,
                     w3_ref, b3_ref,
                     out_ref,
                     h2_ref):
    # Layers 0-2 run once per batch tile (first N step); the bf16 result is
    # kept in VMEM scratch.  The output layer runs per (batch, N) tile so w3
    # can stream in TN-wide column tiles while layers 0-2 compute.
    @pl.when(pl.program_id(1) == 0)
    def _():
        h = jnp.dot(x_ref[...], w0_ref[...], preferred_element_type=jnp.float32)
        h = _leaky_relu(h + b0_ref[...]).astype(jnp.bfloat16)
        h = jnp.dot(h, w1_ref[...], preferred_element_type=jnp.float32)
        h = _leaky_relu(h + b1_ref[...]).astype(jnp.bfloat16)
        h = jnp.dot(h, w2_ref[...], preferred_element_type=jnp.float32)
        h2_ref[...] = _leaky_relu(h + b2_ref[...]).astype(jnp.bfloat16)

    h = jnp.dot(h2_ref[...], w3_ref[...], preferred_element_type=jnp.float32)
    out_ref[...] = jnp.tanh(h + b3_ref[...]).astype(out_ref.dtype)


@functools.partial(jax.jit, static_argnames=("unpad",))
def generator_forward(x, params, unpad=True):
    """x: [B, 100] float32; params: dict of (w, b) per layer (w: [in, out])."""
    B = x.shape[0]
    B8 = _round_up(B, 8)

    # Batch tile selection:
    #  * big batch (>=1024): TB=512 amortizes per-step overhead on v6e/v5e and
    #    still leaves >= 2 parallel steps for v7x.
    #  * mid batch [64, 1024): force exactly 2 steps so both v7x TCs get work.
    #  * tiny batch: single sublane-aligned step (latency path below).
    if B8 >= 1024:
        TB = 512
    elif B8 >= 64:
        TB = _round_up(pl.cdiv(B8, 2), 8)
    else:
        TB = B8
    B_pad = _round_up(B8, TB)
    grid_b = B_pad // TB

    # Output-column tiling of the last layer.  Latency-bound single-step case:
    # TN=128 streams w3 so its DMA overlaps layer-0..2 compute.  Otherwise a
    # single resident N tile (no extra per-step overhead).
    TN = 128 if grid_b == 1 else OUT_PAD
    grid_n = OUT_PAD // TN

    # Host-side zero-pad to lane/sublane-dense shapes + bf16 cast (fused into
    # this jit; zero padding leaves valid lanes/rows unchanged).
    x_p = jnp.zeros((B_pad, K_PAD), jnp.bfloat16).at[:B, :N_FEATURES].set(
        x.astype(jnp.bfloat16))
    w0 = jnp.zeros((K_PAD, H0), jnp.bfloat16).at[:N_FEATURES, :].set(
        params["w0"].astype(jnp.bfloat16))
    w1 = params["w1"].astype(jnp.bfloat16)
    w2 = params["w2"].astype(jnp.bfloat16)
    w3 = jnp.zeros((H2, OUT_PAD), jnp.bfloat16).at[:, :N_OUT].set(
        params["w3"].astype(jnp.bfloat16))
    b0, b1, b2 = params["b0"], params["b1"], params["b2"]
    b3 = jnp.zeros((1, OUT_PAD), jnp.float32).at[:, :N_OUT].set(params["b3"])

    args = (x_p, w0, b0, w1, b1, w2, b2, w3, b3)

    in_specs = [
        pl.BlockSpec((TB, K_PAD), lambda i, j: (i, 0)),   # x      : batch-tiled
        pl.BlockSpec((K_PAD, H0), lambda i, j: (0, 0)),   # w0     : VMEM-resident
        pl.BlockSpec((1, H0),     lambda i, j: (0, 0)),   # b0
        pl.BlockSpec((H0, H1),    lambda i, j: (0, 0)),   # w1
        pl.BlockSpec((1, H1),     lambda i, j: (0, 0)),   # b1
        pl.BlockSpec((H1, H2),    lambda i, j: (0, 0)),   # w2
        pl.BlockSpec((1, H2),     lambda i, j: (0, 0)),   # b2
        pl.BlockSpec((H2, TN),    lambda i, j: (0, j)),   # w3     : N-streamed
        pl.BlockSpec((1, TN),     lambda i, j: (0, j)),   # b3
    ]

    flops = 2 * B_pad * (K_PAD * H0 + H0 * H1 + H1 * H2 + H2 * OUT_PAD)
    bytes_accessed = (sum(int(a.size) * a.dtype.itemsize for a in args)
                      + B_pad * OUT_PAD * 4)

    out = pl.pallas_call(
        generator_kernel,
        out_shape=jax.ShapeDtypeStruct((B_pad, OUT_PAD), jnp.float32),
        grid=(grid_b, grid_n),
        in_specs=in_specs,
        out_specs=pl.BlockSpec((TB, TN), lambda i, j: (i, j)),
        scratch_shapes=[pltpu.VMEM((TB, H2), jnp.bfloat16)],
        compiler_params=pltpu.CompilerParams(
            dimension_semantics=("parallel", "arbitrary"),
            vmem_limit_bytes=32 << 20),
        cost_estimate=pl.CostEstimate(
            flops=flops,
            transcendentals=B_pad * OUT_PAD,
            bytes_accessed=bytes_accessed),
    )(*args)

    if unpad:
        return out[:B, :N_OUT]
    # Padded [B_pad, OUT_PAD] buffer; consumer slices lazily (avoids an extra
    # HBM round-trip for throughput use).
    return out


def init_params(key):
    """Deterministic init matching PyTorch nn.Linear defaults:
    U(-1/sqrt(fan_in), 1/sqrt(fan_in)) for both weight and bias."""
    dims = [(N_FEATURES, H0), (H0, H1), (H1, H2), (H2, N_OUT)]
    params = {}
    for i, (fan_in, fan_out) in enumerate(dims):
        key, kw, kb = jax.random.split(key, 3)
        bound = 1.0 / jnp.sqrt(jnp.float32(fan_in))
        params[f"w{i}"] = jax.random.uniform(
            kw, (fan_in, fan_out), jnp.float32, -bound, bound)
        params[f"b{i}"] = jax.random.uniform(
            kb, (1, fan_out), jnp.float32, -bound, bound)
    return params


def reference_forward_f32(x, params):
    """Exact PyTorch-module semantics in f32."""
    h = x
    for i in range(3):
        h = _leaky_relu(h @ params[f"w{i}"] + params[f"b{i}"])
    return jnp.tanh(h @ params["w3"] + params["b3"])


def reference_forward_bf16(x, params):
    """Mirrors the kernel's bf16-weight / f32-accumulate numerics."""
    h = x.astype(jnp.bfloat16)
    for i in range(3):
        w = params[f"w{i}"].astype(jnp.bfloat16)
        h = jnp.dot(h, w, preferred_element_type=jnp.float32) + params[f"b{i}"]
        h = _leaky_relu(h).astype(jnp.bfloat16)
    w = params["w3"].astype(jnp.bfloat16)
    h = jnp.dot(h, w, preferred_element_type=jnp.float32) + params["b3"]
    return jnp.tanh(h)


if __name__ == "__main__":
    key = jax.random.PRNGKey(0)
    k_param, k_x = jax.random.split(key)
    params = init_params(k_param)

    # batch=2 exercises the tiny-batch latency path (grid=(1,5), TN=128,
    # streamed w3); batch=96 exercises the 2-step parallel path (TN=640).
    for batch in (2, 96):
        k_x, k_use = jax.random.split(k_x)
        x = jax.random.normal(k_use, (batch, N_FEATURES), jnp.float32)

        out = jax.block_until_ready(generator_forward(x, params))
        assert out.shape == (batch, N_OUT), out.shape

        ref_bf16 = reference_forward_bf16(x, params)  # same numerics as kernel
        ref_f32 = reference_forward_f32(x, params)    # original module semantics
        assert jnp.allclose(out, ref_bf16, atol=5e-3, rtol=5e-3), \
            f"batch={batch}: max err vs bf16 ref {jnp.max(jnp.abs(out - ref_bf16))}"
        assert jnp.allclose(out, ref_f32, atol=5e-2, rtol=5e-2), \
            f"batch={batch}: max err vs f32 ref {jnp.max(jnp.abs(out - ref_f32))}"

    print("KERNEL_OK")
</pallas_src>

<mosaic_0001>
module attributes {stable_mosaic.version = 11 : i64} {
  func.func @generator_kernel(%arg0: i32, %arg1: i32, %arg2: memref<8x128xbf16, #tpu.memory_space<vmem>>, %arg3: memref<128x256xbf16, #tpu.memory_space<vmem>>, %arg4: memref<1x256xf32, #tpu.memory_space<vmem>>, %arg5: memref<256x512xbf16, #tpu.memory_space<vmem>>, %arg6: memref<1x512xf32, #tpu.memory_space<vmem>>, %arg7: memref<512x1024xbf16, #tpu.memory_space<vmem>>, %arg8: memref<1x1024xf32, #tpu.memory_space<vmem>>, %arg9: memref<1024x128xbf16, #tpu.memory_space<vmem>>, %arg10: memref<1x128xf32, #tpu.memory_space<vmem>>, %arg11: memref<8x128xf32, #tpu.memory_space<vmem>>, %arg12: memref<8x1024xbf16, #tpu.memory_space<vmem>>) attributes {dimension_semantics = [#tpu.dimension_semantics<parallel>, #tpu.dimension_semantics<arbitrary>], iteration_bounds = array<i64: 1, 5>, scalar_prefetch = 0 : i64, scratch_operands = 1 : i64, tpu.core_type = #tpu.core_type<tc>, window_params = [{transform_indices = @transform_0, window_bounds = array<i64: 8, 128>}, {pipeline_mode = #tpu.pipeline_mode<synchronous>, transform_indices = @transform_1, window_bounds = array<i64: 128, 256>}, {pipeline_mode = #tpu.pipeline_mode<synchronous>, transform_indices = @transform_2, window_bounds = array<i64: 1, 256>}, {pipeline_mode = #tpu.pipeline_mode<synchronous>, transform_indices = @transform_3, window_bounds = array<i64: 256, 512>}, {pipeline_mode = #tpu.pipeline_mode<synchronous>, transform_indices = @transform_4, window_bounds = array<i64: 1, 512>}, {pipeline_mode = #tpu.pipeline_mode<synchronous>, transform_indices = @transform_5, window_bounds = array<i64: 512, 1024>}, {pipeline_mode = #tpu.pipeline_mode<synchronous>, transform_indices = @transform_6, window_bounds = array<i64: 1, 1024>}, {transform_indices = @transform_7, window_bounds = array<i64: 1024, 128>}, {transform_indices = @transform_8, window_bounds = array<i64: 1, 128>}, {transform_indices = @transform_9, window_bounds = array<i64: 8, 128>}]} {
    %c0_i32 = arith.constant 0 : i32
    %0 = arith.cmpi eq, %arg1, %c0_i32 : i32
    %1 = arith.extui %0 : i1 to i32
    %c0_i32_0 = arith.constant 0 : i32
    %2 = arith.cmpi ne, %1, %c0_i32_0 : i32
    scf.if %2 {
      %c0_8 = arith.constant 0 : index
      %c0_9 = arith.constant 0 : index
      %11 = vector.load %arg2[%c0_8, %c0_9] : memref<8x128xbf16, #tpu.memory_space<vmem>>, vector<8x128xbf16>
      %c0_10 = arith.constant 0 : index
      %c0_11 = arith.constant 0 : index
      %12 = vector.load %arg3[%c0_10, %c0_11] : memref<128x256xbf16, #tpu.memory_space<vmem>>, vector<128x256xbf16>
      %cst_12 = arith.constant dense<0.000000e+00> : vector<8x256xf32>
      %13 = tpu.matmul %11, %12, %cst_12 {dimension_numbers = #tpu.dot_dimension_numbers<[1], [0], [0], [1], [0, 0, 1, 1], [], []>} : vector<8x128xbf16>, vector<128x256xbf16>, vector<8x256xf32> -> vector<8x256xf32>
      %c0_13 = arith.constant 0 : index
      %c0_14 = arith.constant 0 : index
      %14 = vector.load %arg4[%c0_13, %c0_14] : memref<1x256xf32, #tpu.memory_space<vmem>>, vector<1x256xf32>
      %15 = vector.broadcast %14 : vector<1x256xf32> to vector<8x256xf32>
      %16 = arith.addf %13, %15 : vector<8x256xf32>
      %cst_15 = arith.constant 2.000000e-01 : f32
      %17 = vector.broadcast %cst_15 : f32 to vector<8x256xf32>
      %18 = arith.mulf %17, %16 : vector<8x256xf32>
      %19 = arith.maximumf %16, %18 : vector<8x256xf32>
      %20 = arith.truncf %19 : vector<8x256xf32> to vector<8x256xbf16>
      %c0_16 = arith.constant 0 : index
      %c0_17 = arith.constant 0 : index
      %21 = vector.load %arg5[%c0_16, %c0_17] : memref<256x512xbf16, #tpu.memory_space<vmem>>, vector<256x512xbf16>
      %cst_18 = arith.constant dense<0.000000e+00> : vector<8x512xf32>
      %22 = tpu.matmul %20, %21, %cst_18 {dimension_numbers = #tpu.dot_dimension_numbers<[1], [0], [0], [1], [0, 0, 1, 1], [], []>} : vector<8x256xbf16>, vector<256x512xbf16>, vector<8x512xf32> -> vector<8x512xf32>
      %c0_19 = arith.constant 0 : index
      %c0_20 = arith.constant 0 : index
      %23 = vector.load %arg6[%c0_19, %c0_20] : memref<1x512xf32, #tpu.memory_space<vmem>>, vector<1x512xf32>
      %24 = vector.broadcast %23 : vector<1x512xf32> to vector<8x512xf32>
      %25 = arith.addf %22, %24 : vector<8x512xf32>
      %cst_21 = arith.constant 2.000000e-01 : f32
      %26 = vector.broadcast %cst_21 : f32 to vector<8x512xf32>
      %27 = arith.mulf %26, %25 : vector<8x512xf32>
      %28 = arith.maximumf %25, %27 : vector<8x512xf32>
      %29 = arith.truncf %28 : vector<8x512xf32> to vector<8x512xbf16>
      %c0_22 = arith.constant 0 : index
      %c0_23 = arith.constant 0 : index
      %30 = vector.load %arg7[%c0_22, %c0_23] : memref<512x1024xbf16, #tpu.memory_space<vmem>>, vector<512x1024xbf16>
      %cst_24 = arith.constant dense<0.000000e+00> : vector<8x1024xf32>
      %31 = tpu.matmul %29, %30, %cst_24 {dimension_numbers = #tpu.dot_dimension_numbers<[1], [0], [0], [1], [0, 0, 1, 1], [], []>} : vector<8x512xbf16>, vector<512x1024xbf16>, vector<8x1024xf32> -> vector<8x1024xf32>
      %c0_25 = arith.constant 0 : index
      %c0_26 = arith.constant 0 : index
      %32 = vector.load %arg8[%c0_25, %c0_26] : memref<1x1024xf32, #tpu.memory_space<vmem>>, vector<1x1024xf32>
      %33 = vector.broadcast %32 : vector<1x1024xf32> to vector<8x1024xf32>
      %34 = arith.addf %31, %33 : vector<8x1024xf32>
      %cst_27 = arith.constant 2.000000e-01 : f32
      %35 = vector.broadcast %cst_27 : f32 to vector<8x1024xf32>
      %36 = arith.mulf %35, %34 : vector<8x1024xf32>
      %37 = arith.maximumf %34, %36 : vector<8x1024xf32>
      %38 = arith.truncf %37 : vector<8x1024xf32> to vector<8x1024xbf16>
      %c0_28 = arith.constant 0 : index
      %c0_29 = arith.constant 0 : index
      %39 = vector.load %arg12[%c0_28, %c0_29] : memref<8x1024xbf16, #tpu.memory_space<vmem>>, vector<8x1024xbf16>
      tpu.vector_store %arg12[%c0_28, %c0_29], %38 {strides = array<i32>} : memref<8x1024xbf16, #tpu.memory_space<vmem>>, vector<8x1024xbf16>,
    } else {
    }
    %c0 = arith.constant 0 : index
    %c0_1 = arith.constant 0 : index
    %3 = vector.load %arg12[%c0, %c0_1] : memref<8x1024xbf16, #tpu.memory_space<vmem>>, vector<8x1024xbf16>
    %c0_2 = arith.constant 0 : index
    %c0_3 = arith.constant 0 : index
    %4 = vector.load %arg9[%c0_2, %c0_3] : memref<1024x128xbf16, #tpu.memory_space<vmem>>, vector<1024x128xbf16>
    %cst = arith.constant dense<0.000000e+00> : vector<8x128xf32>
    %5 = tpu.matmul %3, %4, %cst {dimension_numbers = #tpu.dot_dimension_numbers<[1], [0], [0], [1], [0, 0, 1, 1], [], []>} : vector<8x1024xbf16>, vector<1024x128xbf16>, vector<8x128xf32> -> vector<8x128xf32>
    %c0_4 = arith.constant 0 : index
    %c0_5 = arith.constant 0 : index
    %6 = vector.load %arg10[%c0_4, %c0_5] : memref<1x128xf32, #tpu.memory_space<vmem>>, vector<1x128xf32>
    %7 = vector.broadcast %6 : vector<1x128xf32> to vector<8x128xf32>
    %8 = arith.addf %5, %7 : vector<8x128xf32>
    %9 = math.tanh %8 : vector<8x128xf32>
    %c0_6 = arith.constant 0 : index
    %c0_7 = arith.constant 0 : index
    %10 = vector.load %arg11[%c0_6, %c0_7] : memref<8x128xf32, #tpu.memory_space<vmem>>, vector<8x128xf32>
    tpu.vector_store %arg11[%c0_6, %c0_7], %9 {strides = array<i32>} : memref<8x128xf32, #tpu.memory_space<vmem>>, vector<8x128xf32>,
    return
  }
  func.func @transform_0(%arg0: i32, %arg1: i32) -> (i32, i32) {
    %c0_i32 = arith.constant 0 : i32
    %c0_i32_0 = arith.constant 0 : i32
    return %arg0, %c0_i32 : i32, i32
  }
  func.func @transform_1(%arg0: i32, %arg1: i32) -> (i32, i32) {
    %c0_i32 = arith.constant 0 : i32
    %c0_i32_0 = arith.constant 0 : i32
    %c0_i32_1 = arith.constant 0 : i32
    return %c0_i32, %c0_i32_0 : i32, i32
  }
  func.func @transform_2(%arg0: i32, %arg1: i32) -> (i32, i32) {
    %c0_i32 = arith.constant 0 : i32
    %c0_i32_0 = arith.constant 0 : i32
    %c0_i32_1 = arith.constant 0 : i32
    return %c0_i32, %c0_i32_0 : i32, i32
  }
  func.func @transform_3(%arg0: i32, %arg1: i32) -> (i32, i32) {
    %c0_i32 = arith.constant 0 : i32
    %c0_i32_0 = arith.constant 0 : i32
    %c0_i32_1 = arith.constant 0 : i32
    return %c0_i32, %c0_i32_0 : i32, i32
  }
  func.func @transform_4(%arg0: i32, %arg1: i32) -> (i32, i32) {
    %c0_i32 = arith.constant 0 : i32
    %c0_i32_0 = arith.constant 0 : i32
    %c0_i32_1 = arith.constant 0 : i32
    return %c0_i32, %c0_i32_0 : i32, i32
  }
  func.func @transform_5(%arg0: i32, %arg1: i32) -> (i32, i32) {
    %c0_i32 = arith.constant 0 : i32
    %c0_i32_0 = arith.constant 0 : i32
    %c0_i32_1 = arith.constant 0 : i32
    return %c0_i32, %c0_i32_0 : i32, i32
  }
  func.func @transform_6(%arg0: i32, %arg1: i32) -> (i32, i32) {
    %c0_i32 = arith.constant 0 : i32
    %c0_i32_0 = arith.constant 0 : i32
    %c0_i32_1 = arith.constant 0 : i32
    return %c0_i32, %c0_i32_0 : i32, i32
  }
  func.func @transform_7(%arg0: i32, %arg1: i32) -> (i32, i32) {
    %c0_i32 = arith.constant 0 : i32
    %c0_i32_0 = arith.constant 0 : i32
    return %c0_i32, %arg1 : i32, i32
  }
  func.func @transform_8(%arg0: i32, %arg1: i32) -> (i32, i32) {
    %c0_i32 = arith.constant 0 : i32
    %c0_i32_0 = arith.constant 0 : i32
    return %c0_i32, %arg1 : i32, i32
  }
  func.func @transform_9(%arg0: i32, %arg1: i32) -> (i32, i32) {
    %c0_i32 = arith.constant 0 : i32
    return %arg0, %arg1 : i32, i32
  }
}

</mosaic_0001>

<llo_original>
// kernel: generator_forward.1
$region0: #{generator_forward.1}
  #allocation0 [shape = 'u32[]', space=smem, size = 0x4, offset = 0x4, fixed_abs, tag = 'smem constant byte address 0x4 - core index']
  #allocation1 [shape = 'u32[144,128]{1,0:T(1,128)}', space=vmem, size = 0x12000, scoped, tag = 'internal scratch']
  #allocation2 [shape = 'bf16[8,1024]{1,0:T(8,128)(2,1)}', space=vmem, size = 0x4000, scoped, tag = 'scratch operand']
  %s0 = inlined_call_operand.vmem [shape: bf16[8,128], index: 0, kind: input, shape index: {}]
  %s1 = inlined_call_operand.vmem [shape: bf16[128,256], index: 1, kind: input, shape index: {}]
  %s2 = inlined_call_operand.vmem [shape: f32[1,256], index: 2, kind: input, shape index: {}]
  %s3 = inlined_call_operand.vmem [shape: bf16[256,512], index: 3, kind: input, shape index: {}]
  %s4 = inlined_call_operand.vmem [shape: f32[1,512], index: 4, kind: input, shape index: {}]
  %s5 = inlined_call_operand.vmem [shape: bf16[512,1024], index: 5, kind: input, shape index: {}]
  %s6 = inlined_call_operand.vmem [shape: f32[1,1024], index: 6, kind: input, shape index: {}]
  %s7 = inlined_call_operand.vmem [shape: bf16[1024,640], index: 7, kind: input, shape index: {}]
  %s8 = inlined_call_operand.vmem [shape: f32[1,640], index: 8, kind: input, shape index: {}]
  %s9 = inlined_call_operand.vmem [shape: f32[8,640], index: 9, kind: output, shape index: {}]
  %s10 = sld [smem:[#allocation0]]
  $region114: #{generator_forward.1} parent=0
    _
  %s12 = ssub.s32 1, %s10
  %s13 = scalar_select 0, %s12, %s10
  $region1: #{generator_forward.1} parent=0
    #allocation3 [shape = 'u8[524288]{0}', space=vmem, size = 0x80000, scoped, tag = 'input window, operand 7']
    loop: start=0, step=1, limit=7
    $region2: #{generator_forward.1} parent=1 // loop_pre_header
      _
    $region3: #{generator_forward.1} parent=1 // loop_header
      %s15 = sphi 0, %s19
      %p16 = scmp.ge.s32.totalorder %s15, 7
      %s22 = sphi 0, %s34
      %s23 = sphi 0, %s30
      %s24 = sphi 0, %s22
      %s25 = sphi 0, %s23
      %s26 = sphi 0, %s24
      %s27 = sphi 0, %s25
      %s37 = sphi 0, %s39
      %s40 = sphi 0, %s37
      %s41 = sphi 0, %s40
      %s57 = sphi 0, %s41
      %s61 = sphi 0, %s61
      %s63 = sphi 0, %s61
      %s64 = sphi 0, %s63
      %s78 = sphi 0, %s64
      %s82 = sphi 0, %s82
      %s84 = sphi 0, %s82
      %s85 = sphi 0, %s84
      %s99 = sphi 0, %s85
      %s103 = sphi 0, %s103
      %s105 = sphi 0, %s103
      %s106 = sphi 0, %s105
      %s120 = sphi 0, %s106
      %s124 = sphi 0, %s124
      %s126 = sphi 0, %s124
      %s127 = sphi 0, %s126
      %s141 = sphi 0, %s127
      %s145 = sphi 0, %s145
      %s147 = sphi 0, %s145
      %s148 = sphi 0, %s147
      %s162 = sphi 0, %s148
      %s166 = sphi 0, %s166
      %s168 = sphi 0, %s166
      %s169 = sphi 0, %s168
      %s183 = sphi 0, %s169
      %s189 = sphi 0, %s191
      %s192 = sphi 0, %s189
      %s193 = sphi 0, %s192
      %s209 = sphi 0, %s193
      %s215 = sphi 0, %s217
      %s218 = sphi 0, %s215
      %s219 = sphi 0, %s218
      %s235 = sphi 0, %s219
      %s243 = sphi 0, %s245
      %s246 = sphi 0, %s243
      %s247 = sphi 0, %s246
      %s263 = sphi 0, %s247
    $region4: #{generator_forward.1} parent=1 // loop_header_branch
      %18 = sbr.rel (%p16) target = $region8
    $region5: #{generator_forward.1} parent=1 // loop_body
      %s20 = ssub.s32 %s15, 1
      %s21 = ssub.s32 %s15, 2
      %s28 = sadd.s32 1, %s23
      %p29 = scmp.ge.s32.totalorder %s28, 5
      %s30 = scalar_select %p29, 0, %s28
      %s31 = sadd.s32 1, %s22
      %s32 = scalar_select %p29, %s31, %s22
      %p33 = scmp.ge.s32.totalorder %s32, 1
      %s34 = scalar_select %p33, 0, %s32
      %s35 = ssub.s32 %s22, %s34
      %p36 = scmp.eq.s32.totalorder %s35, 0
      %s38 = sadd.s32 %s37, 1
      %s39 = scalar_select %p36, %s37, %s38
      %p42 = pneg %p36
      %p43 = scmp.eq.s32.totalorder %s15, 4
      %p44 = por %p42, %p43
      %p45 = scmp.ne.s32.totalorder %s37, %s40
      %p46 = scmp.eq.s32.totalorder %s15, 0
      %p47 = por %p45, %p46
      %p48 = scmp.ne.s32.totalorder %s37, %s40
      %p49 = scmp.eq.s32.totalorder %s20, 4
      %p50 = por %p48, %p49
      %p51 = scmp.ne.s32.totalorder %s40, %s41
      %p52 = scmp.eq.s32.totalorder %s20, 0
      %p53 = por %p51, %p52
      %p54 = scmp.ne.s32.totalorder %s40, %s41
      %p55 = scmp.eq.s32.totalorder %s21, 4
      %p56 = por %p54, %p55
      %p58 = scmp.ne.s32.totalorder %s41, %s57
      %p59 = scmp.eq.s32.totalorder %s21, 0
      %p60 = por %p58, %p59
      %s62 = sadd.s32 %s61, 1
      %p65 = scmp.eq.s32.totalorder %s15, 4
      %p66 = scmp.ne.s32.totalorder %s61, %s63
      %p67 = scmp.eq.s32.totalorder %s15, 0
      %p68 = por %p66, %p67
      %p69 = scmp.ne.s32.totalorder %s61, %s63
      %p70 = scmp.eq.s32.totalorder %s20, 4
      %p71 = por %p69, %p70
      %p72 = scmp.ne.s32.totalorder %s63, %s64
      %p73 = scmp.eq.s32.totalorder %s20, 0
      %p74 = por %p72, %p73
      %p75 = scmp.ne.s32.totalorder %s63, %s64
      %p76 = scmp.eq.s32.totalorder %s21, 4
      %p77 = por %p75, %p76
      %p79 = scmp.ne.s32.totalorder %s64, %s78
      %p80 = scmp.eq.s32.totalorder %s21, 0
      %p81 = por %p79, %p80
      %s83 = sadd.s32 %s82, 1
      %p86 = scmp.eq.s32.totalorder %s15, 4
      %p87 = scmp.ne.s32.totalorder %s82, %s84
      %p88 = scmp.eq.s32.totalorder %s15, 0
      %p89 = por %p87, %p88
      %p90 = scmp.ne.s32.totalorder %s82, %s84
      %p91 = scmp.eq.s32.totalorder %s20, 4
      %p92 = por %p90, %p91
      %p93 = scmp.ne.s32.totalorder %s84, %s85
      %p94 = scmp.eq.s32.totalorder %s20, 0
      %p95 = por %p93, %p94
      %p96 = scmp.ne.s32.totalorder %s84, %s85
      %p97 = scmp.eq.s32.totalorder %s21, 4
      %p98 = por %p96, %p97
      %p100 = scmp.ne.s32.totalorder %s85, %s99
      %p101 = scmp.eq.s32.totalorder %s21, 0
      %p102 = por %p100, %p101
      %s104 = sadd.s32 %s103, 1
      %p107 = scmp.eq.s32.totalorder %s15, 4
      %p108 = scmp.ne.s32.totalorder %s103, %s105
      %p109 = scmp.eq.s32.totalorder %s15, 0
      %p110 = por %p108, %p109
      %p111 = scmp.ne.s32.totalorder %s103, %s105
      %p112 = scmp.eq.s32.totalorder %s20, 4
      %p113 = por %p111, %p112
      %p114 = scmp.ne.s32.totalorder %s105, %s106
      %p115 = scmp.eq.s32.totalorder %s20, 0
      %p116 = por %p114, %p115
      %p117 = scmp.ne.s32.totalorder %s105, %s106
      %p118 = scmp.eq.s32.totalorder %s21, 4
      %p119 = por %p117, %p118
      %p121 = scmp.ne.s32.totalorder %s106, %s120
      %p122 = scmp.eq.s32.totalorder %s21, 0
      %p123 = por %p121, %p122
      %s125 = sadd.s32 %s124, 1
      %p128 = scmp.eq.s32.totalorder %s15, 4
      %p129 = scmp.ne.s32.totalorder %s124, %s126
      %p130 = scmp.eq.s32.totalorder %s15, 0
      %p131 = por %p129, %p130
      %p132 = scmp.ne.s32.totalorder %s124, %s126
      %p133 = scmp.eq.s32.totalorder %s20, 4
      %p134 = por %p132, %p133
      %p135 = scmp.ne.s32.totalorder %s126, %s127
      %p136 = scmp.eq.s32.totalorder %s20, 0
      %p137 = por %p135, %p136
      %p138 = scmp.ne.s32.totalorder %s126, %s127
      %p139 = scmp.eq.s32.totalorder %s21, 4
      %p140 = por %p138, %p139
      %p142 = scmp.ne.s32.totalorder %s127, %s141
      %p143 = scmp.eq.s32.totalorder %s21, 0
      %p144 = por %p142, %p143
      %s146 = sadd.s32 %s145, 1
      %p149 = scmp.eq.s32.totalorder %s15, 4
      %p150 = scmp.ne.s32.totalorder %s145, %s147
      %p151 = scmp.eq.s32.totalorder %s15, 0
      %p152 = por %p150, %p151
      %p153 = scmp.ne.s32.totalorder %s145, %s147
      %p154 = scmp.eq.s32.totalorder %s20, 4
      %p155 = por %p153, %p154
      %p156 = scmp.ne.s32.totalorder %s147, %s148
      %p157 = scmp.eq.s32.totalorder %s20, 0
      %p158 = por %p156, %p157
      %p159 = scmp.ne.s32.totalorder %s147, %s148
      %p160 = scmp.eq.s32.totalorder %s21, 4
      %p161 = por %p159, %p160
      %p163 = scmp.ne.s32.totalorder %s148, %s162
      %p164 = scmp.eq.s32.totalorder %s21, 0
      %p165 = por %p163, %p164
      %s167 = sadd.s32 %s166, 1
      %p170 = scmp.eq.s32.totalorder %s15, 4
      %p171 = scmp.ne.s32.totalorder %s166, %s168
      %p172 = scmp.eq.s32.totalorder %s15, 0
      %p173 = por %p171, %p172
      %p174 = scmp.ne.s32.totalorder %s166, %s168
      %p175 = scmp.eq.s32.totalorder %s20, 4
      %p176 = por %p174, %p175
      %p177 = scmp.ne.s32.totalorder %s168, %s169
      %p178 = scmp.eq.s32.totalorder %s20, 0
      %p179 = por %p177, %p178
      %p180 = scmp.ne.s32.totalorder %s168, %s169
      %p181 = scmp.eq.s32.totalorder %s21, 4
      %p182 = por %p180, %p181
      %p184 = scmp.ne.s32.totalorder %s169, %s183
      %p185 = scmp.eq.s32.totalorder %s21, 0
      %p186 = por %p184, %p185
      %s187 = ssub.s32 %s23, %s30
      %p188 = scmp.eq.s32.totalorder %s187, 0
      %s190 = sadd.s32 %s189, 1
      %s191 = scalar_select %p188, %s189, %s190
      %p194 = pneg %p188
      %p195 = scmp.eq.s32.totalorder %s15, 4
      %p196 = por %p194, %p195
      %p197 = scmp.ne.s32.totalorder %s189, %s192
      %p198 = scmp.eq.s32.totalorder %s15, 0
      %p199 = por %p197, %p198
      %p200 = scmp.ne.s32.totalorder %s189, %s192
      %p201 = scmp.eq.s32.totalorder %s20, 4
      %p202 = por %p200, %p201
      %p203 = scmp.ne.s32.totalorder %s192, %s193
      %p204 = scmp.eq.s32.totalorder %s20, 0
      %p205 = por %p203, %p204
      %p206 = scmp.ne.s32.totalorder %s192, %s193
      %p207 = scmp.eq.s32.totalorder %s21, 4
      %p208 = por %p206, %p207
      %p210 = scmp.ne.s32.totalorder %s193, %s209
      %p211 = scmp.eq.s32.totalorder %s21, 0
      %p212 = por %p210, %p211
      %s213 = ssub.s32 %s23, %s30
      %p214 = scmp.eq.s32.totalorder %s213, 0
      %s216 = sadd.s32 %s215, 1
      %s217 = scalar_select %p214, %s215, %s216
      %p220 = pneg %p214
      %p221 = scmp.eq.s32.totalorder %s15, 4
      %p222 = por %p220, %p221
      %p223 = scmp.ne.s32.totalorder %s215, %s218
      %p224 = scmp.eq.s32.totalorder %s15, 0
      %p225 = por %p223, %p224
      %p226 = scmp.ne.s32.totalorder %s215, %s218
      %p227 = scmp.eq.s32.totalorder %s20, 4
      %p228 = por %p226, %p227
      %p229 = scmp.ne.s32.totalorder %s218, %s219
      %p230 = scmp.eq.s32.totalorder %s20, 0
      %p231 = por %p229, %p230
      %p232 = scmp.ne.s32.totalorder %s218, %s219
      %p233 = scmp.eq.s32.totalorder %s21, 4
      %p234 = por %p232, %p233
      %p236 = scmp.ne.s32.totalorder %s219, %s235
      %p237 = scmp.eq.s32.totalorder %s21, 0
      %p238 = por %p236, %p237
      %s239 = ssub.s32 %s22, %s34
      %s240 = ssub.s32 %s23, %s30
      %s241 = sor.u32 %s239, %s240
      %p242 = scmp.eq.s32.totalorder %s241, 0
      %s244 = sadd.s32 %s243, 1
      %s245 = scalar_select %p242, %s243, %s244
      %p248 = pneg %p242
      %p249 = scmp.eq.s32.totalorder %s15, 4
      %p250 = por %p248, %p249
      %p251 = scmp.ne.s32.totalorder %s243, %s246
      %p252 = scmp.eq.s32.totalorder %s15, 0
      %p253 = por %p251, %p252
      %p254 = scmp.ne.s32.totalorder %s243, %s246
      %p255 = scmp.eq.s32.totalorder %s20, 4
      %p256 = por %p254, %p255
      %p257 = scmp.ne.s32.totalorder %s246, %s247
      %p258 = scmp.eq.s32.totalorder %s20, 0
      %p259 = por %p257, %p258
      %p260 = scmp.ne.s32.totalorder %s246, %s247
      %p261 = scmp.eq.s32.totalorder %s21, 4
      %p262 = por %p260, %p261
      %p264 = scmp.ne.s32.totalorder %s247, %s263
      %p265 = scmp.eq.s32.totalorder %s21, 0
      %p266 = por %p264, %p265
      %p267 = scmp.le.s32.totalorder 1, %s15
      %p268 = scmp.lt.s32.totalorder %s15, 6
      %p269 = pnand %p267, %p268
      %p270 = pneg %p269
      // Predicated region
      $region9: #{generator_forward.1} parent=5 // pred_check
        _
      $region10: #{generator_forward.1} parent=5 // pred_check_branch
        %272 = sbr.rel (%p269) target = $region12
      $region11: #{generator_forward.1} parent=5 // pred_region
        %s273 = ssub.s32 %s15, 1
        // Predicated region
        $region13: #{generator_forward.1} parent=11 // pred_check
          %p274 = pneg %p53
        $region14: #{generator_forward.1} parent=11 // pred_check_branch
          %276 = sbr.rel (%p274) target = $region16
        $region15: #{generator_forward.1} parent=11 // pred_region
          %p277 = scmp.lt.s32.totalorder %s24, 0
          %s278 = scalar_select %p277, %s24, 0
          %s279 = smul.addr %s278, 4
          %s280 = scalar_lea.vmem %s0, %s279
        $region16: #{generator_forward.1} parent=11 // pred_fallthru
          _
        // Predicated region
        $region17: #{generator_forward.1} parent=11 // pred_check
          %p281 = pneg %p74
        $region18: #{generator_forward.1} parent=11 // pred_check_branch
          %283 = sbr.rel (%p281) target = $region20
        $region19: #{generator_forward.1} parent=11 // pred_region
          _
        $region20: #{generator_forward.1} parent=11 // pred_fallthru
          _
        // Predicated region
        $region21: #{generator_forward.1} parent=11 // pred_check
          %p284 = pneg %p95
        $region22: #{generator_forward.1} parent=11 // pred_check_branch
          %286 = sbr.rel (%p284) target = $region24
        $region23: #{generator_forward.1} parent=11 // pred_region
          _
        $region24: #{generator_forward.1} parent=11 // pred_fallthru
          _
        // Predicated region
        $region25: #{generator_forward.1} parent=11 // pred_check
          %p287 = pneg %p116
        $region26: #{generator_forward.1} parent=11 // pred_check_branch
          %289 = sbr.rel (%p287) target = $region28
        $region27: #{generator_forward.1} parent=11 // pred_region
          _
        $region28: #{generator_forward.1} parent=11 // pred_fallthru
          _
        // Predicated region
        $region29: #{generator_forward.1} parent=11 // pred_check
          %p290 = pneg %p137
        $region30: #{generator_forward.1} parent=11 // pred_check_branch
          %292 = sbr.rel (%p290) target = $region32
        $region31: #{generator_forward.1} parent=11 // pred_region
          _
        $region32: #{generator_forward.1} parent=11 // pred_fallthru
          _
        // Predicated region
        $region33: #{generator_forward.1} parent=11 // pred_check
          %p293 = pneg %p158
        $region34: #{generator_forward.1} parent=11 // pred_check_branch
          %295 = sbr.rel (%p293) target = $region36
        $region35: #{generator_forward.1} parent=11 // pred_region
          _
        $region36: #{generator_forward.1} parent=11 // pred_fallthru
          _
        // Predicated region
        $region37: #{generator_forward.1} parent=11 // pred_check
          %p296 = pneg %p179
        $region38: #{generator_forward.1} parent=11 // pred_check_branch
          %298 = sbr.rel (%p296) target = $region40
        $region39: #{generator_forward.1} parent=11 // pred_region
          _
        $region40: #{generator_forward.1} parent=11 // pred_fallthru
          _
      $region12: #{generator_forward.1} parent=5 // pred_fallthru
        _
      %p299 = scmp.lt.s32.totalorder %s15, 5
      // Predicated region
      $region41: #{generator_forward.1} parent=5 // pred_check
        %p300 = pneg %p299
      $region42: #{generator_forward.1} parent=5 // pred_check_branch
        %302 = sbr.rel (%p300) target = $region44
      $region43: #{generator_forward.1} parent=5 // pred_region
        // Predicated region
        $region45: #{generator_forward.1} parent=43 // pred_check
          %p303 = pneg %p199
        $region46: #{generator_forward.1} parent=43 // pred_check_branch
          %305 = sbr.rel (%p303) target = $region48
        $region47: #{generator_forward.1} parent=43 // pred_region
          %s306 = sand.u32 %s189, 1
          %s307 = sand.u32 %s189, 1
          %s308 = smul.addr %s307, 512
          %s309 = scalar_lea.vmem [#allocation3], %s308
          %s310 = smul.addr %s23, 4
          %s311 = scalar_lea.vmem %s7, %s310
          // Predicated region
          $region49: #{generator_forward.1} parent=47 // pred_check
            _
          $region50: #{generator_forward.1} parent=47 // pred_check_branch
            %313 = sbr.rel (0) target = $region52
          $region51: #{generator_forward.1} parent=47 // pred_region
            // Predicated region
            $region53: #{generator_forward.1} parent=51 // pred_check
              _
            $region54: #{generator_forward.1} parent=51 // pred_check_branch
              %315 = sbr.rel target = $region56
            $region55: #{generator_forward.1} parent=51 // pred_region
              // Predicated region
              $region68: #{generator_forward.1} parent=55 // pred_check
                _
              $region69: #{generator_forward.1} parent=55 // pred_check_branch
                %584 = sbr.rel (0) target = $region71
              $region70: #{generator_forward.1} parent=55 // pred_region
                loop: start=0, step=1, limit=1
                $region72: #{generator_forward.1} parent=70 // loop_pre_header
                  _
                $region73: #{generator_forward.1} parent=70 // loop_header
                  %s586 = sphi 0, %s590
                  %p587 = scmp.ge.s32.totalorder %s586, 1
                  %s591 = sphi %s311, %s311
                  %s592 = sphi %s309, %s309
                $region74: #{generator_forward.1} parent=70 // loop_header_branch
                  %589 = sbr.rel (%p587) target = $region78
                $region75: #{generator_forward.1} parent=70 // loop_body
                  _
                $region76: #{generator_forward.1} parent=70 // loop_footer
                  %s590 = sadd.s32 1, %s586
                $region77: #{generator_forward.1} parent=70 // loop_footer_branch
                  %585 = sbr.rel target = $region73
                $region78: #{generator_forward.1} parent=70 // loop_exit
                  _
                loop: start=0, step=1, limit=1
                $region79: #{generator_forward.1} parent=70 // loop_pre_header
                  _
                $region80: #{generator_forward.1} parent=70 // loop_header
                  %s595 = sphi 0, %s599
                  %p596 = scmp.ge.s32.totalorder %s595, 1
                  %s600 = sphi %s311, %s311
                  %s601 = sphi %s309, %s309
                $region81: #{generator_forward.1} parent=70 // loop_header_branch
                  %598 = sbr.rel (%p596) target = $region85
                $region82: #{generator_forward.1} parent=70 // loop_body
                  %v602 = vld [vmem:[%s600] sm:$0xf]
                  %603 = vst [vmem:[%s601] sm:$0xf] %v602
                  %v604 = vld [vmem:[%s600 + $0x14] sm:$0xf]
                  %605 = vst [vmem:[%s601 + $0x4] sm:$0xf] %v604
                  %v606 = vld [vmem:[%s600 + $0x28] sm:$0xf]
                  %607 = vst [vmem:[%s601 + $0x8] sm:$0xf] %v606
                  %v608 = vld [vmem:[%s600 + $0x3c] sm:$0xf]
                  %609 = vst [vmem:[%s601 + $0xc] sm:$0xf] %v608
                  %v610 = vld [vmem:[%s600 + $0x50] sm:$0xf]
                  %611 = vst [vmem:[%s601 + $0x10] sm:$0xf] %v610
                  %v612 = vld [vmem:[%s600 + $0x64] sm:$0xf]
                  %613 = vst [vmem:[%s601 + $0x14] sm:$0xf] %v612
                  %v614 = vld [vmem:[%s600 + $0x78] sm:$0xf]
                  %615 = vst [vmem:[%s601 + $0x18] sm:$0xf] %v614
                  %v616 = vld [vmem:[%s600 + $0x8c] sm:$0xf]
                  %617 = vst [vmem:[%s601 + $0x1c] sm:$0xf] %v616
                  %v618 = vld [vmem:[%s600 + $0xa0] sm:$0xf]
                  %619 = vst [vmem:[%s601 + $0x20] sm:$0xf] %v618
                  %v620 = vld [vmem:[%s600 + $0xb4] sm:$0xf]
                  %621 = vst [vmem:[%s601 + $0x24] sm:$0xf] %v620
                  %v622 = vld [vmem:[%s600 + $0xc8] sm:$0xf]
                  %623 = vst [vmem:[%s601 + $0x28] sm:$0xf] %v622
                  %v624 = vld [vmem:[%s600 + $0xdc] sm:$0xf]
                  %625 = vst [vmem:[%s601 + $0x2c] sm:$0xf] %v624
                  %v626 = vld [vmem:[%s600 + $0xf0] sm:$0xf]
                  %627 = vst [vmem:[%s601 + $0x30] sm:$0xf] %v626
                  %v628 = vld [vmem:[%s600 + $0x104] sm:$0xf]
                  %629 = vst [vmem:[%s601 + $0x34] sm:$0xf] %v628
                  %v630 = vld [vmem:[%s600 + $0x118] sm:$0xf]
                  %631 = vst [vmem:[%s601 + $0x38] sm:$0xf] %v630
                  %v632 = vld [vmem:[%s600 + $0x12c] sm:$0xf]
                  %633 = vst [vmem:[%s601 + $0x3c] sm:$0xf] %v632
                  %v634 = vld [vmem:[%s600 + $0x140] sm:$0xf]
                  %635 = vst [vmem:[%s601 + $0x40] sm:$0xf] %v634
                  %v636 = vld [vmem:[%s600 + $0x154] sm:$0xf]
                  %637 = vst [vmem:[%s601 + $0x44] sm:$0xf] %v636
                  %v638 = vld [vmem:[%s600 + $0x168] sm:$0xf]
                  %639 = vst [vmem:[%s601 + $0x48] sm:$0xf] %v638
                  %v640 = vld [vmem:[%s600 + $0x17c] sm:$0xf]
                  %641 = vst [vmem:[%s601 + $0x4c] sm:$0xf] %v640
                  %v642 = vld [vmem:[%s600 + $0x190] sm:$0xf]
                  %643 = vst [vmem:[%s601 + $0x50] sm:$0xf] %v642
                  %v644 = vld [vmem:[%s600 + $0x1a4] sm:$0xf]
                  %645 = vst [vmem:[%s601 + $0x54] sm:$0xf] %v644
                  %v646 = vld [vmem:[%s600 + $0x1b8] sm:$0xf]
                  %647 = vst [vmem:[%s601 + $0x58] sm:$0xf] %v646
                  %v648 = vld [vmem:[%s600 + $0x1cc] sm:$0xf]
                  %649 = vst [vmem:[%s601 + $0x5c] sm:$0xf] %v648
                  %v650 = vld [vmem:[%s600 + $0x1e0] sm:$0xf]
                  %651 = vst [vmem:[%s601 + $0x60] sm:$0xf] %v650
                  %v652 = vld [vmem:[%s600 + $0x1f4] sm:$0xf]
                  %653 = vst [vmem:[%s601 + $0x64] sm:$0xf] %v652
                  %v654 = vld [vmem:[%s600 + $0x208] sm:$0xf]
                  %655 = vst [vmem:[%s601 + $0x68] sm:$0xf] %v654
                  %v656 = vld [vmem:[%s600 + $0x21c] sm:$0xf]
                  %657 = vst [vmem:[%s601 + $0x6c] sm:$0xf] %v656
                  %v658 = vld [vmem:[%s600 + $0x230] sm:$0xf]
                  %659 = vst [vmem:[%s601 + $0x70] sm:$0xf] %v658
                  %v660 = vld [vmem:[%s600 + $0x244] sm:$0xf]
                  %661 = vst [vmem:[%s601 + $0x74] sm:$0xf] %v660
                  %v662 = vld [vmem:[%s600 + $0x258] sm:$0xf]
                  %663 = vst [vmem:[%s601 + $0x78] sm:$0xf] %v662
                  %v664 = vld [vmem:[%s600 + $0x26c] sm:$0xf]
                  %665 = vst [vmem:[%s601 + $0x7c] sm:$0xf] %v664
                  %v666 = vld [vmem:[%s600 + $0x280] sm:$0xf]
                  %667 = vst [vmem:[%s601 + $0x80] sm:$0xf] %v666
                  %v668 = vld [vmem:[%s600 + $0x294] sm:$0xf]
                  %669 = vst [vmem:[%s601 + $0x84] sm:$0xf] %v668
                  %v670 = vld [vmem:[%s600 + $0x2a8] sm:$0xf]
                  %671 = vst [vmem:[%s601 + $0x88] sm:$0xf] %v670
                  %v672 = vld [vmem:[%s600 + $0x2bc] sm:$0xf]
                  %673 = vst [vmem:[%s601 + $0x8c] sm:$0xf] %v672
                  %v674 = vld [vmem:[%s600 + $0x2d0] sm:$0xf]
                  %675 = vst [vmem:[%s601 + $0x90] sm:$0xf] %v674
                  %v676 = vld [vmem:[%s600 + $0x2e4] sm:$0xf]
                  %677 = vst [vmem:[%s601 + $0x94] sm:$0xf] %v676
                  %v678 = vld [vmem:[%s600 + $0x2f8] sm:$0xf]
                  %679 = vst [vmem:[%s601 + $0x98] sm:$0xf] %v678
                  %v680 = vld [vmem:[%s600 + $0x30c] sm:$0xf]
                  %681 = vst [vmem:[%s601 + $0x9c] sm:$0xf] %v680
                  %v682 = vld [vmem:[%s600 + $0x320] sm:$0xf]
                  %683 = vst [vmem:[%s601 + $0xa0] sm:$0xf] %v682
                  %v684 = vld [vmem:[%s600 + $0x334] sm:$0xf]
                  %685 = vst [vmem:[%s601 + $0xa4] sm:$0xf] %v684
                  %v686 = vld [vmem:[%s600 + $0x348] sm:$0xf]
                  %687 = vst [vmem:[%s601 + $0xa8] sm:$0xf] %v686
                  %v688 = vld [vmem:[%s600 + $0x35c] sm:$0xf]
                  %689 = vst [vmem:[%s601 + $0xac] sm:$0xf] %v688
                  %v690 = vld [vmem:[%s600 + $0x370] sm:$0xf]
                  %691 = vst [vmem:[%s601 + $0xb0] sm:$0xf] %v690
                  %v692 = vld [vmem:[%s600 + $0x384] sm:$0xf]
                  %693 = vst [vmem:[%s601 + $0xb4] sm:$0xf] %v692
                  %v694 = vld [vmem:[%s600 + $0x398] sm:$0xf]
                  %695 = vst [vmem:[%s601 + $0xb8] sm:$0xf] %v694
                  %v696 = vld [vmem:[%s600 + $0x3ac] sm:$0xf]
                  %697 = vst [vmem:[%s601 + $0xbc] sm:$0xf] %v696
                  %v698 = vld [vmem:[%s600 + $0x3c0] sm:$0xf]
                  %699 = vst [vmem:[%s601 + $0xc0] sm:$0xf] %v698
                  %v700 = vld [vmem:[%s600 + $0x3d4] sm:$0xf]
                  %701 = vst [vmem:[%s601 + $0xc4] sm:$0xf] %v700
                  %v702 = vld [vmem:[%s600 + $0x3e8] sm:$0xf]
                  %703 = vst [vmem:[%s601 + $0xc8] sm:$0xf] %v702
                  %v704 = vld [vmem:[%s600 + $0x3fc] sm:$0xf]
                  %705 = vst [vmem:[%s601 + $0xcc] sm:$0xf] %v704
                  %v706 = vld [vmem:[%s600 + $0x410] sm:$0xf]
                  %707 = vst [vmem:[%s601 + $0xd0] sm:$0xf] %v706
                  %v708 = vld [vmem:[%s600 + $0x424] sm:$0xf]
                  %709 = vst [vmem:[%s601 + $0xd4] sm:$0xf] %v708
                  %v710 = vld [vmem:[%s600 + $0x438] sm:$0xf]
                  %711 = vst [vmem:[%s601 + $0xd8] sm:$0xf] %v710
                  %v712 = vld [vmem:[%s600 + $0x44c] sm:$0xf]
                  %713 = vst [vmem:[%s601 + $0xdc] sm:$0xf] %v712
                  %v714 = vld [vmem:[%s600 + $0x460] sm:$0xf]
                  %715 = vst [vmem:[%s601 + $0xe0] sm:$0xf] %v714
                  %v716 = vld [vmem:[%s600 + $0x474] sm:$0xf]
                  %717 = vst [vmem:[%s601 + $0xe4] sm:$0xf] %v716
                  %v718 = vld [vmem:[%s600 + $0x488] sm:$0xf]
                  %719 = vst [vmem:[%s601 + $0xe8] sm:$0xf] %v718
                  %v720 = vld [vmem:[%s600 + $0x49c] sm:$0xf]
                  %721 = vst [vmem:[%s601 + $0xec] sm:$0xf] %v720
                  %v722 = vld [vmem:[%s600 + $0x4b0] sm:$0xf]
                  %723 = vst [vmem:[%s601 + $0xf0] sm:$0xf] %v722
                  %v724 = vld [vmem:[%s600 + $0x4c4] sm:$0xf]
                  %725 = vst [vmem:[%s601 + $0xf4] sm:$0xf] %v724
                  %v726 = vld [vmem:[%s600 + $0x4d8] sm:$0xf]
                  %727 = vst [vmem:[%s601 + $0xf8] sm:$0xf] %v726
                  %v728 = vld [vmem:[%s600 + $0x4ec] sm:$0xf]
                  %729 = vst [vmem:[%s601 + $0xfc] sm:$0xf] %v728
                  %v730 = vld [vmem:[%s600 + $0x500] sm:$0xf]
                  %731 = vst [vmem:[%s601 + $0x100] sm:$0xf] %v730
                  %v732 = vld [vmem:[%s600 + $0x514] sm:$0xf]
                  %733 = vst [vmem:[%s601 + $0x104] sm:$0xf] %v732
                  %v734 = vld [vmem:[%s600 + $0x528] sm:$0xf]
                  %735 = vst [vmem:[%s601 + $0x108] sm:$0xf] %v734
                  %v736 = vld [vmem:[%s600 + $0x53c] sm:$0xf]
                  %737 = vst [vmem:[%s601 + $0x10c] sm:$0xf] %v736
                  %v738 = vld [vmem:[%s600 + $0x550] sm:$0xf]
                  %739 = vst [vmem:[%s601 + $0x110] sm:$0xf] %v738
                  %v740 = vld [vmem:[%s600 + $0x564] sm:$0xf]
                  %741 = vst [vmem:[%s601 + $0x114] sm:$0xf] %v740
                  %v742 = vld [vmem:[%s600 + $0x578] sm:$0xf]
                  %743 = vst [vmem:[%s601 + $0x118] sm:$0xf] %v742
                  %v744 = vld [vmem:[%s600 + $0x58c] sm:$0xf]
                  %745 = vst [vmem:[%s601 + $0x11c] sm:$0xf] %v744
                  %v746 = vld [vmem:[%s600 + $0x5a0] sm:$0xf]
                  %747 = vst [vmem:[%s601 + $0x120] sm:$0xf] %v746
                  %v748 = vld [vmem:[%s600 + $0x5b4] sm:$0xf]
                  %749 = vst [vmem:[%s601 + $0x124] sm:$0xf] %v748
                  %v750 = vld [vmem:[%s600 + $0x5c8] sm:$0xf]
                  %751 = vst [vmem:[%s601 + $0x128] sm:$0xf] %v750
                  %v752 = vld [vmem:[%s600 + $0x5dc] sm:$0xf]
                  %753 = vst [vmem:[%s601 + $0x12c] sm:$0xf] %v752
                  %v754 = vld [vmem:[%s600 + $0x5f0] sm:$0xf]
                  %755 = vst [vmem:[%s601 + $0x130] sm:$0xf] %v754
                  %v756 = vld [vmem:[%s600 + $0x604] sm:$0xf]
                  %757 = vst [vmem:[%s601 + $0x134] sm:$0xf] %v756
                  %v758 = vld [vmem:[%s600 + $0x618] sm:$0xf]
                  %759 = vst [vmem:[%s601 + $0x138] sm:$0xf] %v758
                  %v760 = vld [vmem:[%s600 + $0x62c] sm:$0xf]
                  %761 = vst [vmem:[%s601 + $0x13c] sm:$0xf] %v760
                  %v762 = vld [vmem:[%s600 + $0x640] sm:$0xf]
                  %763 = vst [vmem:[%s601 + $0x140] sm:$0xf] %v762
                  %v764 = vld [vmem:[%s600 + $0x654] sm:$0xf]
                  %765 = vst [vmem:[%s601 + $0x144] sm:$0xf] %v764
                  %v766 = vld [vmem:[%s600 + $0x668] sm:$0xf]
                  %767 = vst [vmem:[%s601 + $0x148] sm:$0xf] %v766
                  %v768 = vld [vmem:[%s600 + $0x67c] sm:$0xf]
                  %769 = vst [vmem:[%s601 + $0x14c] sm:$0xf] %v768
                  %v770 = vld [vmem:[%s600 + $0x690] sm:$0xf]
                  %771 = vst [vmem:[%s601 + $0x150] sm:$0xf] %v770
                  %v772 = vld [vmem:[%s600 + $0x6a4] sm:$0xf]
                  %773 = vst [vmem:[%s601 + $0x154] sm:$0xf] %v772
                  %v774 = vld [vmem:[%s600 + $0x6b8] sm:$0xf]
                  %775 = vst [vmem:[%s601 + $0x158] sm:$0xf] %v774
                  %v776 = vld [vmem:[%s600 + $0x6cc] sm:$0xf]
                  %777 = vst [vmem:[%s601 + $0x15c] sm:$0xf] %v776
                  %v778 = vld [vmem:[%s600 + $0x6e0] sm:$0xf]
                  %779 = vst [vmem:[%s601 + $0x160] sm:$0xf] %v778
                  %v780 = vld [vmem:[%s600 + $0x6f4] sm:$0xf]
                  %781 = vst [vmem:[%s601 + $0x164] sm:$0xf] %v780
                  %v782 = vld [vmem:[%s600 + $0x708] sm:$0xf]
                  %783 = vst [vmem:[%s601 + $0x168] sm:$0xf] %v782
                  %v784 = vld [vmem:[%s600 + $0x71c] sm:$0xf]
                  %785 = vst [vmem:[%s601 + $0x16c] sm:$0xf] %v784
                  %v786 = vld [vmem:[%s600 + $0x730] sm:$0xf]
                  %787 = vst [vmem:[%s601 + $0x170] sm:$0xf] %v786
                  %v788 = vld [vmem:[%s600 + $0x744] sm:$0xf]
                  %789 = vst [vmem:[%s601 + $0x174] sm:$0xf] %v788
                  %v790 = vld [vmem:[%s600 + $0x758] sm:$0xf]
                  %791 = vst [vmem:[%s601 + $0x178] sm:$0xf] %v790
                  %v792 = vld [vmem:[%s600 + $0x76c] sm:$0xf]
                  %793 = vst [vmem:[%s601 + $0x17c] sm:$0xf] %v792
                  %v794 = vld [vmem:[%s600 + $0x780] sm:$0xf]
                  %795 = vst [vmem:[%s601 + $0x180] sm:$0xf] %v794
                  %v796 = vld [vmem:[%s600 + $0x794] sm:$0xf]
                  %797 = vst [vmem:[%s601 + $0x184] sm:$0xf] %v796
                  %v798 = vld [vmem:[%s600 + $0x7a8] sm:$0xf]
                  %799 = vst [vmem:[%s601 + $0x188] sm:$0xf] %v798
                  %v800 = vld [vmem:[%s600 + $0x7bc] sm:$0xf]
                  %801 = vst [vmem:[%s601 + $0x18c] sm:$0xf] %v800
                  %v802 = vld [vmem:[%s600 + $0x7d0] sm:$0xf]
                  %803 = vst [vmem:[%s601 + $0x190] sm:$0xf] %v802
                  %v804 = vld [vmem:[%s600 + $0x7e4] sm:$0xf]
                  %805 = vst [vmem:[%s601 + $0x194] sm:$0xf] %v804
                  %v806 = vld [vmem:[%s600 + $0x7f8] sm:$0xf]
                  %807 = vst [vmem:[%s601 + $0x198] sm:$0xf] %v806
                  %v808 = vld [vmem:[%s600 + $0x80c] sm:$0xf]
                  %809 = vst [vmem:[%s601 + $0x19c] sm:$0xf] %v808
                  %v810 = vld [vmem:[%s600 + $0x820] sm:$0xf]
                  %811 = vst [vmem:[%s601 + $0x1a0] sm:$0xf] %v810
                  %v812 = vld [vmem:[%s600 + $0x834] sm:$0xf]
                  %813 = vst [vmem:[%s601 + $0x1a4] sm:$0xf] %v812
                  %v814 = vld [vmem:[%s600 + $0x848] sm:$0xf]
                  %815 = vst [vmem:[%s601 + $0x1a8] sm:$0xf] %v814
                  %v816 = vld [vmem:[%s600 + $0x85c] sm:$0xf]
                  %817 = vst [vmem:[%s601 + $0x1ac] sm:$0xf] %v816
                  %v818 = vld [vmem:[%s600 + $0x870] sm:$0xf]
                  %819 = vst [vmem:[%s601 + $0x1b0] sm:$0xf] %v818
                  %v820 = vld [vmem:[%s600 + $0x884] sm:$0xf]
                  %821 = vst [vmem:[%s601 + $0x1b4] sm:$0xf] %v820
                  %v822 = vld [vmem:[%s600 + $0x898] sm:$0xf]
                  %823 = vst [vmem:[%s601 + $0x1b8] sm:$0xf] %v822
                  %v824 = vld [vmem:[%s600 + $0x8ac] sm:$0xf]
                  %825 = vst [vmem:[%s601 + $0x1bc] sm:$0xf] %v824
                  %v826 = vld [vmem:[%s600 + $0x8c0] sm:$0xf]
                  %827 = vst [vmem:[%s601 + $0x1c0] sm:$0xf] %v826
                  %v828 = vld [vmem:[%s600 + $0x8d4] sm:$0xf]
                  %829 = vst [vmem:[%s601 + $0x1c4] sm:$0xf] %v828
                  %v830 = vld [vmem:[%s600 + $0x8e8] sm:$0xf]
                  %831 = vst [vmem:[%s601 + $0x1c8] sm:$0xf] %v830
                  %v832 = vld [vmem:[%s600 + $0x8fc] sm:$0xf]
                  %833 = vst [vmem:[%s601 + $0x1cc] sm:$0xf] %v832
                  %v834 = vld [vmem:[%s600 + $0x910] sm:$0xf]
                  %835 = vst [vmem:[%s601 + $0x1d0] sm:$0xf] %v834
                  %v836 = vld [vmem:[%s600 + $0x924] sm:$0xf]
                  %837 = vst [vmem:[%s601 + $0x1d4] sm:$0xf] %v836
                  %v838 = vld [vmem:[%s600 + $0x938] sm:$0xf]
                  %839 = vst [vmem:[%s601 + $0x1d8] sm:$0xf] %v838
                  %v840 = vld [vmem:[%s600 + $0x94c] sm:$0xf]
                  %841 = vst [vmem:[%s601 + $0x1dc] sm:$0xf] %v840
                  %v842 = vld [vmem:[%s600 + $0x960] sm:$0xf]
                  %843 = vst [vmem:[%s601 + $0x1e0] sm:$0xf] %v842
                  %v844 = vld [vmem:[%s600 + $0x974] sm:$0xf]
                  %845 = vst [vmem:[%s601 + $0x1e4] sm:$0xf] %v844
                  %v846 = vld [vmem:[%s600 + $0x988] sm:$0xf]
                  %847 = vst [vmem:[%s601 + $0x1e8] sm:$0xf] %v846
                  %v848 = vld [vmem:[%s600 + $0x99c] sm:$0xf]
                  %849 = vst [vmem:[%s601 + $0x1ec] sm:$0xf] %v848
                  %v850 = vld [vmem:[%s600 + $0x9b0] sm:$0xf]
                  %851 = vst [vmem:[%s601 + $0x1f0] sm:$0xf] %v850
                  %v852 = vld [vmem:[%s600 + $0x9c4] sm:$0xf]
                  %853 = vst [vmem:[%s601 + $0x1f4] sm:$0xf] %v852
                  %v854 = vld [vmem:[%s600 + $0x9d8] sm:$0xf]
                  %855 = vst [vmem:[%s601 + $0x1f8] sm:$0xf] %v854
                  %v856 = vld [vmem:[%s600 + $0x9ec] sm:$0xf]
                  %857 = vst [vmem:[%s601 + $0x1fc] sm:$0xf] %v856
                $region83: #{generator_forward.1} parent=70 // loop_footer
                  %s599 = sadd.s32 1, %s595
                $region84: #{generator_forward.1} parent=70 // loop_footer_branch
                  %594 = sbr.rel target = $region80
                $region85: #{generator_forward.1} parent=70 // loop_exit
                  _
              $region71: #{generator_forward.1} parent=55 // pred_fallthru
                _
            $region56: #{generator_forward.1} parent=51 // pred_fallthru
              _
            // Predicated region
            $region57: #{generator_forward.1} parent=51 // pred_check
              _
            $region58: #{generator_forward.1} parent=51 // pred_check_branch
              %317 = sbr.rel (0) target = $region60
            $region59: #{generator_forward.1} parent=51 // pred_region
              loop: start=0, step=1, limit=1
              $region61: #{generator_forward.1} parent=59 // loop_pre_header
                _
              $region62: #{generator_forward.1} parent=59 // loop_header
                %s320 = sphi 0, %s324
                %p321 = scmp.ge.s32.totalorder %s320, 1
                %s325 = sphi %s311, %s311
                %s326 = sphi %s309, %s309
              $region63: #{generator_forward.1} parent=59 // loop_header_branch
                %323 = sbr.rel (%p321) target = $region67
              $region64: #{generator_forward.1} parent=59 // loop_body
                %v327 = vld [vmem:[%s325] sm:$0xf]
                %328 = vst [vmem:[%s326] sm:$0xf] %v327
                %v329 = vld [vmem:[%s325 + $0x14] sm:$0xf]
                %330 = vst [vmem:[%s326 + $0x4] sm:$0xf] %v329
                %v331 = vld [vmem:[%s325 + $0x28] sm:$0xf]
                %332 = vst [vmem:[%s326 + $0x8] sm:$0xf] %v331
                %v333 = vld [vmem:[%s325 + $0x3c] sm:$0xf]
                %334 = vst [vmem:[%s326 + $0xc] sm:$0xf] %v333
                %v335 = vld [vmem:[%s325 + $0x50] sm:$0xf]
                %336 = vst [vmem:[%s326 + $0x10] sm:$0xf] %v335
                %v337 = vld [vmem:[%s325 + $0x64] sm:$0xf]
                %338 = vst [vmem:[%s326 + $0x14] sm:$0xf] %v337
                %v339 = vld [vmem:[%s325 + $0x78] sm:$0xf]
                %340 = vst [vmem:[%s326 + $0x18] sm:$0xf] %v339
                %v341 = vld [vmem:[%s325 + $0x8c] sm:$0xf]
                %342 = vst [vmem:[%s326 + $0x1c] sm:$0xf] %v341
                %v343 = vld [vmem:[%s325 + $0xa0] sm:$0xf]
                %344 = vst [vmem:[%s326 + $0x20] sm:$0xf] %v343
                %v345 = vld [vmem:[%s325 + $0xb4] sm:$0xf]
                %346 = vst [vmem:[%s326 + $0x24] sm:$0xf] %v345
                %v347 = vld [vmem:[%s325 + $0xc8] sm:$0xf]
                %348 = vst [vmem:[%s326 + $0x28] sm:$0xf] %v347
                %v349 = vld [vmem:[%s325 + $0xdc] sm:$0xf]
                %350 = vst [vmem:[%s326 + $0x2c] sm:$0xf] %v349
                %v351 = vld [vmem:[%s325 + $0xf0] sm:$0xf]
                %352 = vst [vmem:[%s326 + $0x30] sm:$0xf] %v351
                %v353 = vld [vmem:[%s325 + $0x104] sm:$0xf]
                %354 = vst [vmem:[%s326 + $0x34] sm:$0xf] %v353
                %v355 = vld [vmem:[%s325 + $0x118] sm:$0xf]
                %356 = vst [vmem:[%s326 + $0x38] sm:$0xf] %v355
                %v357 = vld [vmem:[%s325 + $0x12c] sm:$0xf]
                %358 = vst [vmem:[%s326 + $0x3c] sm:$0xf] %v357
                %v359 = vld [vmem:[%s325 + $0x140] sm:$0xf]
                %360 = vst [vmem:[%s326 + $0x40] sm:$0xf] %v359
                %v361 = vld [vmem:[%s325 + $0x154] sm:$0xf]
                %362 = vst [vmem:[%s326 + $0x44] sm:$0xf] %v361
                %v363 = vld [vmem:[%s325 + $0x168] sm:$0xf]
                %364 = vst [vmem:[%s326 + $0x48] sm:$0xf] %v363
                %v365 = vld [vmem:[%s325 + $0x17c] sm:$0xf]
                %366 = vst [vmem:[%s326 + $0x4c] sm:$0xf] %v365
                %v367 = vld [vmem:[%s325 + $0x190] sm:$0xf]
                %368 = vst [vmem:[%s326 + $0x50] sm:$0xf] %v367
                %v369 = vld [vmem:[%s325 + $0x1a4] sm:$0xf]
                %370 = vst [vmem:[%s326 + $0x54] sm:$0xf] %v369
                %v371 = vld [vmem:[%s325 + $0x1b8] sm:$0xf]
                %372 = vst [vmem:[%s326 + $0x58] sm:$0xf] %v371
                %v373 = vld [vmem:[%s325 + $0x1cc] sm:$0xf]
                %374 = vst [vmem:[%s326 + $0x5c] sm:$0xf] %v373
                %v375 = vld [vmem:[%s325 + $0x1e0] sm:$0xf]
                %376 = vst [vmem:[%s326 + $0x60] sm:$0xf] %v375
                %v377 = vld [vmem:[%s325 + $0x1f4] sm:$0xf]
                %378 = vst [vmem:[%s326 + $0x64] sm:$0xf] %v377
                %v379 = vld [vmem:[%s325 + $0x208] sm:$0xf]
                %380 = vst [vmem:[%s326 + $0x68] sm:$0xf] %v379
                %v381 = vld [vmem:[%s325 + $0x21c] sm:$0xf]
                %382 = vst [vmem:[%s326 + $0x6c] sm:$0xf] %v381
                %v383 = vld [vmem:[%s325 + $0x230] sm:$0xf]
                %384 = vst [vmem:[%s326 + $0x70] sm:$0xf] %v383
                %v385 = vld [vmem:[%s325 + $0x244] sm:$0xf]
                %386 = vst [vmem:[%s326 + $0x74] sm:$0xf] %v385
                %v387 = vld [vmem:[%s325 + $0x258] sm:$0xf]
                %388 = vst [vmem:[%s326 + $0x78] sm:$0xf] %v387
                %v389 = vld [vmem:[%s325 + $0x26c] sm:$0xf]
                %390 = vst [vmem:[%s326 + $0x7c] sm:$0xf] %v389
                %v391 = vld [vmem:[%s325 + $0x280] sm:$0xf]
                %392 = vst [vmem:[%s326 + $0x80] sm:$0xf] %v391
                %v393 = vld [vmem:[%s325 + $0x294] sm:$0xf]
                %394 = vst [vmem:[%s326 + $0x84] sm:$0xf] %v393
                %v395 = vld [vmem:[%s325 + $0x2a8] sm:$0xf]
                %396 = vst [vmem:[%s326 + $0x88] sm:$0xf] %v395
                %v397 = vld [vmem:[%s325 + $0x2bc] sm:$0xf]
                %398 = vst [vmem:[%s326 + $0x8c] sm:$0xf] %v397
                %v399 = vld [vmem:[%s325 + $0x2d0] sm:$0xf]
                %400 = vst [vmem:[%s326 + $0x90] sm:$0xf] %v399
                %v401 = vld [vmem:[%s325 + $0x2e4] sm:$0xf]
                %402 = vst [vmem:[%s326 + $0x94] sm:$0xf] %v401
                %v403 = vld [vmem:[%s325 + $0x2f8] sm:$0xf]
                %404 = vst [vmem:[%s326 + $0x98] sm:$0xf] %v403
                %v405 = vld [vmem:[%s325 + $0x30c] sm:$0xf]
                %406 = vst [vmem:[%s326 + $0x9c] sm:$0xf] %v405
                %v407 = vld [vmem:[%s325 + $0x320] sm:$0xf]
                %408 = vst [vmem:[%s326 + $0xa0] sm:$0xf] %v407
                %v409 = vld [vmem:[%s325 + $0x334] sm:$0xf]
                %410 = vst [vmem:[%s326 + $0xa4] sm:$0xf] %v409
                %v411 = vld [vmem:[%s325 + $0x348] sm:$0xf]
                %412 = vst [vmem:[%s326 + $0xa8] sm:$0xf] %v411
                %v413 = vld [vmem:[%s325 + $0x35c] sm:$0xf]
                %414 = vst [vmem:[%s326 + $0xac] sm:$0xf] %v413
                %v415 = vld [vmem:[%s325 + $0x370] sm:$0xf]
                %416 = vst [vmem:[%s326 + $0xb0] sm:$0xf] %v415
                %v417 = vld [vmem:[%s325 + $0x384] sm:$0xf]
                %418 = vst [vmem:[%s326 + $0xb4] sm:$0xf] %v417
                %v419 = vld [vmem:[%s325 + $0x398] sm:$0xf]
                %420 = vst [vmem:[%s326 + $0xb8] sm:$0xf] %v419
                %v421 = vld [vmem:[%s325 + $0x3ac] sm:$0xf]
                %422 = vst [vmem:[%s326 + $0xbc] sm:$0xf] %v421
                %v423 = vld [vmem:[%s325 + $0x3c0] sm:$0xf]
                %424 = vst [vmem:[%s326 + $0xc0] sm:$0xf] %v423
                %v425 = vld [vmem:[%s325 + $0x3d4] sm:$0xf]
                %426 = vst [vmem:[%s326 + $0xc4] sm:$0xf] %v425
                %v427 = vld [vmem:[%s325 + $0x3e8] sm:$0xf]
                %428 = vst [vmem:[%s326 + $0xc8] sm:$0xf] %v427
                %v429 = vld [vmem:[%s325 + $0x3fc] sm:$0xf]
                %430 = vst [vmem:[%s326 + $0xcc] sm:$0xf] %v429
                %v431 = vld [vmem:[%s325 + $0x410] sm:$0xf]
                %432 = vst [vmem:[%s326 + $0xd0] sm:$0xf] %v431
                %v433 = vld [vmem:[%s325 + $0x424] sm:$0xf]
                %434 = vst [vmem:[%s326 + $0xd4] sm:$0xf] %v433
                %v435 = vld [vmem:[%s325 + $0x438] sm:$0xf]
                %436 = vst [vmem:[%s326 + $0xd8] sm:$0xf] %v435
                %v437 = vld [vmem:[%s325 + $0x44c] sm:$0xf]
                %438 = vst [vmem:[%s326 + $0xdc] sm:$0xf] %v437
                %v439 = vld [vmem:[%s325 + $0x460] sm:$0xf]
                %440 = vst [vmem:[%s326 + $0xe0] sm:$0xf] %v439
                %v441 = vld [vmem:[%s325 + $0x474] sm:$0xf]
                %442 = vst [vmem:[%s326 + $0xe4] sm:$0xf] %v441
                %v443 = vld [vmem:[%s325 + $0x488] sm:$0xf]
                %444 = vst [vmem:[%s326 + $0xe8] sm:$0xf] %v443
                %v445 = vld [vmem:[%s325 + $0x49c] sm:$0xf]
                %446 = vst [vmem:[%s326 + $0xec] sm:$0xf] %v445
                %v447 = vld [vmem:[%s325 + $0x4b0] sm:$0xf]
                %448 = vst [vmem:[%s326 + $0xf0] sm:$0xf] %v447
                %v449 = vld [vmem:[%s325 + $0x4c4] sm:$0xf]
                %450 = vst [vmem:[%s326 + $0xf4] sm:$0xf] %v449
                %v451 = vld [vmem:[%s325 + $0x4d8] sm:$0xf]
                %452 = vst [vmem:[%s326 + $0xf8] sm:$0xf] %v451
                %v453 = vld [vmem:[%s325 + $0x4ec] sm:$0xf]
                %454 = vst [vmem:[%s326 + $0xfc] sm:$0xf] %v453
                %v455 = vld [vmem:[%s325 + $0x500] sm:$0xf]
                %456 = vst [vmem:[%s326 + $0x100] sm:$0xf] %v455
                %v457 = vld [vmem:[%s325 + $0x514] sm:$0xf]
                %458 = vst [vmem:[%s326 + $0x104] sm:$0xf] %v457
                %v459 = vld [vmem:[%s325 + $0x528] sm:$0xf]
                %460 = vst [vmem:[%s326 + $0x108] sm:$0xf] %v459
                %v461 = vld [vmem:[%s325 + $0x53c] sm:$0xf]
                %462 = vst [vmem:[%s326 + $0x10c] sm:$0xf] %v461
                %v463 = vld [vmem:[%s325 + $0x550] sm:$0xf]
                %464 = vst [vmem:[%s326 + $0x110] sm:$0xf] %v463
                %v465 = vld [vmem:[%s325 + $0x564] sm:$0xf]
                %466 = vst [vmem:[%s326 + $0x114] sm:$0xf] %v465
                %v467 = vld [vmem:[%s325 + $0x578] sm:$0xf]
                %468 = vst [vmem:[%s326 + $0x118] sm:$0xf] %v467
                %v469 = vld [vmem:[%s325 + $0x58c] sm:$0xf]
                %470 = vst [vmem:[%s326 + $0x11c] sm:$0xf] %v469
                %v471 = vld [vmem:[%s325 + $0x5a0] sm:$0xf]
                %472 = vst [vmem:[%s326 + $0x120] sm:$0xf] %v471
                %v473 = vld [vmem:[%s325 + $0x5b4] sm:$0xf]
                %474 = vst [vmem:[%s326 + $0x124] sm:$0xf] %v473
                %v475 = vld [vmem:[%s325 + $0x5c8] sm:$0xf]
                %476 = vst [vmem:[%s326 + $0x128] sm:$0xf] %v475
                %v477 = vld [vmem:[%s325 + $0x5dc] sm:$0xf]
                %478 = vst [vmem:[%s326 + $0x12c] sm:$0xf] %v477
                %v479 = vld [vmem:[%s325 + $0x5f0] sm:$0xf]
                %480 = vst [vmem:[%s326 + $0x130] sm:$0xf] %v479
                %v481 = vld [vmem:[%s325 + $0x604] sm:$0xf]
                %482 = vst [vmem:[%s326 + $0x134] sm:$0xf] %v481
                %v483 = vld [vmem:[%s325 + $0x618] sm:$0xf]
                %484 = vst [vmem:[%s326 + $0x138] sm:$0xf] %v483
                %v485 = vld [vmem:[%s325 + $0x62c] sm:$0xf]
                %486 = vst [vmem:[%s326 + $0x13c] sm:$0xf] %v485
                %v487 = vld [vmem:[%s325 + $0x640] sm:$0xf]
                %488 = vst [vmem:[%s326 + $0x140] sm:$0xf] %v487
                %v489 = vld [vmem:[%s325 + $0x654] sm:$0xf]
                %490 = vst [vmem:[%s326 + $0x144] sm:$0xf] %v489
                %v491 = vld [vmem:[%s325 + $0x668] sm:$0xf]
                %492 = vst [vmem:[%s326 + $0x148] sm:$0xf] %v491
                %v493 = vld [vmem:[%s325 + $0x67c] sm:$0xf]
                %494 = vst [vmem:[%s326 + $0x14c] sm:$0xf] %v493
                %v495 = vld [vmem:[%s325 + $0x690] sm:$0xf]
                %496 = vst [vmem:[%s326 + $0x150] sm:$0xf] %v495
                %v497 = vld [vmem:[%s325 + $0x6a4] sm:$0xf]
                %498 = vst [vmem:[%s326 + $0x154] sm:$0xf] %v497
                %v499 = vld [vmem:[%s325 + $0x6b8] sm:$0xf]
                %500 = vst [vmem:[%s326 + $0x158] sm:$0xf] %v499
                %v501 = vld [vmem:[%s325 + $0x6cc] sm:$0xf]
                %502 = vst [vmem:[%s326 + $0x15c] sm:$0xf] %v501
                %v503 = vld [vmem:[%s325 + $0x6e0] sm:$0xf]
                %504 = vst [vmem:[%s326 + $0x160] sm:$0xf] %v503
                %v505 = vld [vmem:[%s325 + $0x6f4] sm:$0xf]
                %506 = vst [vmem:[%s326 + $0x164] sm:$0xf] %v505
                %v507 = vld [vmem:[%s325 + $0x708] sm:$0xf]
                %508 = vst [vmem:[%s326 + $0x168] sm:$0xf] %v507
                %v509 = vld [vmem:[%s325 + $0x71c] sm:$0xf]
                %510 = vst [vmem:[%s326 + $0x16c] sm:$0xf] %v509
                %v511 = vld [vmem:[%s325 + $0x730] sm:$0xf]
                %512 = vst [vmem:[%s326 + $0x170] sm:$0xf] %v511
                %v513 = vld [vmem:[%s325 + $0x744] sm:$0xf]
                %514 = vst [vmem:[%s326 + $0x174] sm:$0xf] %v513
                %v515 = vld [vmem:[%s325 + $0x758] sm:$0xf]
                %516 = vst [vmem:[%s326 + $0x178] sm:$0xf] %v515
                %v517 = vld [vmem:[%s325 + $0x76c] sm:$0xf]
                %518 = vst [vmem:[%s326 + $0x17c] sm:$0xf] %v517
                %v519 = vld [vmem:[%s325 + $0x780] sm:$0xf]
                %520 = vst [vmem:[%s326 + $0x180] sm:$0xf] %v519
                %v521 = vld [vmem:[%s325 + $0x794] sm:$0xf]
                %522 = vst [vmem:[%s326 + $0x184] sm:$0xf] %v521
                %v523 = vld [vmem:[%s325 + $0x7a8] sm:$0xf]
                %524 = vst [vmem:[%s326 + $0x188] sm:$0xf] %v523
                %v525 = vld [vmem:[%s325 + $0x7bc] sm:$0xf]
                %526 = vst [vmem:[%s326 + $0x18c] sm:$0xf] %v525
                %v527 = vld [vmem:[%s325 + $0x7d0] sm:$0xf]
                %528 = vst [vmem:[%s326 + $0x190] sm:$0xf] %v527
                %v529 = vld [vmem:[%s325 + $0x7e4] sm:$0xf]
                %530 = vst [vmem:[%s326 + $0x194] sm:$0xf] %v529
                %v531 = vld [vmem:[%s325 + $0x7f8] sm:$0xf]
                %532 = vst [vmem:[%s326 + $0x198] sm:$0xf] %v531
                %v533 = vld [vmem:[%s325 + $0x80c] sm:$0xf]
                %534 = vst [vmem:[%s326 + $0x19c] sm:$0xf] %v533
                %v535 = vld [vmem:[%s325 + $0x820] sm:$0xf]
                %536 = vst [vmem:[%s326 + $0x1a0] sm:$0xf] %v535
                %v537 = vld [vmem:[%s325 + $0x834] sm:$0xf]
                %538 = vst [vmem:[%s326 + $0x1a4] sm:$0xf] %v537
                %v539 = vld [vmem:[%s325 + $0x848] sm:$0xf]
                %540 = vst [vmem:[%s326 + $0x1a8] sm:$0xf] %v539
                %v541 = vld [vmem:[%s325 + $0x85c] sm:$0xf]
                %542 = vst [vmem:[%s326 + $0x1ac] sm:$0xf] %v541
                %v543 = vld [vmem:[%s325 + $0x870] sm:$0xf]
                %544 = vst [vmem:[%s326 + $0x1b0] sm:$0xf] %v543
                %v545 = vld [vmem:[%s325 + $0x884] sm:$0xf]
                %546 = vst [vmem:[%s326 + $0x1b4] sm:$0xf] %v545
                %v547 = vld [vmem:[%s325 + $0x898] sm:$0xf]
                %548 = vst [vmem:[%s326 + $0x1b8] sm:$0xf] %v547
                %v549 = vld [vmem:[%s325 + $0x8ac] sm:$0xf]
                %550 = vst [vmem:[%s326 + $0x1bc] sm:$0xf] %v549
                %v551 = vld [vmem:[%s325 + $0x8c0] sm:$0xf]
                %552 = vst [vmem:[%s326 + $0x1c0] sm:$0xf] %v551
                %v553 = vld [vmem:[%s325 + $0x8d4] sm:$0xf]
                %554 = vst [vmem:[%s326 + $0x1c4] sm:$0xf] %v553
                %v555 = vld [vmem:[%s325 + $0x8e8] sm:$0xf]
                %556 = vst [vmem:[%s326 + $0x1c8] sm:$0xf] %v555
                %v557 = vld [vmem:[%s325 + $0x8fc] sm:$0xf]
                %558 = vst [vmem:[%s326 + $0x1cc] sm:$0xf] %v557
                %v559 = vld [vmem:[%s325 + $0x910] sm:$0xf]
                %560 = vst [vmem:[%s326 + $0x1d0] sm:$0xf] %v559
                %v561 = vld [vmem:[%s325 + $0x924] sm:$0xf]
                %562 = vst [vmem:[%s326 + $0x1d4] sm:$0xf] %v561
                %v563 = vld [vmem:[%s325 + $0x938] sm:$0xf]
                %564 = vst [vmem:[%s326 + $0x1d8] sm:$0xf] %v563
                %v565 = vld [vmem:[%s325 + $0x94c] sm:$0xf]
                %566 = vst [vmem:[%s326 + $0x1dc] sm:$0xf] %v565
                %v567 = vld [vmem:[%s325 + $0x960] sm:$0xf]
                %568 = vst [vmem:[%s326 + $0x1e0] sm:$0xf] %v567
                %v569 = vld [vmem:[%s325 + $0x974] sm:$0xf]
                %570 = vst [vmem:[%s326 + $0x1e4] sm:$0xf] %v569
                %v571 = vld [vmem:[%s325 + $0x988] sm:$0xf]
                %572 = vst [vmem:[%s326 + $0x1e8] sm:$0xf] %v571
                %v573 = vld [vmem:[%s325 + $0x99c] sm:$0xf]
                %574 = vst [vmem:[%s326 + $0x1ec] sm:$0xf] %v573
                %v575 = vld [vmem:[%s325 + $0x9b0] sm:$0xf]
                %576 = vst [vmem:[%s326 + $0x1f0] sm:$0xf] %v575
                %v577 = vld [vmem:[%s325 + $0x9c4] sm:$0xf]
                %578 = vst [vmem:[%s326 + $0x1f4] sm:$0xf] %v577
                %v579 = vld [vmem:[%s325 + $0x9d8] sm:$0xf]
                %580 = vst [vmem:[%s326 + $0x1f8] sm:$0xf] %v579
                %v581 = vld [vmem:[%s325 + $0x9ec] sm:$0xf]
                %582 = vst [vmem:[%s326 + $0x1fc] sm:$0xf] %v581
              $region65: #{generator_forward.1} parent=59 // loop_footer
                %s324 = sadd.s32 1, %s320
              $region66: #{generator_forward.1} parent=59 // loop_footer_branch
                %319 = sbr.rel target = $region62
              $region67: #{generator_forward.1} parent=59 // loop_exit
                _
            $region60: #{generator_forward.1} parent=51 // pred_fallthru
              _
          $region52: #{generator_forward.1} parent=47 // pred_fallthru
            _
          %858 = vnop
        $region48: #{generator_forward.1} parent=43 // pred_fallthru
          _
        // Predicated region
        $region86: #{generator_forward.1} parent=43 // pred_check
          %p859 = pneg %p225
        $region87: #{generator_forward.1} parent=43 // pred_check_branch
          %861 = sbr.rel (%p859) target = $region89
        $region88: #{generator_forward.1} parent=43 // pred_region
          %p862 = scmp.lt.s32.totalorder %s23, 4
          %s863 = scalar_select %p862, %s23, 4
          %s864 = scalar_lea.vmem %s8, %s863
        $region89: #{generator_forward.1} parent=43 // pred_fallthru
          _
      $region44: #{generator_forward.1} parent=5 // pred_fallthru
        _
      %p865 = scmp.le.s32.totalorder 1, %s15
      %p866 = scmp.lt.s32.totalorder %s15, 6
      %p867 = pnand %p865, %p866
      %p868 = pneg %p867
      // Predicated region
      $region90: #{generator_forward.1} parent=5 // pred_check
        _
      $region91: #{generator_forward.1} parent=5 // pred_check_branch
        %870 = sbr.rel (%p867) target = $region93
      $region92: #{generator_forward.1} parent=5 // pred_region
        %s871 = ssub.s32 %s15, 1
        %s872 = sand.u32 %s192, 1
        %s873 = sand.u32 %s192, 1
        %s874 = smul.addr %s873, 512
        %s875 = scalar_lea.vmem [#allocation3], %s874
        // Predicated region
        $region94: #{generator_forward.1} parent=92 // pred_check
          %p876 = pneg %p205
        $region95: #{generator_forward.1} parent=92 // pred_check_branch
          %878 = sbr.rel (%p876) target = $region97
        $region96: #{generator_forward.1} parent=92 // pred_region
          _
        $region97: #{generator_forward.1} parent=92 // pred_fallthru
          _
        %p879 = scmp.lt.s32.totalorder %s24, 0
        %s880 = scalar_select %p879, %s24, 0
        %s881 = smul.addr %s880, 4
        %s882 = scalar_lea.vmem %s0, %s881
        %p883 = pneg %p53
        %p884 = pneg %p50
        %p885 = pneg %p74
        %p886 = pneg %p71
        %p887 = pneg %p95
        %p888 = pneg %p92
        %p889 = pneg %p116
        %p890 = pneg %p113
        %p891 = pneg %p137
        %p892 = pneg %p134
        %p893 = pneg %p158
        %p894 = pneg %p155
        %p895 = pneg %p179
        %p896 = pneg %p176
        %s897 = sand.u32 %s192, 1
        %s898 = sand.u32 %s192, 1
        %s899 = smul.addr %s898, 512
        %s900 = scalar_lea.vmem [#allocation3], %s899
        %p901 = pneg %p205
        %p902 = pneg %p202
        %p903 = scmp.lt.s32.totalorder %s25, 4
        %s904 = scalar_select %p903, %s25, 4
        %s905 = scalar_lea.vmem %s8, %s904
        %p906 = pneg %p231
        %p907 = pneg %p228
        %p908 = pneg %p259
        %p909 = pneg %p256
        %p910 = scmp.lt.s32.totalorder %s24, 0
        %s911 = scalar_select %p910, %s24, 0
        %p912 = scmp.lt.s32.totalorder %s25, 4
        %s913 = scalar_select %p912, %s25, 4
        %s914 = smul.addr %s911, 5
        %s915 = sadd.s32 %s913, %s914
        %s916 = smul.addr %s915, 8
        %s917 = scalar_lea.vmem %s9, %s916
        %p918 = scmp.lt.s32.totalorder %s24, 0
        %s919 = scalar_select %p918, %s24, 0
        %s920 = smul.addr %s919, 4
        %s921 = scalar_lea.vmem %s0, %s920
        %p922 = scmp.lt.s32.totalorder %s25, 4
        %s923 = scalar_select %p922, %s25, 4
        %s924 = scalar_lea.vmem %s8, %s923
        %p925 = scmp.lt.s32.totalorder %s24, 0
        %s926 = scalar_select %p925, %s24, 0
        %p927 = scmp.lt.s32.totalorder %s25, 4
        %s928 = scalar_select %p927, %s25, 4
        %s929 = smul.addr %s926, 5
        %s930 = sadd.s32 %s928, %s929
        %s931 = smul.addr %s930, 8
        %s932 = scalar_lea.vmem %s9, %s931
        %p934 = scmp.eq.s32.totalorder %s25, 0
        // Predicated region
        $region98: #{generator_forward.1} parent=92 // pred_check
          %p935 = pneg %p934
        $region99: #{generator_forward.1} parent=92 // pred_check_branch
          %937 = sbr.rel (%p935) target = $region101
        $region100: #{generator_forward.1} parent=92 // pred_region
          %v938 = vld [vmem:[%s921] sm:$0xf]
          %v939 = vld [vmem:[%s1] sm:$0xff]
          %v940 = vld [vmem:[%s1 + $0x8] sm:$0xff]
          %v941 = vld [vmem:[%s1 + $0x10] sm:$0xff]
          %v942 = vld [vmem:[%s1 + $0x18] sm:$0xff]
          %v943 = vld [vmem:[%s1 + $0x20] sm:$0xff]
          %v944 = vld [vmem:[%s1 + $0x28] sm:$0xff]
          %v945 = vld [vmem:[%s1 + $0x30] sm:$0xff]
          %v946 = vld [vmem:[%s1 + $0x38] sm:$0xff]
          %v947 = vld [vmem:[%s1 + $0x40] sm:$0xff]
          %v948 = vld [vmem:[%s1 + $0x48] sm:$0xff]
          %v949 = vld [vmem:[%s1 + $0x50] sm:$0xff]
          %v950 = vld [vmem:[%s1 + $0x58] sm:$0xff]
          %v951 = vld [vmem:[%s1 + $0x60] sm:$0xff]
          %v952 = vld [vmem:[%s1 + $0x68] sm:$0xff]
          %v953 = vld [vmem:[%s1 + $0x70] sm:$0xff]
          %v954 = vld [vmem:[%s1 + $0x78] sm:$0xff]
          %v955 = vld [vmem:[%s2] sm:$0x3]
          %v957 = vlaneseq
          %v958 = vshrl.u32 %v957, 7
          %v959 = vsub.s32 0, %v958
          %v960 = vrot.slane %v955, %v959
          %v961 = vlaneseq
          %v962 = vshrl.u32 %v961, 7
          %v963 = vsub.s32 1, %v962
          %v964 = vrot.slane %v955, %v963
          %v983 = vunpack.c.l.b16 %v939
          %v984 = vunpack.c.h.b16 %v939
          %v985 = vunpack.c.l.b16 %v940
          %v986 = vunpack.c.h.b16 %v940
          %v987 = vunpack.c.l.b16 %v941
          %v988 = vunpack.c.h.b16 %v941
          %v989 = vunpack.c.l.b16 %v942
          %v990 = vunpack.c.h.b16 %v942
          %v991 = vunpack.c.l.b16 %v943
          %v992 = vunpack.c.h.b16 %v943
          %v993 = vunpack.c.l.b16 %v944
          %v994 = vunpack.c.h.b16 %v944
          %v995 = vunpack.c.l.b16 %v945
          %v996 = vunpack.c.h.b16 %v945
          %v997 = vunpack.c.l.b16 %v946
          %v998 = vunpack.c.h.b16 %v946
          %v999 = vunpack.c.l.b16 %v947
          %v1000 = vunpack.c.h.b16 %v947
          %v1001 = vunpack.c.l.b16 %v948
          %v1002 = vunpack.c.h.b16 %v948
          %v1003 = vunpack.c.l.b16 %v949
          %v1004 = vunpack.c.h.b16 %v949
          %v1005 = vunpack.c.l.b16 %v950
          %v1006 = vunpack.c.h.b16 %v950
          %v1007 = vunpack.c.l.b16 %v951
          %v1008 = vunpack.c.h.b16 %v951
          %v1009 = vunpack.c.l.b16 %v952
          %v1010 = vunpack.c.h.b16 %v952
          %v1011 = vunpack.c.l.b16 %v953
          %v1012 = vunpack.c.h.b16 %v953
          %v1013 = vunpack.c.l.b16 %v954
          %v1014 = vunpack.c.h.b16 %v954
          %v1015 = vpack.c.b16 %v985, %v983
          %v1016 = vpack.c.b16 %v986, %v984
          %v1017 = vpack.c.b16 %v989, %v987
          %v1018 = vpack.c.b16 %v990, %v988
          %v1019 = vpack.c.b16 %v993, %v991
          %v1020 = vpack.c.b16 %v994, %v992
          %v1021 = vpack.c.b16 %v997, %v995
          %v1022 = vpack.c.b16 %v998, %v996
          %v1023 = vpack.c.b16 %v1001, %v999
          %v1024 = vpack.c.b16 %v1002, %v1000
          %v1025 = vpack.c.b16 %v1005, %v1003
          %v1026 = vpack.c.b16 %v1006, %v1004
          %v1027 = vpack.c.b16 %v1009, %v1007
          %v1028 = vpack.c.b16 %v1010, %v1008
          %v1029 = vpack.c.b16 %v1013, %v1011
          %v1030 = vpack.c.b16 %v1014, %v1012
          %1047 = vmatprep.subr.bf16.mxu0 %v1016
          %1048 = vmatpush1.bf16.msra.mxu0 %v1015
          %1049 = vmatprep.subr.bf16.mxu0 %v1018
          %1050 = vmatpush1.bf16.msra.mxu0 %v1017
          %1051 = vmatprep.subr.bf16.mxu0 %v1020
          %1052 = vmatpush1.bf16.msra.mxu0 %v1019
          %1053 = vmatprep.subr.bf16.mxu0 %v1022
          %1054 = vmatpush1.bf16.msra.mxu0 %v1021
          %1055 = vmatprep.subr.bf16.mxu0 %v1024
          %1056 = vmatpush1.bf16.msra.mxu0 %v1023
          %1057 = vmatprep.subr.bf16.mxu0 %v1026
          %1058 = vmatpush1.bf16.msra.mxu0 %v1025
          %1059 = vmatprep.subr.bf16.mxu0 %v1028
          %1060 = vmatpush1.bf16.msra.mxu0 %v1027
          %1061 = vmatprep.subr.bf16.mxu0 %v1030
          %1062 = vmatpush1.bf16.msra.mxu0 %v1029
          %1063 = vmatprep.subr.bf16.mxu0 0
          %1064 = vmatpush1.bf16.msra.mxu0 0
          %1065 = vmatprep.subr.bf16.mxu0 0
          %1066 = vmatpush1.bf16.msra.mxu0 0
          %1067 = vmatprep.subr.bf16.mxu0 0
          %1068 = vmatpush1.bf16.msra.mxu0 0
          %1069 = vmatprep.subr.bf16.mxu0 0
          %1070 = vmatpush1.bf16.msra.mxu0 0
          %1071 = vmatprep.subr.bf16.mxu0 0
          %1072 = vmatpush1.bf16.msra.mxu0 0
          %1073 = vmatprep.subr.bf16.mxu0 0
          %1074 = vmatpush1.bf16.msra.mxu0 0
          %1075 = vmatprep.subr.bf16.mxu0 0
          %1076 = vmatpush1.bf16.msra.mxu0 0
          %1077 = vmatprep.subr.bf16.mxu0 0
          %1078 = vmatpush1.bf16.msra.mxu0 0
          %1079 = vmatprep.mubr.bf16.mxu0 0
          %1080 = vmatmul.mubr.bf16.gmra.mrb[0].mxu0 %v938
          %v1081 = vpop.f32.mrb[0].mxu0
          %v1082 = vadd.f32 %v960, %v1081
          %v1083 = vpop.f32.mrb[0].mxu0
          %v1084 = vadd.f32 %v964, %v1083
          %v1085 = vpop.f32.mrb[0].mxu0
          %v1086 = vpop.f32.mrb[0].mxu0
          %1087 = vdwg.mxu0
          %v1088 = vmul.f32 %v1082, 0.2
          %v1089 = vmul.f32 %v1084, 0.2
          %v1090 = vmax.f32 %v1082, %v1088
          %v1091 = vmax.f32 %v1084, %v1089
          %v1092 = vpack.c.bf16 %v1090, %v1090
          %v1093 = vpack.c.bf16 %v1091, %v1091
          %v1094 = vld [vmem:[%s3] sm:$0xff]
          %v1095 = vld [vmem:[%s3 + $0x8] sm:$0xff]
          %v1096 = vld [vmem:[%s3 + $0x10] sm:$0xff]
          %v1097 = vld [vmem:[%s3 + $0x18] sm:$0xff]
          %v1098 = vld [vmem:[%s3 + $0x20] sm:$0xff]
          %v1099 = vld [vmem:[%s3 + $0x28] sm:$0xff]
          %v1100 = vld [vmem:[%s3 + $0x30] sm:$0xff]
          %v1101 = vld [vmem:[%s3 + $0x38] sm:$0xff]
          %v1102 = vld [vmem:[%s3 + $0x40] sm:$0xff]
          %v1103 = vld [vmem:[%s3 + $0x48] sm:$0xff]
          %v1104 = vld [vmem:[%s3 + $0x50] sm:$0xff]
          %v1105 = vld [vmem:[%s3 + $0x58] sm:$0xff]
          %v1106 = vld [vmem:[%s3 + $0x60] sm:$0xff]
          %v1107 = vld [vmem:[%s3 + $0x68] sm:$0xff]
          %v1108 = vld [vmem:[%s3 + $0x70] sm:$0xff]
          %v1109 = vld [vmem:[%s3 + $0x78] sm:$0xff]
          %v1110 = vld [vmem:[%s3 + $0x80] sm:$0xff]
          %v1111 = vld [vmem:[%s3 + $0x88] sm:$0xff]
          %v1112 = vld [vmem:[%s3 + $0x90] sm:$0xff]
          %v1113 = vld [vmem:[%s3 + $0x98] sm:$0xff]
          %v1114 = vld [vmem:[%s3 + $0xa0] sm:$0xff]
          %v1115 = vld [vmem:[%s3 + $0xa8] sm:$0xff]
          %v1116 = vld [vmem:[%s3 + $0xb0] sm:$0xff]
          %v1117 = vld [vmem:[%s3 + $0xb8] sm:$0xff]
          %v1118 = vld [vmem:[%s3 + $0xc0] sm:$0xff]
          %v1119 = vld [vmem:[%s3 + $0xc8] sm:$0xff]
          %v1120 = vld [vmem:[%s3 + $0xd0] sm:$0xff]
          %v1121 = vld [vmem:[%s3 + $0xd8] sm:$0xff]
          %v1122 = vld [vmem:[%s3 + $0xe0] sm:$0xff]
          %v1123 = vld [vmem:[%s3 + $0xe8] sm:$0xff]
          %v1124 = vld [vmem:[%s3 + $0xf0] sm:$0xff]
          %v1125 = vld [vmem:[%s3 + $0xf8] sm:$0xff]
          %v1126 = vld [vmem:[%s3 + $0x100] sm:$0xff]
          %v1127 = vld [vmem:[%s3 + $0x108] sm:$0xff]
          %v1128 = vld [vmem:[%s3 + $0x110] sm:$0xff]
          %v1129 = vld [vmem:[%s3 + $0x118] sm:$0xff]
          %v1130 = vld [vmem:[%s3 + $0x120] sm:$0xff]
          %v1131 = vld [vmem:[%s3 + $0x128] sm:$0xff]
          %v1132 = vld [vmem:[%s3 + $0x130] sm:$0xff]
          %v1133 = vld [vmem:[%s3 + $0x138] sm:$0xff]
          %v1134 = vld [vmem:[%s3 + $0x140] sm:$0xff]
          %v1135 = vld [vmem:[%s3 + $0x148] sm:$0xff]
          %v1136 = vld [vmem:[%s3 + $0x150] sm:$0xff]
          %v1137 = vld [vmem:[%s3 + $0x158] sm:$0xff]
          %v1138 = vld [vmem:[%s3 + $0x160] sm:$0xff]
          %v1139 = vld [vmem:[%s3 + $0x168] sm:$0xff]
          %v1140 = vld [vmem:[%s3 + $0x170] sm:$0xff]
          %v1141 = vld [vmem:[%s3 + $0x178] sm:$0xff]
          %v1142 = vld [vmem:[%s3 + $0x180] sm:$0xff]
          %v1143 = vld [vmem:[%s3 + $0x188] sm:$0xff]
          %v1144 = vld [vmem:[%s3 + $0x190] sm:$0xff]
          %v1145 = vld [vmem:[%s3 + $0x198] sm:$0xff]
          %v1146 = vld [vmem:[%s3 + $0x1a0] sm:$0xff]
          %v1147 = vld [vmem:[%s3 + $0x1a8] sm:$0xff]
          %v1148 = vld [vmem:[%s3 + $0x1b0] sm:$0xff]
          %v1149 = vld [vmem:[%s3 + $0x1b8] sm:$0xff]
          %v1150 = vld [vmem:[%s3 + $0x1c0] sm:$0xff]
          %v1151 = vld [vmem:[%s3 + $0x1c8] sm:$0xff]
          %v1152 = vld [vmem:[%s3 + $0x1d0] sm:$0xff]
          %v1153 = vld [vmem:[%s3 + $0x1d8] sm:$0xff]
          %v1154 = vld [vmem:[%s3 + $0x1e0] sm:$0xff]
          %v1155 = vld [vmem:[%s3 + $0x1e8] sm:$0xff]
          %v1156 = vld [vmem:[%s3 + $0x1f0] sm:$0xff]
          %v1157 = vld [vmem:[%s3 + $0x1f8] sm:$0xff]
          %v1158 = vld [vmem:[%s4] sm:$0xf]
          %v1160 = vlaneseq
          %v1161 = vshrl.u32 %v1160, 7
          %v1162 = vsub.s32 0, %v1161
          %v1163 = vrot.slane %v1158, %v1162
          %v1164 = vlaneseq
          %v1165 = vshrl.u32 %v1164, 7
          %v1166 = vsub.s32 1, %v1165
          %v1167 = vrot.slane %v1158, %v1166
          %v1168 = vlaneseq
          %v1169 = vshrl.u32 %v1168, 7
          %v1170 = vsub.s32 2, %v1169
          %v1171 = vrot.slane %v1158, %v1170
          %v1172 = vlaneseq
          %v1173 = vshrl.u32 %v1172, 7
          %v1174 = vsub.s32 3, %v1173
          %v1175 = vrot.slane %v1158, %v1174
          %v1244 = vunpack.c.l.b16 %v1094
          %v1245 = vunpack.c.h.b16 %v1094
          %v1246 = vunpack.c.l.b16 %v1095
          %v1247 = vunpack.c.h.b16 %v1095
          %v1248 = vunpack.c.l.b16 %v1096
          %v1249 = vunpack.c.h.b16 %v1096
          %v1250 = vunpack.c.l.b16 %v1097
          %v1251 = vunpack.c.h.b16 %v1097
          %v1252 = vunpack.c.l.b16 %v1098
          %v1253 = vunpack.c.h.b16 %v1098
          %v1254 = vunpack.c.l.b16 %v1099
          %v1255 = vunpack.c.h.b16 %v1099
          %v1256 = vunpack.c.l.b16 %v1100
          %v1257 = vunpack.c.h.b16 %v1100
          %v1258 = vunpack.c.l.b16 %v1101
          %v1259 = vunpack.c.h.b16 %v1101
          %v1260 = vunpack.c.l.b16 %v1102
          %v1261 = vunpack.c.h.b16 %v1102
          %v1262 = vunpack.c.l.b16 %v1103
          %v1263 = vunpack.c.h.b16 %v1103
          %v1264 = vunpack.c.l.b16 %v1104
          %v1265 = vunpack.c.h.b16 %v1104
          %v1266 = vunpack.c.l.b16 %v1105
          %v1267 = vunpack.c.h.b16 %v1105
          %v1268 = vunpack.c.l.b16 %v1106
          %v1269 = vunpack.c.h.b16 %v1106
          %v1270 = vunpack.c.l.b16 %v1107
          %v1271 = vunpack.c.h.b16 %v1107
          %v1272 = vunpack.c.l.b16 %v1108
          %v1273 = vunpack.c.h.b16 %v1108
          %v1274 = vunpack.c.l.b16 %v1109
          %v1275 = vunpack.c.h.b16 %v1109
          %v1276 = vunpack.c.l.b16 %v1110
          %v1277 = vunpack.c.h.b16 %v1110
          %v1278 = vunpack.c.l.b16 %v1111
          %v1279 = vunpack.c.h.b16 %v1111
          %v1280 = vunpack.c.l.b16 %v1112
          %v1281 = vunpack.c.h.b16 %v1112
          %v1282 = vunpack.c.l.b16 %v1113
          %v1283 = vunpack.c.h.b16 %v1113
          %v1284 = vunpack.c.l.b16 %v1114
          %v1285 = vunpack.c.h.b16 %v1114
          %v1286 = vunpack.c.l.b16 %v1115
          %v1287 = vunpack.c.h.b16 %v1115
          %v1288 = vunpack.c.l.b16 %v1116
          %v1289 = vunpack.c.h.b16 %v1116
          %v1290 = vunpack.c.l.b16 %v1117
          %v1291 = vunpack.c.h.b16 %v1117
          %v1292 = vunpack.c.l.b16 %v1118
          %v1293 = vunpack.c.h.b16 %v1118
          %v1294 = vunpack.c.l.b16 %v1119
          %v1295 = vunpack.c.h.b16 %v1119
          %v1296 = vunpack.c.l.b16 %v1120
          %v1297 = vunpack.c.h.b16 %v1120
          %v1298 = vunpack.c.l.b16 %v1121
          %v1299 = vunpack.c.h.b16 %v1121
          %v1300 = vunpack.c.l.b16 %v1122
          %v1301 = vunpack.c.h.b16 %v1122
          %v1302 = vunpack.c.l.b16 %v1123
          %v1303 = vunpack.c.h.b16 %v1123
          %v1304 = vunpack.c.l.b16 %v1124
          %v1305 = vunpack.c.h.b16 %v1124
          %v1306 = vunpack.c.l.b16 %v1125
          %v1307 = vunpack.c.h.b16 %v1125
          %v1308 = vunpack.c.l.b16 %v1126
          %v1309 = vunpack.c.h.b16 %v1126
          %v1310 = vunpack.c.l.b16 %v1127
          %v1311 = vunpack.c.h.b16 %v1127
          %v1312 = vunpack.c.l.b16 %v1128
          %v1313 = vunpack.c.h.b16 %v1128
          %v1314 = vunpack.c.l.b16 %v1129
          %v1315 = vunpack.c.h.b16 %v1129
          %v1316 = vunpack.c.l.b16 %v1130
          %v1317 = vunpack.c.h.b16 %v1130
          %v1318 = vunpack.c.l.b16 %v1131
          %v1319 = vunpack.c.h.b16 %v1131
          %v1320 = vunpack.c.l.b16 %v1132
          %v1321 = vunpack.c.h.b16 %v1132
          %v1322 = vunpack.c.l.b16 %v1133
          %v1323 = vunpack.c.h.b16 %v1133
          %v1324 = vunpack.c.l.b16 %v1134
          %v1325 = vunpack.c.h.b16 %v1134
          %v1326 = vunpack.c.l.b16 %v1135
          %v1327 = vunpack.c.h.b16 %v1135
          %v1328 = vunpack.c.l.b16 %v1136
          %v1329 = vunpack.c.h.b16 %v1136
          %v1330 = vunpack.c.l.b16 %v1137
          %v1331 = vunpack.c.h.b16 %v1137
          %v1332 = vunpack.c.l.b16 %v1138
          %v1333 = vunpack.c.h.b16 %v1138
          %v1334 = vunpack.c.l.b16 %v1139
          %v1335 = vunpack.c.h.b16 %v1139
          %v1336 = vunpack.c.l.b16 %v1140
          %v1337 = vunpack.c.h.b16 %v1140
          %v1338 = vunpack.c.l.b16 %v1141
          %v1339 = vunpack.c.h.b16 %v1141
          %v1340 = vunpack.c.l.b16 %v1142
          %v1341 = vunpack.c.h.b16 %v1142
          %v1342 = vunpack.c.l.b16 %v1143
          %v1343 = vunpack.c.h.b16 %v1143
          %v1344 = vunpack.c.l.b16 %v1144
          %v1345 = vunpack.c.h.b16 %v1144
          %v1346 = vunpack.c.l.b16 %v1145
          %v1347 = vunpack.c.h.b16 %v1145
          %v1348 = vunpack.c.l.b16 %v1146
          %v1349 = vunpack.c.h.b16 %v1146
          %v1350 = vunpack.c.l.b16 %v1147
          %v1351 = vunpack.c.h.b16 %v1147
          %v1352 = vunpack.c.l.b16 %v1148
          %v1353 = vunpack.c.h.b16 %v1148
          %v1354 = vunpack.c.l.b16 %v1149
          %v1355 = vunpack.c.h.b16 %v1149
          %v1356 = vunpack.c.l.b16 %v1150
          %v1357 = vunpack.c.h.b16 %v1150
          %v1358 = vunpack.c.l.b16 %v1151
          %v1359 = vunpack.c.h.b16 %v1151
          %v1360 = vunpack.c.l.b16 %v1152
          %v1361 = vunpack.c.h.b16 %v1152
          %v1362 = vunpack.c.l.b16 %v1153
          %v1363 = vunpack.c.h.b16 %v1153
          %v1364 = vunpack.c.l.b16 %v1154
          %v1365 = vunpack.c.h.b16 %v1154
          %v1366 = vunpack.c.l.b16 %v1155
          %v1367 = vunpack.c.h.b16 %v1155
          %v1368 = vunpack.c.l.b16 %v1156
          %v1369 = vunpack.c.h.b16 %v1156
          %v1370 = vunpack.c.l.b16 %v1157
          %v1371 = vunpack.c.h.b16 %v1157
          %v1372 = vpack.c.b16 %v1248, %v1244
          %v1373 = vpack.c.b16 %v1249, %v1245
          %v1374 = vpack.c.b16 %v1250, %v1246
          %v1375 = vpack.c.b16 %v1251, %v1247
          %v1376 = vpack.c.b16 %v1256, %v1252
          %v1377 = vpack.c.b16 %v1257, %v1253
          %v1378 = vpack.c.b16 %v1258, %v1254
          %v1379 = vpack.c.b16 %v1259, %v1255
          %v1380 = vpack.c.b16 %v1264, %v1260
          %v1381 = vpack.c.b16 %v1265, %v1261
          %v1382 = vpack.c.b16 %v1266, %v1262
          %v1383 = vpack.c.b16 %v1267, %v1263
          %v1384 = vpack.c.b16 %v1272, %v1268
          %v1385 = vpack.c.b16 %v1273, %v1269
          %v1386 = vpack.c.b16 %v1274, %v1270
          %v1387 = vpack.c.b16 %v1275, %v1271
          %v1388 = vpack.c.b16 %v1280, %v1276
          %v1389 = vpack.c.b16 %v1281, %v1277
          %v1390 = vpack.c.b16 %v1282, %v1278
          %v1391 = vpack.c.b16 %v1283, %v1279
          %v1392 = vpack.c.b16 %v1288, %v1284
          %v1393 = vpack.c.b16 %v1289, %v1285
          %v1394 = vpack.c.b16 %v1290, %v1286
          %v1395 = vpack.c.b16 %v1291, %v1287
          %v1396 = vpack.c.b16 %v1296, %v1292
          %v1397 = vpack.c.b16 %v1297, %v1293
          %v1398 = vpack.c.b16 %v1298, %v1294
          %v1399 = vpack.c.b16 %v1299, %v1295
          %v1400 = vpack.c.b16 %v1304, %v1300
          %v1401 = vpack.c.b16 %v1305, %v1301
          %v1402 = vpack.c.b16 %v1306, %v1302
          %v1403 = vpack.c.b16 %v1307, %v1303
          %v1404 = vpack.c.b16 %v1312, %v1308
          %v1405 = vpack.c.b16 %v1313, %v1309
          %v1406 = vpack.c.b16 %v1314, %v1310
          %v1407 = vpack.c.b16 %v1315, %v1311
          %v1408 = vpack.c.b16 %v1320, %v1316
          %v1409 = vpack.c.b16 %v1321, %v1317
          %v1410 = vpack.c.b16 %v1322, %v1318
          %v1411 = vpack.c.b16 %v1323, %v1319
          %v1412 = vpack.c.b16 %v1328, %v1324
          %v1413 = vpack.c.b16 %v1329, %v1325
          %v1414 = vpack.c.b16 %v1330, %v1326
          %v1415 = vpack.c.b16 %v1331, %v1327
          %v1416 = vpack.c.b16 %v1336, %v1332
          %v1417 = vpack.c.b16 %v1337, %v1333
          %v1418 = vpack.c.b16 %v1338, %v1334
          %v1419 = vpack.c.b16 %v1339, %v1335
          %v1420 = vpack.c.b16 %v1344, %v1340
          %v1421 = vpack.c.b16 %v1345, %v1341
          %v1422 = vpack.c.b16 %v1346, %v1342
          %v1423 = vpack.c.b16 %v1347, %v1343
          %v1424 = vpack.c.b16 %v1352, %v1348
          %v1425 = vpack.c.b16 %v1353, %v1349
          %v1426 = vpack.c.b16 %v1354, %v1350
          %v1427 = vpack.c.b16 %v1355, %v1351
          %v1428 = vpack.c.b16 %v1360, %v1356
          %v1429 = vpack.c.b16 %v1361, %v1357
          %v1430 = vpack.c.b16 %v1362, %v1358
          %v1431 = vpack.c.b16 %v1363, %v1359
          %v1432 = vpack.c.b16 %v1368, %v1364
          %v1433 = vpack.c.b16 %v1369, %v1365
          %v1434 = vpack.c.b16 %v1370, %v1366
          %v1435 = vpack.c.b16 %v1371, %v1367
          %1500 = vmatprep.subr.bf16.mxu0 %v1373
          %1501 = vmatpush1.bf16.msra.mxu0 %v1372
          %1502 = vmatprep.subr.bf16.mxu0 %v1377
          %1503 = vmatpush1.bf16.msra.mxu0 %v1376
          %1504 = vmatprep.subr.bf16.mxu0 %v1381
          %1505 = vmatpush1.bf16.msra.mxu0 %v1380
          %1506 = vmatprep.subr.bf16.mxu0 %v1385
          %1507 = vmatpush1.bf16.msra.mxu0 %v1384
          %1508 = vmatprep.subr.bf16.mxu0 %v1389
          %1509 = vmatpush1.bf16.msra.mxu0 %v1388
          %1510 = vmatprep.subr.bf16.mxu0 %v1393
          %1511 = vmatpush1.bf16.msra.mxu0 %v1392
          %1512 = vmatprep.subr.bf16.mxu0 %v1397
          %1513 = vmatpush1.bf16.msra.mxu0 %v1396
          %1514 = vmatprep.subr.bf16.mxu0 %v1401
          %1515 = vmatpush1.bf16.msra.mxu0 %v1400
          %1516 = vmatprep.subr.bf16.mxu0 %v1405
          %1517 = vmatpush1.bf16.msra.mxu0 %v1404
          %1518 = vmatprep.subr.bf16.mxu0 %v1409
          %1519 = vmatpush1.bf16.msra.mxu0 %v1408
          %1520 = vmatprep.subr.bf16.mxu0 %v1413
          %1521 = vmatpush1.bf16.msra.mxu0 %v1412
          %1522 = vmatprep.subr.bf16.mxu0 %v1417
          %1523 = vmatpush1.bf16.msra.mxu0 %v1416
          %1524 = vmatprep.subr.bf16.mxu0 %v1421
          %1525 = vmatpush1.bf16.msra.mxu0 %v1420
          %1526 = vmatprep.subr.bf16.mxu0 %v1425
          %1527 = vmatpush1.bf16.msra.mxu0 %v1424
          %1528 = vmatprep.subr.bf16.mxu0 %v1429
          %1529 = vmatpush1.bf16.msra.mxu0 %v1428
          %1530 = vmatprep.subr.bf16.mxu0 %v1433
          %1531 = vmatpush1.bf16.msra.mxu0 %v1432
          %1532 = vmatprep.mubr.bf16.mxu0 %v1093
          %1533 = vmatmul.mubr.bf16.gmra.mrb[0].mxu0 %v1092
          %v1534 = vpop.f32.mrb[0].mxu0
          %v1535 = vadd.f32 %v1163, %v1534
          %v1536 = vpop.f32.mrb[0].mxu0
          %v1537 = vadd.f32 %v1167, %v1536
          %v1538 = vpop.f32.mrb[0].mxu0
          %v1539 = vpop.f32.mrb[0].mxu0
          %1540 = vdwg.mxu0
          %1541 = vmatprep.subr.bf16.mxu0 %v1375
          %1542 = vmatpush1.bf16.msra.mxu0 %v1374
          %1543 = vmatprep.subr.bf16.mxu0 %v1379
          %1544 = vmatpush1.bf16.msra.mxu0 %v1378
          %1545 = vmatprep.subr.bf16.mxu0 %v1383
          %1546 = vmatpush1.bf16.msra.mxu0 %v1382
          %1547 = vmatprep.subr.bf16.mxu0 %v1387
          %1548 = vmatpush1.bf16.msra.mxu0 %v1386
          %1549 = vmatprep.subr.bf16.mxu0 %v1391
          %1550 = vmatpush1.bf16.msra.mxu0 %v1390
          %1551 = vmatprep.subr.bf16.mxu0 %v1395
          %1552 = vmatpush1.bf16.msra.mxu0 %v1394
          %1553 = vmatprep.subr.bf16.mxu0 %v1399
          %1554 = vmatpush1.bf16.msra.mxu0 %v1398
          %1555 = vmatprep.subr.bf16.mxu0 %v1403
          %1556 = vmatpush1.bf16.msra.mxu0 %v1402
          %1557 = vmatprep.subr.bf16.mxu0 %v1407
          %1558 = vmatpush1.bf16.msra.mxu0 %v1406
          %1559 = vmatprep.subr.bf16.mxu0 %v1411
          %1560 = vmatpush1.bf16.msra.mxu0 %v1410
          %1561 = vmatprep.subr.bf16.mxu0 %v1415
          %1562 = vmatpush1.bf16.msra.mxu0 %v1414
          %1563 = vmatprep.subr.bf16.mxu0 %v1419
          %1564 = vmatpush1.bf16.msra.mxu0 %v1418
          %1565 = vmatprep.subr.bf16.mxu0 %v1423
          %1566 = vmatpush1.bf16.msra.mxu0 %v1422
          %1567 = vmatprep.subr.bf16.mxu0 %v1427
          %1568 = vmatpush1.bf16.msra.mxu0 %v1426
          %1569 = vmatprep.subr.bf16.mxu0 %v1431
          %1570 = vmatpush1.bf16.msra.mxu0 %v1430
          %1571 = vmatprep.subr.bf16.mxu0 %v1435
          %1572 = vmatpush1.bf16.msra.mxu0 %v1434
          %1573 = vmatprep.mubr.bf16.mxu0 %v1093
          %1574 = vmatmul.mubr.bf16.gmra.mrb[0].mxu0 %v1092
          %v1575 = vpop.f32.mrb[0].mxu0
          %v1576 = vadd.f32 %v1171, %v1575
          %v1577 = vpop.f32.mrb[0].mxu0
          %v1578 = vadd.f32 %v1175, %v1577
          %v1579 = vpop.f32.mrb[0].mxu0
          %v1580 = vpop.f32.mrb[0].mxu0
          %1581 = vdwg.mxu0
          %v1582 = vmul.f32 %v1535, 0.2
          %v1583 = vmul.f32 %v1537, 0.2
          %v1584 = vmul.f32 %v1576, 0.2
          %v1585 = vmul.f32 %v1578, 0.2
          %v1586 = vmax.f32 %v1535, %v1582
          %v1587 = vmax.f32 %v1537, %v1583
          %v1588 = vmax.f32 %v1576, %v1584
          %v1589 = vmax.f32 %v1578, %v1585
          %v1590 = vpack.c.bf16 %v1586, %v1586
          %v1591 = vpack.c.bf16 %v1587, %v1587
          %v1592 = vpack.c.bf16 %v1588, %v1588
          %v1593 = vpack.c.bf16 %v1589, %v1589
          %v1594 = vld [vmem:[%s5] sm:$0xff]
          %v1595 = vld [vmem:[%s5 + $0x8] sm:$0xff]
          %v1596 = vld [vmem:[%s5 + $0x10] sm:$0xff]
          %v1597 = vld [vmem:[%s5 + $0x18] sm:$0xff]
          %v1598 = vld [vmem:[%s5 + $0x20] sm:$0xff]
          %v1599 = vld [vmem:[%s5 + $0x28] sm:$0xff]
          %v1600 = vld [vmem:[%s5 + $0x30] sm:$0xff]
          %v1601 = vld [vmem:[%s5 + $0x38] sm:$0xff]
          %v1602 = vld [vmem:[%s5 + $0x40] sm:$0xff]
          %v1603 = vld [vmem:[%s5 + $0x48] sm:$0xff]
          %v1604 = vld [vmem:[%s5 + $0x50] sm:$0xff]
          %v1605 = vld [vmem:[%s5 + $0x58] sm:$0xff]
          %v1606 = vld [vmem:[%s5 + $0x60] sm:$0xff]
          %v1607 = vld [vmem:[%s5 + $0x68] sm:$0xff]
          %v1608 = vld [vmem:[%s5 + $0x70] sm:$0xff]
          %v1609 = vld [vmem:[%s5 + $0x78] sm:$0xff]
          %v1610 = vld [vmem:[%s5 + $0x80] sm:$0xff]
          %v1611 = vld [vmem:[%s5 + $0x88] sm:$0xff]
          %v1612 = vld [vmem:[%s5 + $0x90] sm:$0xff]
          %v1613 = vld [vmem:[%s5 + $0x98] sm:$0xff]
          %v1614 = vld [vmem:[%s5 + $0xa0] sm:$0xff]
          %v1615 = vld [vmem:[%s5 + $0xa8] sm:$0xff]
          %v1616 = vld [vmem:[%s5 + $0xb0] sm:$0xff]
          %v1617 = vld [vmem:[%s5 + $0xb8] sm:$0xff]
          %v1618 = vld [vmem:[%s5 + $0xc0] sm:$0xff]
          %v1619 = vld [vmem:[%s5 + $0xc8] sm:$0xff]
          %v1620 = vld [vmem:[%s5 + $0xd0] sm:$0xff]
          %v1621 = vld [vmem:[%s5 + $0xd8] sm:$0xff]
          %v1622 = vld [vmem:[%s5 + $0xe0] sm:$0xff]
          %v1623 = vld [vmem:[%s5 + $0xe8] sm:$0xff]
          %v1624 = vld [vmem:[%s5 + $0xf0] sm:$0xff]
          %v1625 = vld [vmem:[%s5 + $0xf8] sm:$0xff]
          %v1626 = vld [vmem:[%s5 + $0x100] sm:$0xff]
          %v1627 = vld [vmem:[%s5 + $0x108] sm:$0xff]
          %v1628 = vld [vmem:[%s5 + $0x110] sm:$0xff]
          %v1629 = vld [vmem:[%s5 + $0x118] sm:$0xff]
          %v1630 = vld [vmem:[%s5 + $0x120] sm:$0xff]
          %v1631 = vld [vmem:[%s5 + $0x128] sm:$0xff]
          %v1632 = vld [vmem:[%s5 + $0x130] sm:$0xff]
          %v1633 = vld [vmem:[%s5 + $0x138] sm:$0xff]
          %v1634 = vld [vmem:[%s5 + $0x140] sm:$0xff]
          %v1635 = vld [vmem:[%s5 + $0x148] sm:$0xff]
          %v1636 = vld [vmem:[%s5 + $0x150] sm:$0xff]
          %v1637 = vld [vmem:[%s5 + $0x158] sm:$0xff]
          %v1638 = vld [vmem:[%s5 + $0x160] sm:$0xff]
          %v1639 = vld [vmem:[%s5 + $0x168] sm:$0xff]
          %v1640 = vld [vmem:[%s5 + $0x170] sm:$0xff]
          %v1641 = vld [vmem:[%s5 + $0x178] sm:$0xff]
          %v1642 = vld [vmem:[%s5 + $0x180] sm:$0xff]
          %v1643 = vld [vmem:[%s5 + $0x188] sm:$0xff]
          %v1644 = vld [vmem:[%s5 + $0x190] sm:$0xff]
          %v1645 = vld [vmem:[%s5 + $0x198] sm:$0xff]
          %v1646 = vld [vmem:[%s5 + $0x1a0] sm:$0xff]
          %v1647 = vld [vmem:[%s5 + $0x1a8] sm:$0xff]
          %v1648 = vld [vmem:[%s5 + $0x1b0] sm:$0xff]
          %v1649 = vld [vmem:[%s5 + $0x1b8] sm:$0xff]
          %v1650 = vld [vmem:[%s5 + $0x1c0] sm:$0xff]
          %v1651 = vld [vmem:[%s5 + $0x1c8] sm:$0xff]
          %v1652 = vld [vmem:[%s5 + $0x1d0] sm:$0xff]
          %v1653 = vld [vmem:[%s5 + $0x1d8] sm:$0xff]
          %v1654 = vld [vmem:[%s5 + $0x1e0] sm:$0xff]
          %v1655 = vld [vmem:[%s5 + $0x1e8] sm:$0xff]
          %v1656 = vld [vmem:[%s5 + $0x1f0] sm:$0xff]
          %v1657 = vld [vmem:[%s5 + $0x1f8] sm:$0xff]
          %v1658 = vld [vmem:[%s5 + $0x200] sm:$0xff]
          %v1659 = vld [vmem:[%s5 + $0x208] sm:$0xff]
          %v1660 = vld [vmem:[%s5 + $0x210] sm:$0xff]
          %v1661 = vld [vmem:[%s5 + $0x218] sm:$0xff]
          %v1662 = vld [vmem:[%s5 + $0x220] sm:$0xff]
          %v1663 = vld [vmem:[%s5 + $0x228] sm:$0xff]
          %v1664 = vld [vmem:[%s5 + $0x230] sm:$0xff]
          %v1665 = vld [vmem:[%s5 + $0x238] sm:$0xff]
          %v1666 = vld [vmem:[%s5 + $0x240] sm:$0xff]
          %v1667 = vld [vmem:[%s5 + $0x248] sm:$0xff]
          %v1668 = vld [vmem:[%s5 + $0x250] sm:$0xff]
          %v1669 = vld [vmem:[%s5 + $0x258] sm:$0xff]
          %v1670 = vld [vmem:[%s5 + $0x260] sm:$0xff]
          %v1671 = vld [vmem:[%s5 + $0x268] sm:$0xff]
          %v1672 = vld [vmem:[%s5 + $0x270] sm:$0xff]
          %v1673 = vld [vmem:[%s5 + $0x278] sm:$0xff]
          %v1674 = vld [vmem:[%s5 + $0x280] sm:$0xff]
          %v1675 = vld [vmem:[%s5 + $0x288] sm:$0xff]
          %v1676 = vld [vmem:[%s5 + $0x290] sm:$0xff]
          %v1677 = vld [vmem:[%s5 + $0x298] sm:$0xff]
          %v1678 = vld [vmem:[%s5 + $0x2a0] sm:$0xff]
          %v1679 = vld [vmem:[%s5 + $0x2a8] sm:$0xff]
          %v1680 = vld [vmem:[%s5 + $0x2b0] sm:$0xff]
          %v1681 = vld [vmem:[%s5 + $0x2b8] sm:$0xff]
          %v1682 = vld [vmem:[%s5 + $0x2c0] sm:$0xff]
          %v1683 = vld [vmem:[%s5 + $0x2c8] sm:$0xff]
          %v1684 = vld [vmem:[%s5 + $0x2d0] sm:$0xff]
          %v1685 = vld [vmem:[%s5 + $0x2d8] sm:$0xff]
          %v1686 = vld [vmem:[%s5 + $0x2e0] sm:$0xff]
          %v1687 = vld [vmem:[%s5 + $0x2e8] sm:$0xff]
          %v1688 = vld [vmem:[%s5 + $0x2f0] sm:$0xff]
          %v1689 = vld [vmem:[%s5 + $0x2f8] sm:$0xff]
          %v1690 = vld [vmem:[%s5 + $0x300] sm:$0xff]
          %v1691 = vld [vmem:[%s5 + $0x308] sm:$0xff]
          %v1692 = vld [vmem:[%s5 + $0x310] sm:$0xff]
          %v1693 = vld [vmem:[%s5 + $0x318] sm:$0xff]
          %v1694 = vld [vmem:[%s5 + $0x320] sm:$0xff]
          %v1695 = vld [vmem:[%s5 + $0x328] sm:$0xff]
          %v1696 = vld [vmem:[%s5 + $0x330] sm:$0xff]
          %v1697 = vld [vmem:[%s5 + $0x338] sm:$0xff]
          %v1698 = vld [vmem:[%s5 + $0x340] sm:$0xff]
          %v1699 = vld [vmem:[%s5 + $0x348] sm:$0xff]
          %v1700 = vld [vmem:[%s5 + $0x350] sm:$0xff]
          %v1701 = vld [vmem:[%s5 + $0x358] sm:$0xff]
          %v1702 = vld [vmem:[%s5 + $0x360] sm:$0xff]
          %v1703 = vld [vmem:[%s5 + $0x368] sm:$0xff]
          %v1704 = vld [vmem:[%s5 + $0x370] sm:$0xff]
          %v1705 = vld [vmem:[%s5 + $0x378] sm:$0xff]
          %v1706 = vld [vmem:[%s5 + $0x380] sm:$0xff]
          %v1707 = vld [vmem:[%s5 + $0x388] sm:$0xff]
          %v1708 = vld [vmem:[%s5 + $0x390] sm:$0xff]
          %v1709 = vld [vmem:[%s5 + $0x398] sm:$0xff]
          %v1710 = vld [vmem:[%s5 + $0x3a0] sm:$0xff]
          %v1711 = vld [vmem:[%s5 + $0x3a8] sm:$0xff]
          %v1712 = vld [vmem:[%s5 + $0x3b0] sm:$0xff]
          %v1713 = vld [vmem:[%s5 + $0x3b8] sm:$0xff]
          %v1714 = vld [vmem:[%s5 + $0x3c0] sm:$0xff]
          %v1715 = vld [vmem:[%s5 + $0x3c8] sm:$0xff]
          %v1716 = vld [vmem:[%s5 + $0x3d0] sm:$0xff]
          %v1717 = vld [vmem:[%s5 + $0x3d8] sm:$0xff]
          %v1718 = vld [vmem:[%s5 + $0x3e0] sm:$0xff]
          %v1719 = vld [vmem:[%s5 + $0x3e8] sm:$0xff]
          %v1720 = vld [vmem:[%s5 + $0x3f0] sm:$0xff]
          %v1721 = vld [vmem:[%s5 + $0x3f8] sm:$0xff]
          %v1722 = vld [vmem:[%s5 + $0x400] sm:$0xff]
          %v1723 = vld [vmem:[%s5 + $0x408] sm:$0xff]
          %v1724 = vld [vmem:[%s5 + $0x410] sm:$0xff]
          %v1725 = vld [vmem:[%s5 + $0x418] sm:$0xff]
          %v1726 = vld [vmem:[%s5 + $0x420] sm:$0xff]
          %v1727 = vld [vmem:[%s5 + $0x428] sm:$0xff]
          %v1728 = vld [vmem:[%s5 + $0x430] sm:$0xff]
          %v1729 = vld [vmem:[%s5 + $0x438] sm:$0xff]
          %v1730 = vld [vmem:[%s5 + $0x440] sm:$0xff]
          %v1731 = vld [vmem:[%s5 + $0x448] sm:$0xff]
          %v1732 = vld [vmem:[%s5 + $0x450] sm:$0xff]
          %v1733 = vld [vmem:[%s5 + $0x458] sm:$0xff]
          %v1734 = vld [vmem:[%s5 + $0x460] sm:$0xff]
          %v1735 = vld [vmem:[%s5 + $0x468] sm:$0xff]
          %v1736 = vld [vmem:[%s5 + $0x470] sm:$0xff]
          %v1737 = vld [vmem:[%s5 + $0x478] sm:$0xff]
          %v1738 = vld [vmem:[%s5 + $0x480] sm:$0xff]
          %v1739 = vld [vmem:[%s5 + $0x488] sm:$0xff]
          %v1740 = vld [vmem:[%s5 + $0x490] sm:$0xff]
          %v1741 = vld [vmem:[%s5 + $0x498] sm:$0xff]
          %v1742 = vld [vmem:[%s5 + $0x4a0] sm:$0xff]
          %v1743 = vld [vmem:[%s5 + $0x4a8] sm:$0xff]
          %v1744 = vld [vmem:[%s5 + $0x4b0] sm:$0xff]
          %v1745 = vld [vmem:[%s5 + $0x4b8] sm:$0xff]
          %v1746 = vld [vmem:[%s5 + $0x4c0] sm:$0xff]
          %v1747 = vld [vmem:[%s5 + $0x4c8] sm:$0xff]
          %v1748 = vld [vmem:[%s5 + $0x4d0] sm:$0xff]
          %v1749 = vld [vmem:[%s5 + $0x4d8] sm:$0xff]
          %v1750 = vld [vmem:[%s5 + $0x4e0] sm:$0xff]
          %v1751 = vld [vmem:[%s5 + $0x4e8] sm:$0xff]
          %v1752 = vld [vmem:[%s5 + $0x4f0] sm:$0xff]
          %v1753 = vld [vmem:[%s5 + $0x4f8] sm:$0xff]
          %v1754 = vld [vmem:[%s5 + $0x500] sm:$0xff]
          %v1755 = vld [vmem:[%s5 + $0x508] sm:$0xff]
          %v1756 = vld [vmem:[%s5 + $0x510] sm:$0xff]
          %v1757 = vld [vmem:[%s5 + $0x518] sm:$0xff]
          %v1758 = vld [vmem:[%s5 + $0x520] sm:$0xff]
          %v1759 = vld [vmem:[%s5 + $0x528] sm:$0xff]
          %v1760 = vld [vmem:[%s5 + $0x530] sm:$0xff]
          %v1761 = vld [vmem:[%s5 + $0x538] sm:$0xff]
          %v1762 = vld [vmem:[%s5 + $0x540] sm:$0xff]
          %v1763 = vld [vmem:[%s5 + $0x548] sm:$0xff]
          %v1764 = vld [vmem:[%s5 + $0x550] sm:$0xff]
          %v1765 = vld [vmem:[%s5 + $0x558] sm:$0xff]
          %v1766 = vld [vmem:[%s5 + $0x560] sm:$0xff]
          %v1767 = vld [vmem:[%s5 + $0x568] sm:$0xff]
          %v1768 = vld [vmem:[%s5 + $0x570] sm:$0xff]
          %v1769 = vld [vmem:[%s5 + $0x578] sm:$0xff]
          %v1770 = vld [vmem:[%s5 + $0x580] sm:$0xff]
          %v1771 = vld [vmem:[%s5 + $0x588] sm:$0xff]
          %v1772 = vld [vmem:[%s5 + $0x590] sm:$0xff]
          %v1773 = vld [vmem:[%s5 + $0x598] sm:$0xff]
          %v1774 = vld [vmem:[%s5 + $0x5a0] sm:$0xff]
          %v1775 = vld [vmem:[%s5 + $0x5a8] sm:$0xff]
          %v1776 = vld [vmem:[%s5 + $0x5b0] sm:$0xff]
          %v1777 = vld [vmem:[%s5 + $0x5b8] sm:$0xff]
          %v1778 = vld [vmem:[%s5 + $0x5c0] sm:$0xff]
          %v1779 = vld [vmem:[%s5 + $0x5c8] sm:$0xff]
          %v1780 = vld [vmem:[%s5 + $0x5d0] sm:$0xff]
          %v1781 = vld [vmem:[%s5 + $0x5d8] sm:$0xff]
          %v1782 = vld [vmem:[%s5 + $0x5e0] sm:$0xff]
          %v1783 = vld [vmem:[%s5 + $0x5e8] sm:$0xff]
          %v1784 = vld [vmem:[%s5 + $0x5f0] sm:$0xff]
          %v1785 = vld [vmem:[%s5 + $0x5f8] sm:$0xff]
          %v1786 = vld [vmem:[%s5 + $0x600] sm:$0xff]
          %v1787 = vld [vmem:[%s5 + $0x608] sm:$0xff]
          %v1788 = vld [vmem:[%s5 + $0x610] sm:$0xff]
          %v1789 = vld [vmem:[%s5 + $0x618] sm:$0xff]
          %v1790 = vld [vmem:[%s5 + $0x620] sm:$0xff]
          %v1791 = vld [vmem:[%s5 + $0x628] sm:$0xff]
          %v1792 = vld [vmem:[%s5 + $0x630] sm:$0xff]
          %v1793 = vld [vmem:[%s5 + $0x638] sm:$0xff]
          %v1794 = vld [vmem:[%s5 + $0x640] sm:$0xff]
          %v1795 = vld [vmem:[%s5 + $0x648] sm:$0xff]
          %v1796 = vld [vmem:[%s5 + $0x650] sm:$0xff]
          %v1797 = vld [vmem:[%s5 + $0x658] sm:$0xff]
          %v1798 = vld [vmem:[%s5 + $0x660] sm:$0xff]
          %v1799 = vld [vmem:[%s5 + $0x668] sm:$0xff]
          %v1800 = vld [vmem:[%s5 + $0x670] sm:$0xff]
          %v1801 = vld [vmem:[%s5 + $0x678] sm:$0xff]
          %v1802 = vld [vmem:[%s5 + $0x680] sm:$0xff]
          %v1803 = vld [vmem:[%s5 + $0x688] sm:$0xff]
          %v1804 = vld [vmem:[%s5 + $0x690] sm:$0xff]
          %v1805 = vld [vmem:[%s5 + $0x698] sm:$0xff]
          %v1806 = vld [vmem:[%s5 + $0x6a0] sm:$0xff]
          %v1807 = vld [vmem:[%s5 + $0x6a8] sm:$0xff]
          %v1808 = vld [vmem:[%s5 + $0x6b0] sm:$0xff]
          %v1809 = vld [vmem:[%s5 + $0x6b8] sm:$0xff]
          %v1810 = vld [vmem:[%s5 + $0x6c0] sm:$0xff]
          %v1811 = vld [vmem:[%s5 + $0x6c8] sm:$0xff]
          %v1812 = vld [vmem:[%s5 + $0x6d0] sm:$0xff]
          %v1813 = vld [vmem:[%s5 + $0x6d8] sm:$0xff]
          %v1814 = vld [vmem:[%s5 + $0x6e0] sm:$0xff]
          %v1815 = vld [vmem:[%s5 + $0x6e8] sm:$0xff]
          %v1816 = vld [vmem:[%s5 + $0x6f0] sm:$0xff]
          %v1817 = vld [vmem:[%s5 + $0x6f8] sm:$0xff]
          %v1818 = vld [vmem:[%s5 + $0x700] sm:$0xff]
          %v1819 = vld [vmem:[%s5 + $0x708] sm:$0xff]
          %v1820 = vld [vmem:[%s5 + $0x710] sm:$0xff]
          %v1821 = vld [vmem:[%s5 + $0x718] sm:$0xff]
          %v1822 = vld [vmem:[%s5 + $0x720] sm:$0xff]
          %v1823 = vld [vmem:[%s5 + $0x728] sm:$0xff]
          %v1824 = vld [vmem:[%s5 + $0x730] sm:$0xff]
          %v1825 = vld [vmem:[%s5 + $0x738] sm:$0xff]
          %v1826 = vld [vmem:[%s5 + $0x740] sm:$0xff]
          %v1827 = vld [vmem:[%s5 + $0x748] sm:$0xff]
          %v1828 = vld [vmem:[%s5 + $0x750] sm:$0xff]
          %v1829 = vld [vmem:[%s5 + $0x758] sm:$0xff]
          %v1830 = vld [vmem:[%s5 + $0x760] sm:$0xff]
          %v1831 = vld [vmem:[%s5 + $0x768] sm:$0xff]
          %v1832 = vld [vmem:[%s5 + $0x770] sm:$0xff]
          %v1833 = vld [vmem:[%s5 + $0x778] sm:$0xff]
          %v1834 = vld [vmem:[%s5 + $0x780] sm:$0xff]
          %v1835 = vld [vmem:[%s5 + $0x788] sm:$0xff]
          %v1836 = vld [vmem:[%s5 + $0x790] sm:$0xff]
          %v1837 = vld [vmem:[%s5 + $0x798] sm:$0xff]
          %v1838 = vld [vmem:[%s5 + $0x7a0] sm:$0xff]
          %v1839 = vld [vmem:[%s5 + $0x7a8] sm:$0xff]
          %v1840 = vld [vmem:[%s5 + $0x7b0] sm:$0xff]
          %v1841 = vld [vmem:[%s5 + $0x7b8] sm:$0xff]
          %v1842 = vld [vmem:[%s5 + $0x7c0] sm:$0xff]
          %v1843 = vld [vmem:[%s5 + $0x7c8] sm:$0xff]
          %v1844 = vld [vmem:[%s5 + $0x7d0] sm:$0xff]
          %v1845 = vld [vmem:[%s5 + $0x7d8] sm:$0xff]
          %v1846 = vld [vmem:[%s5 + $0x7e0] sm:$0xff]
          %v1847 = vld [vmem:[%s5 + $0x7e8] sm:$0xff]
          %v1848 = vld [vmem:[%s5 + $0x7f0] sm:$0xff]
          %v1849 = vld [vmem:[%s5 + $0x7f8] sm:$0xff]
          %v1850 = vld [vmem:[%s6] sm:$0xff]
          %v1852 = vlaneseq
          %v1853 = vshrl.u32 %v1852, 7
          %v1854 = vsub.s32 0, %v1853
          %v1855 = vrot.slane %v1850, %v1854
          %v1856 = vlaneseq
          %v1857 = vshrl.u32 %v1856, 7
          %v1858 = vsub.s32 1, %v1857
          %v1859 = vrot.slane %v1850, %v1858
          %v1860 = vlaneseq
          %v1861 = vshrl.u32 %v1860, 7
          %v1862 = vsub.s32 2, %v1861
          %v1863 = vrot.slane %v1850, %v1862
          %v1864 = vlaneseq
          %v1865 = vshrl.u32 %v1864, 7
          %v1866 = vsub.s32 3, %v1865
          %v1867 = vrot.slane %v1850, %v1866
          %v1868 = vlaneseq
          %v1869 = vshrl.u32 %v1868, 7
          %v1870 = vsub.s32 4, %v1869
          %v1871 = vrot.slane %v1850, %v1870
          %v1872 = vlaneseq
          %v1873 = vshrl.u32 %v1872, 7
          %v1874 = vsub.s32 5, %v1873
          %v1875 = vrot.slane %v1850, %v1874
          %v1876 = vlaneseq
          %v1877 = vshrl.u32 %v1876, 7
          %v1878 = vsub.s32 6, %v1877
          %v1879 = vrot.slane %v1850, %v1878
          %v1880 = vlaneseq
          %v1881 = vshrl.u32 %v1880, 7
          %v1882 = vsub.s32 7, %v1881
          %v1883 = vrot.slane %v1850, %v1882
          %v2148 = vunpack.c.l.b16 %v1594
          %v2149 = vunpack.c.h.b16 %v1594
          %v2150 = vunpack.c.l.b16 %v1595
          %v2151 = vunpack.c.h.b16 %v1595
          %v2152 = vunpack.c.l.b16 %v1596
          %v2153 = vunpack.c.h.b16 %v1596
          %v2154 = vunpack.c.l.b16 %v1597
          %v2155 = vunpack.c.h.b16 %v1597
          %v2156 = vunpack.c.l.b16 %v1598
          %v2157 = vunpack.c.h.b16 %v1598
          %v2158 = vunpack.c.l.b16 %v1599
          %v2159 = vunpack.c.h.b16 %v1599
          %v2160 = vunpack.c.l.b16 %v1600
          %v2161 = vunpack.c.h.b16 %v1600
          %v2162 = vunpack.c.l.b16 %v1601
          %v2163 = vunpack.c.h.b16 %v1601
          %v2164 = vunpack.c.l.b16 %v1602
          %v2165 = vunpack.c.h.b16 %v1602
          %v2166 = vunpack.c.l.b16 %v1603
          %v2167 = vunpack.c.h.b16 %v1603
          %v2168 = vunpack.c.l.b16 %v1604
          %v2169 = vunpack.c.h.b16 %v1604
          %v2170 = vunpack.c.l.b16 %v1605
          %v2171 = vunpack.c.h.b16 %v1605
          %v2172 = vunpack.c.l.b16 %v1606
          %v2173 = vunpack.c.h.b16 %v1606
          %v2174 = vunpack.c.l.b16 %v1607
          %v2175 = vunpack.c.h.b16 %v1607
          %v2176 = vunpack.c.l.b16 %v1608
          %v2177 = vunpack.c.h.b16 %v1608
          %v2178 = vunpack.c.l.b16 %v1609
          %v2179 = vunpack.c.h.b16 %v1609
          %v2180 = vunpack.c.l.b16 %v1610
          %v2181 = vunpack.c.h.b16 %v1610
          %v2182 = vunpack.c.l.b16 %v1611
          %v2183 = vunpack.c.h.b16 %v1611
          %v2184 = vunpack.c.l.b16 %v1612
          %v2185 = vunpack.c.h.b16 %v1612
          %v2186 = vunpack.c.l.b16 %v1613
          %v2187 = vunpack.c.h.b16 %v1613
          %v2188 = vunpack.c.l.b16 %v1614
          %v2189 = vunpack.c.h.b16 %v1614
          %v2190 = vunpack.c.l.b16 %v1615
          %v2191 = vunpack.c.h.b16 %v1615
          %v2192 = vunpack.c.l.b16 %v1616
          %v2193 = vunpack.c.h.b16 %v1616
          %v2194 = vunpack.c.l.b16 %v1617
          %v2195 = vunpack.c.h.b16 %v1617
          %v2196 = vunpack.c.l.b16 %v1618
          %v2197 = vunpack.c.h.b16 %v1618
          %v2198 = vunpack.c.l.b16 %v1619
          %v2199 = vunpack.c.h.b16 %v1619
          %v2200 = vunpack.c.l.b16 %v1620
          %v2201 = vunpack.c.h.b16 %v1620
          %v2202 = vunpack.c.l.b16 %v1621
          %v2203 = vunpack.c.h.b16 %v1621
          %v2204 = vunpack.c.l.b16 %v1622
          %v2205 = vunpack.c.h.b16 %v1622
          %v2206 = vunpack.c.l.b16 %v1623
          %v2207 = vunpack.c.h.b16 %v1623
          %v2208 = vunpack.c.l.b16 %v1624
          %v2209 = vunpack.c.h.b16 %v1624
          %v2210 = vunpack.c.l.b16 %v1625
          %v2211 = vunpack.c.h.b16 %v1625
          %v2212 = vunpack.c.l.b16 %v1626
          %v2213 = vunpack.c.h.b16 %v1626
          %v2214 = vunpack.c.l.b16 %v1627
          %v2215 = vunpack.c.h.b16 %v1627
          %v2216 = vunpack.c.l.b16 %v1628
          %v2217 = vunpack.c.h.b16 %v1628
          %v2218 = vunpack.c.l.b16 %v1629
          %v2219 = vunpack.c.h.b16 %v1629
          %v2220 = vunpack.c.l.b16 %v1630
          %v2221 = vunpack.c.h.b16 %v1630
          %v2222 = vunpack.c.l.b16 %v1631
          %v2223 = vunpack.c.h.b16 %v1631
          %v2224 = vunpack.c.l.b16 %v1632
          %v2225 = vunpack.c.h.b16 %v1632
          %v2226 = vunpack.c.l.b16 %v1633
          %v2227 = vunpack.c.h.b16 %v1633
          %v2228 = vunpack.c.l.b16 %v1634
          %v2229 = vunpack.c.h.b16 %v1634
          %v2230 = vunpack.c.l.b16 %v1635
          %v2231 = vunpack.c.h.b16 %v1635
          %v2232 = vunpack.c.l.b16 %v1636
          %v2233 = vunpack.c.h.b16 %v1636
          %v2234 = vunpack.c.l.b16 %v1637
          %v2235 = vunpack.c.h.b16 %v1637
          %v2236 = vunpack.c.l.b16 %v1638
          %v2237 = vunpack.c.h.b16 %v1638
          %v2238 = vunpack.c.l.b16 %v1639
          %v2239 = vunpack.c.h.b16 %v1639
          %v2240 = vunpack.c.l.b16 %v1640
          %v2241 = vunpack.c.h.b16 %v1640
          %v2242 = vunpack.c.l.b16 %v1641
          %v2243 = vunpack.c.h.b16 %v1641
          %v2244 = vunpack.c.l.b16 %v1642
          %v2245 = vunpack.c.h.b16 %v1642
          %v2246 = vunpack.c.l.b16 %v1643
          %v2247 = vunpack.c.h.b16 %v1643
          %v2248 = vunpack.c.l.b16 %v1644
          %v2249 = vunpack.c.h.b16 %v1644
          %v2250 = vunpack.c.l.b16 %v1645
          %v2251 = vunpack.c.h.b16 %v1645
          %v2252 = vunpack.c.l.b16 %v1646
          %v2253 = vunpack.c.h.b16 %v1646
          %v2254 = vunpack.c.l.b16 %v1647
          %v2255 = vunpack.c.h.b16 %v1647
          %v2256 = vunpack.c.l.b16 %v1648
          %v2257 = vunpack.c.h.b16 %v1648
          %v2258 = vunpack.c.l.b16 %v1649
          %v2259 = vunpack.c.h.b16 %v1649
          %v2260 = vunpack.c.l.b16 %v1650
          %v2261 = vunpack.c.h.b16 %v1650
          %v2262 = vunpack.c.l.b16 %v1651
          %v2263 = vunpack.c.h.b16 %v1651
          %v2264 = vunpack.c.l.b16 %v1652
          %v2265 = vunpack.c.h.b16 %v1652
          %v2266 = vunpack.c.l.b16 %v1653
          %v2267 = vunpack.c.h.b16 %v1653
          %v2268 = vunpack.c.l.b16 %v1654
          %v2269 = vunpack.c.h.b16 %v1654
          %v2270 = vunpack.c.l.b16 %v1655
          %v2271 = vunpack.c.h.b16 %v1655
          %v2272 = vunpack.c.l.b16 %v1656
          %v2273 = vunpack.c.h.b16 %v1656
          %v2274 = vunpack.c.l.b16 %v1657
          %v2275 = vunpack.c.h.b16 %v1657
          %v2276 = vunpack.c.l.b16 %v1658
          %v2277 = vunpack.c.h.b16 %v1658
          %v2278 = vunpack.c.l.b16 %v1659
          %v2279 = vunpack.c.h.b16 %v1659
          %v2280 = vunpack.c.l.b16 %v1660
          %v2281 = vunpack.c.h.b16 %v1660
          %v2282 = vunpack.c.l.b16 %v1661
          %v2283 = vunpack.c.h.b16 %v1661
          %v2284 = vunpack.c.l.b16 %v1662
          %v2285 = vunpack.c.h.b16 %v1662
          %v2286 = vunpack.c.l.b16 %v1663
          %v2287 = vunpack.c.h.b16 %v1663
          %v2288 = vunpack.c.l.b16 %v1664
          %v2289 = vunpack.c.h.b16 %v1664
          %v2290 = vunpack.c.l.b16 %v1665
          %v2291 = vunpack.c.h.b16 %v1665
          %v2292 = vunpack.c.l.b16 %v1666
          %v2293 = vunpack.c.h.b16 %v1666
          %v2294 = vunpack.c.l.b16 %v1667
          %v2295 = vunpack.c.h.b16 %v1667
          %v2296 = vunpack.c.l.b16 %v1668
          %v2297 = vunpack.c.h.b16 %v1668
          %v2298 = vunpack.c.l.b16 %v1669
          %v2299 = vunpack.c.h.b16 %v1669
          %v2300 = vunpack.c.l.b16 %v1670
          %v2301 = vunpack.c.h.b16 %v1670
          %v2302 = vunpack.c.l.b16 %v1671
          %v2303 = vunpack.c.h.b16 %v1671
          %v2304 = vunpack.c.l.b16 %v1672
          %v2305 = vunpack.c.h.b16 %v1672
          %v2306 = vunpack.c.l.b16 %v1673
          %v2307 = vunpack.c.h.b16 %v1673
          %v2308 = vunpack.c.l.b16 %v1674
          %v2309 = vunpack.c.h.b16 %v1674
          %v2310 = vunpack.c.l.b16 %v1675
          %v2311 = vunpack.c.h.b16 %v1675
          %v2312 = vunpack.c.l.b16 %v1676
          %v2313 = vunpack.c.h.b16 %v1676
          %v2314 = vunpack.c.l.b16 %v1677
          %v2315 = vunpack.c.h.b16 %v1677
          %v2316 = vunpack.c.l.b16 %v1678
          %v2317 = vunpack.c.h.b16 %v1678
          %v2318 = vunpack.c.l.b16 %v1679
          %v2319 = vunpack.c.h.b16 %v1679
          %v2320 = vunpack.c.l.b16 %v1680
          %v2321 = vunpack.c.h.b16 %v1680
          %v2322 = vunpack.c.l.b16 %v1681
          %v2323 = vunpack.c.h.b16 %v1681
          %v2324 = vunpack.c.l.b16 %v1682
          %v2325 = vunpack.c.h.b16 %v1682
          %v2326 = vunpack.c.l.b16 %v1683
          %v2327 = vunpack.c.h.b16 %v1683
          %v2328 = vunpack.c.l.b16 %v1684
          %v2329 = vunpack.c.h.b16 %v1684
          %v2330 = vunpack.c.l.b16 %v1685
          %v2331 = vunpack.c.h.b16 %v1685
          %v2332 = vunpack.c.l.b16 %v1686
          %v2333 = vunpack.c.h.b16 %v1686
          %v2334 = vunpack.c.l.b16 %v1687
          %v2335 = vunpack.c.h.b16 %v1687
          %v2336 = vunpack.c.l.b16 %v1688
          %v2337 = vunpack.c.h.b16 %v1688
          %v2338 = vunpack.c.l.b16 %v1689
          %v2339 = vunpack.c.h.b16 %v1689
          %v2340 = vunpack.c.l.b16 %v1690
          %v2341 = vunpack.c.h.b16 %v1690
          %v2342 = vunpack.c.l.b16 %v1691
          %v2343 = vunpack.c.h.b16 %v1691
          %v2344 = vunpack.c.l.b16 %v1692
          %v2345 = vunpack.c.h.b16 %v1692
          %v2346 = vunpack.c.l.b16 %v1693
          %v2347 = vunpack.c.h.b16 %v1693
          %v2348 = vunpack.c.l.b16 %v1694
          %v2349 = vunpack.c.h.b16 %v1694
          %v2350 = vunpack.c.l.b16 %v1695
          %v2351 = vunpack.c.h.b16 %v1695
          %v2352 = vunpack.c.l.b16 %v1696
          %v2353 = vunpack.c.h.b16 %v1696
          %v2354 = vunpack.c.l.b16 %v1697
          %v2355 = vunpack.c.h.b16 %v1697
          %v2356 = vunpack.c.l.b16 %v1698
          %v2357 = vunpack.c.h.b16 %v1698
          %v2358 = vunpack.c.l.b16 %v1699
          %v2359 = vunpack.c.h.b16 %v1699
          %v2360 = vunpack.c.l.b16 %v1700
          %v2361 = vunpack.c.h.b16 %v1700
          %v2362 = vunpack.c.l.b16 %v1701
          %v2363 = vunpack.c.h.b16 %v1701
          %v2364 = vunpack.c.l.b16 %v1702
          %v2365 = vunpack.c.h.b16 %v1702
          %v2366 = vunpack.c.l.b16 %v1703
          %v2367 = vunpack.c.h.b16 %v1703
          %v2368 = vunpack.c.l.b16 %v1704
          %v2369 = vunpack.c.h.b16 %v1704
          %v2370 = vunpack.c.l.b16 %v1705
          %v2371 = vunpack.c.h.b16 %v1705
          %v2372 = vunpack.c.l.b16 %v1706
          %v2373 = vunpack.c.h.b16 %v1706
          %v2374 = vunpack.c.l.b16 %v1707
          %v2375 = vunpack.c.h.b16 %v1707
          %v2376 = vunpack.c.l.b16 %v1708
          %v2377 = vunpack.c.h.b16 %v1708
          %v2378 = vunpack.c.l.b16 %v1709
          %v2379 = vunpack.c.h.b16 %v1709
          %v2380 = vunpack.c.l.b16 %v1710
          %v2381 = vunpack.c.h.b16 %v1710
          %v2382 = vunpack.c.l.b16 %v1711
          %v2383 = vunpack.c.h.b16 %v1711
          %v2384 = vunpack.c.l.b16 %v1712
          %v2385 = vunpack.c.h.b16 %v1712
          %v2386 = vunpack.c.l.b16 %v1713
          %v2387 = vunpack.c.h.b16 %v1713
          %v2388 = vunpack.c.l.b16 %v1714
          %v2389 = vunpack.c.h.b16 %v1714
          %v2390 = vunpack.c.l.b16 %v1715
          %v2391 = vunpack.c.h.b16 %v1715
          %v2392 = vunpack.c.l.b16 %v1716
          %v2393 = vunpack.c.h.b16 %v1716
          %v2394 = vunpack.c.l.b16 %v1717
          %v2395 = vunpack.c.h.b16 %v1717
          %v2396 = vunpack.c.l.b16 %v1718
          %v2397 = vunpack.c.h.b16 %v1718
          %v2398 = vunpack.c.l.b16 %v1719
          %v2399 = vunpack.c.h.b16 %v1719
          %v2400 = vunpack.c.l.b16 %v1720
          %v2401 = vunpack.c.h.b16 %v1720
          %v2402 = vunpack.c.l.b16 %v1721
          %v2403 = vunpack.c.h.b16 %v1721
          %v2404 = vunpack.c.l.b16 %v1722
          %v2405 = vunpack.c.h.b16 %v1722
          %v2406 = vunpack.c.l.b16 %v1723
          %v2407 = vunpack.c.h.b16 %v1723
          %v2408 = vunpack.c.l.b16 %v1724
          %v2409 = vunpack.c.h.b16 %v1724
          %v2410 = vunpack.c.l.b16 %v1725
          %v2411 = vunpack.c.h.b16 %v1725
          %v2412 = vunpack.c.l.b16 %v1726
          %v2413 = vunpack.c.h.b16 %v1726
          %v2414 = vunpack.c.l.b16 %v1727
          %v2415 = vunpack.c.h.b16 %v1727
          %v2416 = vunpack.c.l.b16 %v1728
          %v2417 = vunpack.c.h.b16 %v1728
          %v2418 = vunpack.c.l.b16 %v1729
          %v2419 = vunpack.c.h.b16 %v1729
          %v2420 = vunpack.c.l.b16 %v1730
          %v2421 = vunpack.c.h.b16 %v1730
          %v2422 = vunpack.c.l.b16 %v1731
          %v2423 = vunpack.c.h.b16 %v1731
          %v2424 = vunpack.c.l.b16 %v1732
          %v2425 = vunpack.c.h.b16 %v1732
          %v2426 = vunpack.c.l.b16 %v1733
          %v2427 = vunpack.c.h.b16 %v1733
          %v2428 = vunpack.c.l.b16 %v1734
          %v2429 = vunpack.c.h.b16 %v1734
          %v2430 = vunpack.c.l.b16 %v1735
          %v2431 = vunpack.c.h.b16 %v1735
          %v2432 = vunpack.c.l.b16 %v1736
          %v2433 = vunpack.c.h.b16 %v1736
          %v2434 = vunpack.c.l.b16 %v1737
          %v2435 = vunpack.c.h.b16 %v1737
          %v2436 = vunpack.c.l.b16 %v1738
          %v2437 = vunpack.c.h.b16 %v1738
          %v2438 = vunpack.c.l.b16 %v1739
          %v2439 = vunpack.c.h.b16 %v1739
          %v2440 = vunpack.c.l.b16 %v1740
          %v2441 = vunpack.c.h.b16 %v1740
          %v2442 = vunpack.c.l.b16 %v1741
          %v2443 = vunpack.c.h.b16 %v1741
          %v2444 = vunpack.c.l.b16 %v1742
          %v2445 = vunpack.c.h.b16 %v1742
          %v2446 = vunpack.c.l.b16 %v1743
          %v2447 = vunpack.c.h.b16 %v1743
          %v2448 = vunpack.c.l.b16 %v1744
          %v2449 = vunpack.c.h.b16 %v1744
          %v2450 = vunpack.c.l.b16 %v1745
          %v2451 = vunpack.c.h.b16 %v1745
          %v2452 = vunpack.c.l.b16 %v1746
          %v2453 = vunpack.c.h.b16 %v1746
          %v2454 = vunpack.c.l.b16 %v1747
          %v2455 = vunpack.c.h.b16 %v1747
          %v2456 = vunpack.c.l.b16 %v1748
          %v2457 = vunpack.c.h.b16 %v1748
          %v2458 = vunpack.c.l.b16 %v1749
          %v2459 = vunpack.c.h.b16 %v1749
          %v2460 = vunpack.c.l.b16 %v1750
          %v2461 = vunpack.c.h.b16 %v1750
          %v2462 = vunpack.c.l.b16 %v1751
          %v2463 = vunpack.c.h.b16 %v1751
          %v2464 = vunpack.c.l.b16 %v1752
          %v2465 = vunpack.c.h.b16 %v1752
          %v2466 = vunpack.c.l.b16 %v1753
          %v2467 = vunpack.c.h.b16 %v1753
          %v2468 = vunpack.c.l.b16 %v1754
          %v2469 = vunpack.c.h.b16 %v1754
          %v2470 = vunpack.c.l.b16 %v1755
          %v2471 = vunpack.c.h.b16 %v1755
          %v2472 = vunpack.c.l.b16 %v1756
          %v2473 = vunpack.c.h.b16 %v1756
          %v2474 = vunpack.c.l.b16 %v1757
          %v2475 = vunpack.c.h.b16 %v1757
          %v2476 = vunpack.c.l.b16 %v1758
          %v2477 = vunpack.c.h.b16 %v1758
          %v2478 = vunpack.c.l.b16 %v1759
          %v2479 = vunpack.c.h.b16 %v1759
          %v2480 = vunpack.c.l.b16 %v1760
          %v2481 = vunpack.c.h.b16 %v1760
          %v2482 = vunpack.c.l.b16 %v1761
          %v2483 = vunpack.c.h.b16 %v1761
          %v2484 = vunpack.c.l.b16 %v1762
          %v2485 = vunpack.c.h.b16 %v1762
          %v2486 = vunpack.c.l.b16 %v1763
          %v2487 = vunpack.c.h.b16 %v1763
          %v2488 = vunpack.c.l.b16 %v1764
          %v2489 = vunpack.c.h.b16 %v1764
          %v2490 = vunpack.c.l.b16 %v1765
          %v2491 = vunpack.c.h.b16 %v1765
          %v2492 = vunpack.c.l.b16 %v1766
          %v2493 = vunpack.c.h.b16 %v1766
          %v2494 = vunpack.c.l.b16 %v1767
          %v2495 = vunpack.c.h.b16 %v1767
          %v2496 = vunpack.c.l.b16 %v1768
          %v2497 = vunpack.c.h.b16 %v1768
          %v2498 = vunpack.c.l.b16 %v1769
          %v2499 = vunpack.c.h.b16 %v1769
          %v2500 = vunpack.c.l.b16 %v1770
          %v2501 = vunpack.c.h.b16 %v1770
          %v2502 = vunpack.c.l.b16 %v1771
          %v2503 = vunpack.c.h.b16 %v1771
          %v2504 = vunpack.c.l.b16 %v1772
          %v2505 = vunpack.c.h.b16 %v1772
          %v2506 = vunpack.c.l.b16 %v1773
          %v2507 = vunpack.c.h.b16 %v1773
          %v2508 = vunpack.c.l.b16 %v1774
          %v2509 = vunpack.c.h.b16 %v1774
          %v2510 = vunpack.c.l.b16 %v1775
          %v2511 = vunpack.c.h.b16 %v1775
          %v2512 = vunpack.c.l.b16 %v1776
          %v2513 = vunpack.c.h.b16 %v1776
          %v2514 = vunpack.c.l.b16 %v1777
          %v2515 = vunpack.c.h.b16 %v1777
          %v2516 = vunpack.c.l.b16 %v1778
          %v2517 = vunpack.c.h.b16 %v1778
          %v2518 = vunpack.c.l.b16 %v1779
          %v2519 = vunpack.c.h.b16 %v1779
          %v2520 = vunpack.c.l.b16 %v1780
          %v2521 = vunpack.c.h.b16 %v1780
          %v2522 = vunpack.c.l.b16 %v1781
          %v2523 = vunpack.c.h.b16 %v1781
          %v2524 = vunpack.c.l.b16 %v1782
          %v2525 = vunpack.c.h.b16 %v1782
          %v2526 = vunpack.c.l.b16 %v1783
          %v2527 = vunpack.c.h.b16 %v1783
          %v2528 = vunpack.c.l.b16 %v1784
          %v2529 = vunpack.c.h.b16 %v1784
          %v2530 = vunpack.c.l.b16 %v1785
          %v2531 = vunpack.c.h.b16 %v1785
          %v2532 = vunpack.c.l.b16 %v1786
          %v2533 = vunpack.c.h.b16 %v1786
          %v2534 = vunpack.c.l.b16 %v1787
          %v2535 = vunpack.c.h.b16 %v1787
          %v2536 = vunpack.c.l.b16 %v1788
          %v2537 = vunpack.c.h.b16 %v1788
          %v2538 = vunpack.c.l.b16 %v1789
          %v2539 = vunpack.c.h.b16 %v1789
          %v2540 = vunpack.c.l.b16 %v1790
          %v2541 = vunpack.c.h.b16 %v1790
          %v2542 = vunpack.c.l.b16 %v1791
          %v2543 = vunpack.c.h.b16 %v1791
          %v2544 = vunpack.c.l.b16 %v1792
          %v2545 = vunpack.c.h.b16 %v1792
          %v2546 = vunpack.c.l.b16 %v1793
          %v2547 = vunpack.c.h.b16 %v1793
          %v2548 = vunpack.c.l.b16 %v1794
          %v2549 = vunpack.c.h.b16 %v1794
          %v2550 = vunpack.c.l.b16 %v1795
          %v2551 = vunpack.c.h.b16 %v1795
          %v2552 = vunpack.c.l.b16 %v1796
          %v2553 = vunpack.c.h.b16 %v1796
          %v2554 = vunpack.c.l.b16 %v1797
          %v2555 = vunpack.c.h.b16 %v1797
          %v2556 = vunpack.c.l.b16 %v1798
          %v2557 = vunpack.c.h.b16 %v1798
          %v2558 = vunpack.c.l.b16 %v1799
          %v2559 = vunpack.c.h.b16 %v1799
          %v2560 = vunpack.c.l.b16 %v1800
          %v2561 = vunpack.c.h.b16 %v1800
          %v2562 = vunpack.c.l.b16 %v1801
          %v2563 = vunpack.c.h.b16 %v1801
          %v2564 = vunpack.c.l.b16 %v1802
          %v2565 = vunpack.c.h.b16 %v1802
          %v2566 = vunpack.c.l.b16 %v1803
          %v2567 = vunpack.c.h.b16 %v1803
          %v2568 = vunpack.c.l.b16 %v1804
          %v2569 = vunpack.c.h.b16 %v1804
          %v2570 = vunpack.c.l.b16 %v1805
          %v2571 = vunpack.c.h.b16 %v1805
          %v2572 = vunpack.c.l.b16 %v1806
          %v2573 = vunpack.c.h.b16 %v1806
          %v2574 = vunpack.c.l.b16 %v1807
          %v2575 = vunpack.c.h.b16 %v1807
          %v2576 = vunpack.c.l.b16 %v1808
          %v2577 = vunpack.c.h.b16 %v1808
          %v2578 = vunpack.c.l.b16 %v1809
          %v2579 = vunpack.c.h.b16 %v1809
          %v2580 = vunpack.c.l.b16 %v1810
          %v2581 = vunpack.c.h.b16 %v1810
          %v2582 = vunpack.c.l.b16 %v1811
          %v2583 = vunpack.c.h.b16 %v1811
          %v2584 = vunpack.c.l.b16 %v1812
          %v2585 = vunpack.c.h.b16 %v1812
          %v2586 = vunpack.c.l.b16 %v1813
          %v2587 = vunpack.c.h.b16 %v1813
          %v2588 = vunpack.c.l.b16 %v1814
          %v2589 = vunpack.c.h.b16 %v1814
          %v2590 = vunpack.c.l.b16 %v1815
          %v2591 = vunpack.c.h.b16 %v1815
          %v2592 = vunpack.c.l.b16 %v1816
          %v2593 = vunpack.c.h.b16 %v1816
          %v2594 = vunpack.c.l.b16 %v1817
          %v2595 = vunpack.c.h.b16 %v1817
          %v2596 = vunpack.c.l.b16 %v1818
          %v2597 = vunpack.c.h.b16 %v1818
          %v2598 = vunpack.c.l.b16 %v1819
          %v2599 = vunpack.c.h.b16 %v1819
          %v2600 = vunpack.c.l.b16 %v1820
          %v2601 = vunpack.c.h.b16 %v1820
          %v2602 = vunpack.c.l.b16 %v1821
          %v2603 = vunpack.c.h.b16 %v1821
          %v2604 = vunpack.c.l.b16 %v1822
          %v2605 = vunpack.c.h.b16 %v1822
          %v2606 = vunpack.c.l.b16 %v1823
          %v2607 = vunpack.c.h.b16 %v1823
          %v2608 = vunpack.c.l.b16 %v1824
          %v2609 = vunpack.c.h.b16 %v1824
          %v2610 = vunpack.c.l.b16 %v1825
          %v2611 = vunpack.c.h.b16 %v1825
          %v2612 = vunpack.c.l.b16 %v1826
          %v2613 = vunpack.c.h.b16 %v1826
          %v2614 = vunpack.c.l.b16 %v1827
          %v2615 = vunpack.c.h.b16 %v1827
          %v2616 = vunpack.c.l.b16 %v1828
          %v2617 = vunpack.c.h.b16 %v1828
          %v2618 = vunpack.c.l.b16 %v1829
          %v2619 = vunpack.c.h.b16 %v1829
          %v2620 = vunpack.c.l.b16 %v1830
          %v2621 = vunpack.c.h.b16 %v1830
          %v2622 = vunpack.c.l.b16 %v1831
          %v2623 = vunpack.c.h.b16 %v1831
          %v2624 = vunpack.c.l.b16 %v1832
          %v2625 = vunpack.c.h.b16 %v1832
          %v2626 = vunpack.c.l.b16 %v1833
          %v2627 = vunpack.c.h.b16 %v1833
          %v2628 = vunpack.c.l.b16 %v1834
          %v2629 = vunpack.c.h.b16 %v1834
          %v2630 = vunpack.c.l.b16 %v1835
          %v2631 = vunpack.c.h.b16 %v1835
          %v2632 = vunpack.c.l.b16 %v1836
          %v2633 = vunpack.c.h.b16 %v1836
          %v2634 = vunpack.c.l.b16 %v1837
          %v2635 = vunpack.c.h.b16 %v1837
          %v2636 = vunpack.c.l.b16 %v1838
          %v2637 = vunpack.c.h.b16 %v1838
          %v2638 = vunpack.c.l.b16 %v1839
          %v2639 = vunpack.c.h.b16 %v1839
          %v2640 = vunpack.c.l.b16 %v1840
          %v2641 = vunpack.c.h.b16 %v1840
          %v2642 = vunpack.c.l.b16 %v1841
          %v2643 = vunpack.c.h.b16 %v1841
          %v2644 = vunpack.c.l.b16 %v1842
          %v2645 = vunpack.c.h.b16 %v1842
          %v2646 = vunpack.c.l.b16 %v1843
          %v2647 = vunpack.c.h.b16 %v1843
          %v2648 = vunpack.c.l.b16 %v1844
          %v2649 = vunpack.c.h.b16 %v1844
          %v2650 = vunpack.c.l.b16 %v1845
          %v2651 = vunpack.c.h.b16 %v1845
          %v2652 = vunpack.c.l.b16 %v1846
          %v2653 = vunpack.c.h.b16 %v1846
          %v2654 = vunpack.c.l.b16 %v1847
          %v2655 = vunpack.c.h.b16 %v1847
          %v2656 = vunpack.c.l.b16 %v1848
          %v2657 = vunpack.c.h.b16 %v1848
          %v2658 = vunpack.c.l.b16 %v1849
          %v2659 = vunpack.c.h.b16 %v1849
          %v2660 = vpack.c.b16 %v2156, %v2148
          %v2661 = vpack.c.b16 %v2157, %v2149
          %v2662 = vpack.c.b16 %v2158, %v2150
          %v2663 = vpack.c.b16 %v2159, %v2151
          %v2664 = vpack.c.b16 %v2160, %v2152
          %v2665 = vpack.c.b16 %v2161, %v2153
          %v2666 = vpack.c.b16 %v2162, %v2154
          %v2667 = vpack.c.b16 %v2163, %v2155
          %v2668 = vpack.c.b16 %v2172, %v2164
          %v2669 = vpack.c.b16 %v2173, %v2165
          %v2670 = vpack.c.b16 %v2174, %v2166
          %v2671 = vpack.c.b16 %v2175, %v2167
          %v2672 = vpack.c.b16 %v2176, %v2168
          %v2673 = vpack.c.b16 %v2177, %v2169
          %v2674 = vpack.c.b16 %v2178, %v2170
          %v2675 = vpack.c.b16 %v2179, %v2171
          %v2676 = vpack.c.b16 %v2188, %v2180
          %v2677 = vpack.c.b16 %v2189, %v2181
          %v2678 = vpack.c.b16 %v2190, %v2182
          %v2679 = vpack.c.b16 %v2191, %v2183
          %v2680 = vpack.c.b16 %v2192, %v2184
          %v2681 = vpack.c.b16 %v2193, %v2185
          %v2682 = vpack.c.b16 %v2194, %v2186
          %v2683 = vpack.c.b16 %v2195, %v2187
          %v2684 = vpack.c.b16 %v2204, %v2196
          %v2685 = vpack.c.b16 %v2205, %v2197
          %v2686 = vpack.c.b16 %v2206, %v2198
          %v2687 = vpack.c.b16 %v2207, %v2199
          %v2688 = vpack.c.b16 %v2208, %v2200
          %v2689 = vpack.c.b16 %v2209, %v2201
          %v2690 = vpack.c.b16 %v2210, %v2202
          %v2691 = vpack.c.b16 %v2211, %v2203
          %v2692 = vpack.c.b16 %v2220, %v2212
          %v2693 = vpack.c.b16 %v2221, %v2213
          %v2694 = vpack.c.b16 %v2222, %v2214
          %v2695 = vpack.c.b16 %v2223, %v2215
          %v2696 = vpack.c.b16 %v2224, %v2216
          %v2697 = vpack.c.b16 %v2225, %v2217
          %v2698 = vpack.c.b16 %v2226, %v2218
          %v2699 = vpack.c.b16 %v2227, %v2219
          %v2700 = vpack.c.b16 %v2236, %v2228
          %v2701 = vpack.c.b16 %v2237, %v2229
          %v2702 = vpack.c.b16 %v2238, %v2230
          %v2703 = vpack.c.b16 %v2239, %v2231
          %v2704 = vpack.c.b16 %v2240, %v2232
          %v2705 = vpack.c.b16 %v2241, %v2233
          %v2706 = vpack.c.b16 %v2242, %v2234
          %v2707 = vpack.c.b16 %v2243, %v2235
          %v2708 = vpack.c.b16 %v2252, %v2244
          %v2709 = vpack.c.b16 %v2253, %v2245
          %v2710 = vpack.c.b16 %v2254, %v2246
          %v2711 = vpack.c.b16 %v2255, %v2247
          %v2712 = vpack.c.b16 %v2256, %v2248
          %v2713 = vpack.c.b16 %v2257, %v2249
          %v2714 = vpack.c.b16 %v2258, %v2250
          %v2715 = vpack.c.b16 %v2259, %v2251
          %v2716 = vpack.c.b16 %v2268, %v2260
          %v2717 = vpack.c.b16 %v2269, %v2261
          %v2718 = vpack.c.b16 %v2270, %v2262
          %v2719 = vpack.c.b16 %v2271, %v2263
          %v2720 = vpack.c.b16 %v2272, %v2264
          %v2721 = vpack.c.b16 %v2273, %v2265
          %v2722 = vpack.c.b16 %v2274, %v2266
          %v2723 = vpack.c.b16 %v2275, %v2267
          %v2724 = vpack.c.b16 %v2284, %v2276
          %v2725 = vpack.c.b16 %v2285, %v2277
          %v2726 = vpack.c.b16 %v2286, %v2278
          %v2727 = vpack.c.b16 %v2287, %v2279
          %v2728 = vpack.c.b16 %v2288, %v2280
          %v2729 = vpack.c.b16 %v2289, %v2281
          %v2730 = vpack.c.b16 %v2290, %v2282
          %v2731 = vpack.c.b16 %v2291, %v2283
          %v2732 = vpack.c.b16 %v2300, %v2292
          %v2733 = vpack.c.b16 %v2301, %v2293
          %v2734 = vpack.c.b16 %v2302, %v2294
          %v2735 = vpack.c.b16 %v2303, %v2295
          %v2736 = vpack.c.b16 %v2304, %v2296
          %v2737 = vpack.c.b16 %v2305, %v2297
          %v2738 = vpack.c.b16 %v2306, %v2298
          %v2739 = vpack.c.b16 %v2307, %v2299
          %v2740 = vpack.c.b16 %v2316, %v2308
          %v2741 = vpack.c.b16 %v2317, %v2309
          %v2742 = vpack.c.b16 %v2318, %v2310
          %v2743 = vpack.c.b16 %v2319, %v2311
          %v2744 = vpack.c.b16 %v2320, %v2312
          %v2745 = vpack.c.b16 %v2321, %v2313
          %v2746 = vpack.c.b16 %v2322, %v2314
          %v2747 = vpack.c.b16 %v2323, %v2315
          %v2748 = vpack.c.b16 %v2332, %v2324
          %v2749 = vpack.c.b16 %v2333, %v2325
          %v2750 = vpack.c.b16 %v2334, %v2326
          %v2751 = vpack.c.b16 %v2335, %v2327
          %v2752 = vpack.c.b16 %v2336, %v2328
          %v2753 = vpack.c.b16 %v2337, %v2329
          %v2754 = vpack.c.b16 %v2338, %v2330
          %v2755 = vpack.c.b16 %v2339, %v2331
          %v2756 = vpack.c.b16 %v2348, %v2340
          %v2757 = vpack.c.b16 %v2349, %v2341
          %v2758 = vpack.c.b16 %v2350, %v2342
          %v2759 = vpack.c.b16 %v2351, %v2343
          %v2760 = vpack.c.b16 %v2352, %v2344
          %v2761 = vpack.c.b16 %v2353, %v2345
          %v2762 = vpack.c.b16 %v2354, %v2346
          %v2763 = vpack.c.b16 %v2355, %v2347
          %v2764 = vpack.c.b16 %v2364, %v2356
          %v2765 = vpack.c.b16 %v2365, %v2357
          %v2766 = vpack.c.b16 %v2366, %v2358
          %v2767 = vpack.c.b16 %v2367, %v2359
          %v2768 = vpack.c.b16 %v2368, %v2360
          %v2769 = vpack.c.b16 %v2369, %v2361
          %v2770 = vpack.c.b16 %v2370, %v2362
          %v2771 = vpack.c.b16 %v2371, %v2363
          %v2772 = vpack.c.b16 %v2380, %v2372
          %v2773 = vpack.c.b16 %v2381, %v2373
          %v2774 = vpack.c.b16 %v2382, %v2374
          %v2775 = vpack.c.b16 %v2383, %v2375
          %v2776 = vpack.c.b16 %v2384, %v2376
          %v2777 = vpack.c.b16 %v2385, %v2377
          %v2778 = vpack.c.b16 %v2386, %v2378
          %v2779 = vpack.c.b16 %v2387, %v2379
          %v2780 = vpack.c.b16 %v2396, %v2388
          %v2781 = vpack.c.b16 %v2397, %v2389
          %v2782 = vpack.c.b16 %v2398, %v2390
          %v2783 = vpack.c.b16 %v2399, %v2391
          %v2784 = vpack.c.b16 %v2400, %v2392
          %v2785 = vpack.c.b16 %v2401, %v2393
          %v2786 = vpack.c.b16 %v2402, %v2394
          %v2787 = vpack.c.b16 %v2403, %v2395
          %v2788 = vpack.c.b16 %v2412, %v2404
          %v2789 = vpack.c.b16 %v2413, %v2405
          %v2790 = vpack.c.b16 %v2414, %v2406
          %v2791 = vpack.c.b16 %v2415, %v2407
          %v2792 = vpack.c.b16 %v2416, %v2408
          %v2793 = vpack.c.b16 %v2417, %v2409
          %v2794 = vpack.c.b16 %v2418, %v2410
          %v2795 = vpack.c.b16 %v2419, %v2411
          %v2796 = vpack.c.b16 %v2428, %v2420
          %v2797 = vpack.c.b16 %v2429, %v2421
          %v2798 = vpack.c.b16 %v2430, %v2422
          %v2799 = vpack.c.b16 %v2431, %v2423
          %v2800 = vpack.c.b16 %v2432, %v2424
          %v2801 = vpack.c.b16 %v2433, %v2425
          %v2802 = vpack.c.b16 %v2434, %v2426
          %v2803 = vpack.c.b16 %v2435, %v2427
          %v2804 = vpack.c.b16 %v2444, %v2436
          %v2805 = vpack.c.b16 %v2445, %v2437
          %v2806 = vpack.c.b16 %v2446, %v2438
          %v2807 = vpack.c.b16 %v2447, %v2439
          %v2808 = vpack.c.b16 %v2448, %v2440
          %v2809 = vpack.c.b16 %v2449, %v2441
          %v2810 = vpack.c.b16 %v2450, %v2442
          %v2811 = vpack.c.b16 %v2451, %v2443
          %v2812 = vpack.c.b16 %v2460, %v2452
          %v2813 = vpack.c.b16 %v2461, %v2453
          %v2814 = vpack.c.b16 %v2462, %v2454
          %v2815 = vpack.c.b16 %v2463, %v2455
          %v2816 = vpack.c.b16 %v2464, %v2456
          %v2817 = vpack.c.b16 %v2465, %v2457
          %v2818 = vpack.c.b16 %v2466, %v2458
          %v2819 = vpack.c.b16 %v2467, %v2459
          %v2820 = vpack.c.b16 %v2476, %v2468
          %v2821 = vpack.c.b16 %v2477, %v2469
          %v2822 = vpack.c.b16 %v2478, %v2470
          %v2823 = vpack.c.b16 %v2479, %v2471
          %v2824 = vpack.c.b16 %v2480, %v2472
          %v2825 = vpack.c.b16 %v2481, %v2473
          %v2826 = vpack.c.b16 %v2482, %v2474
          %v2827 = vpack.c.b16 %v2483, %v2475
          %v2828 = vpack.c.b16 %v2492, %v2484
          %v2829 = vpack.c.b16 %v2493, %v2485
          %v2830 = vpack.c.b16 %v2494, %v2486
          %v2831 = vpack.c.b16 %v2495, %v2487
          %v2832 = vpack.c.b16 %v2496, %v2488
          %v2833 = vpack.c.b16 %v2497, %v2489
          %v2834 = vpack.c.b16 %v2498, %v2490
          %v2835 = vpack.c.b16 %v2499, %v2491
          %v2836 = vpack.c.b16 %v2508, %v2500
          %v2837 = vpack.c.b16 %v2509, %v2501
          %v2838 = vpack.c.b16 %v2510, %v2502
          %v2839 = vpack.c.b16 %v2511, %v2503
          %v2840 = vpack.c.b16 %v2512, %v2504
          %v2841 = vpack.c.b16 %v2513, %v2505
          %v2842 = vpack.c.b16 %v2514, %v2506
          %v2843 = vpack.c.b16 %v2515, %v2507
          %v2844 = vpack.c.b16 %v2524, %v2516
          %v2845 = vpack.c.b16 %v2525, %v2517
          %v2846 = vpack.c.b16 %v2526, %v2518
          %v2847 = vpack.c.b16 %v2527, %v2519
          %v2848 = vpack.c.b16 %v2528, %v2520
          %v2849 = vpack.c.b16 %v2529, %v2521
          %v2850 = vpack.c.b16 %v2530, %v2522
          %v2851 = vpack.c.b16 %v2531, %v2523
          %v2852 = vpack.c.b16 %v2540, %v2532
          %v2853 = vpack.c.b16 %v2541, %v2533
          %v2854 = vpack.c.b16 %v2542, %v2534
          %v2855 = vpack.c.b16 %v2543, %v2535
          %v2856 = vpack.c.b16 %v2544, %v2536
          %v2857 = vpack.c.b16 %v2545, %v2537
          %v2858 = vpack.c.b16 %v2546, %v2538
          %v2859 = vpack.c.b16 %v2547, %v2539
          %v2860 = vpack.c.b16 %v2556, %v2548
          %v2861 = vpack.c.b16 %v2557, %v2549
          %v2862 = vpack.c.b16 %v2558, %v2550
          %v2863 = vpack.c.b16 %v2559, %v2551
          %v2864 = vpack.c.b16 %v2560, %v2552
          %v2865 = vpack.c.b16 %v2561, %v2553
          %v2866 = vpack.c.b16 %v2562, %v2554
          %v2867 = vpack.c.b16 %v2563, %v2555
          %v2868 = vpack.c.b16 %v2572, %v2564
          %v2869 = vpack.c.b16 %v2573, %v2565
          %v2870 = vpack.c.b16 %v2574, %v2566
          %v2871 = vpack.c.b16 %v2575, %v2567
          %v2872 = vpack.c.b16 %v2576, %v2568
          %v2873 = vpack.c.b16 %v2577, %v2569
          %v2874 = vpack.c.b16 %v2578, %v2570
          %v2875 = vpack.c.b16 %v2579, %v2571
          %v2876 = vpack.c.b16 %v2588, %v2580
          %v2877 = vpack.c.b16 %v2589, %v2581
          %v2878 = vpack.c.b16 %v2590, %v2582
          %v2879 = vpack.c.b16 %v2591, %v2583
          %v2880 = vpack.c.b16 %v2592, %v2584
          %v2881 = vpack.c.b16 %v2593, %v2585
          %v2882 = vpack.c.b16 %v2594, %v2586
          %v2883 = vpack.c.b16 %v2595, %v2587
          %v2884 = vpack.c.b16 %v2604, %v2596
          %v2885 = vpack.c.b16 %v2605, %v2597
          %v2886 = vpack.c.b16 %v2606, %v2598
          %v2887 = vpack.c.b16 %v2607, %v2599
          %v2888 = vpack.c.b16 %v2608, %v2600
          %v2889 = vpack.c.b16 %v2609, %v2601
          %v2890 = vpack.c.b16 %v2610, %v2602
          %v2891 = vpack.c.b16 %v2611, %v2603
          %v2892 = vpack.c.b16 %v2620, %v2612
          %v2893 = vpack.c.b16 %v2621, %v2613
          %v2894 = vpack.c.b16 %v2622, %v2614
          %v2895 = vpack.c.b16 %v2623, %v2615
          %v2896 = vpack.c.b16 %v2624, %v2616
          %v2897 = vpack.c.b16 %v2625, %v2617
          %v2898 = vpack.c.b16 %v2626, %v2618
          %v2899 = vpack.c.b16 %v2627, %v2619
          %v2900 = vpack.c.b16 %v2636, %v2628
          %v2901 = vpack.c.b16 %v2637, %v2629
          %v2902 = vpack.c.b16 %v2638, %v2630
          %v2903 = vpack.c.b16 %v2639, %v2631
          %v2904 = vpack.c.b16 %v2640, %v2632
          %v2905 = vpack.c.b16 %v2641, %v2633
          %v2906 = vpack.c.b16 %v2642, %v2634
          %v2907 = vpack.c.b16 %v2643, %v2635
          %v2908 = vpack.c.b16 %v2652, %v2644
          %v2909 = vpack.c.b16 %v2653, %v2645
          %v2910 = vpack.c.b16 %v2654, %v2646
          %v2911 = vpack.c.b16 %v2655, %v2647
          %v2912 = vpack.c.b16 %v2656, %v2648
          %v2913 = vpack.c.b16 %v2657, %v2649
          %v2914 = vpack.c.b16 %v2658, %v2650
          %v2915 = vpack.c.b16 %v2659, %v2651
          %3172 = vmatprep.subr.bf16.mxu0 %v2661
          %3173 = vmatpush1.bf16.msra.mxu0 %v2660
          %3174 = vmatprep.subr.bf16.mxu0 %v2669
          %3175 = vmatpush1.bf16.msra.mxu0 %v2668
          %3176 = vmatprep.subr.bf16.mxu0 %v2677
          %3177 = vmatpush1.bf16.msra.mxu0 %v2676
          %3178 = vmatprep.subr.bf16.mxu0 %v2685
          %3179 = vmatpush1.bf16.msra.mxu0 %v2684
          %3180 = vmatprep.subr.bf16.mxu0 %v2693
          %3181 = vmatpush1.bf16.msra.mxu0 %v2692
          %3182 = vmatprep.subr.bf16.mxu0 %v2701
          %3183 = vmatpush1.bf16.msra.mxu0 %v2700
          %3184 = vmatprep.subr.bf16.mxu0 %v2709
          %3185 = vmatpush1.bf16.msra.mxu0 %v2708
          %3186 = vmatprep.subr.bf16.mxu0 %v2717
          %3187 = vmatpush1.bf16.msra.mxu0 %v2716
          %3188 = vmatprep.subr.bf16.mxu0 %v2725
          %3189 = vmatpush1.bf16.msra.mxu0 %v2724
          %3190 = vmatprep.subr.bf16.mxu0 %v2733
          %3191 = vmatpush1.bf16.msra.mxu0 %v2732
          %3192 = vmatprep.subr.bf16.mxu0 %v2741
          %3193 = vmatpush1.bf16.msra.mxu0 %v2740
          %3194 = vmatprep.subr.bf16.mxu0 %v2749
          %3195 = vmatpush1.bf16.msra.mxu0 %v2748
          %3196 = vmatprep.subr.bf16.mxu0 %v2757
          %3197 = vmatpush1.bf16.msra.mxu0 %v2756
          %3198 = vmatprep.subr.bf16.mxu0 %v2765
          %3199 = vmatpush1.bf16.msra.mxu0 %v2764
          %3200 = vmatprep.subr.bf16.mxu0 %v2773
          %3201 = vmatpush1.bf16.msra.mxu0 %v2772
          %3202 = vmatprep.subr.bf16.mxu0 %v2781
          %3203 = vmatpush1.bf16.msra.mxu0 %v2780
          %3204 = vmatprep.mubr.bf16.mxu0 %v1591
          %3205 = vmatmul.mubr.bf16.gmra.mrb[0].mxu0 %v1590
          %v3206 = vpop.f32.mrb[0].mxu0
          %v3207 = vadd.f32 %v1855, %v3206
          %v3208 = vpop.f32.mrb[0].mxu0
          %v3209 = vadd.f32 %v1859, %v3208
          %v3210 = vpop.f32.mrb[0].mxu0
          %v3211 = vpop.f32.mrb[0].mxu0
          %3212 = vdwg.mxu0
          %3213 = vmatprep.subr.bf16.mxu0 %v2789
          %3214 = vmatpush1.bf16.msra.mxu0 %v2788
          %3215 = vmatprep.subr.bf16.mxu0 %v2797
          %3216 = vmatpush1.bf16.msra.mxu0 %v2796
          %3217 = vmatprep.subr.bf16.mxu0 %v2805
          %3218 = vmatpush1.bf16.msra.mxu0 %v2804
          %3219 = vmatprep.subr.bf16.mxu0 %v2813
          %3220 = vmatpush1.bf16.msra.mxu0 %v2812
          %3221 = vmatprep.subr.bf16.mxu0 %v2821
          %3222 = vmatpush1.bf16.msra.mxu0 %v2820
          %3223 = vmatprep.subr.bf16.mxu0 %v2829
          %3224 = vmatpush1.bf16.msra.mxu0 %v2828
          %3225 = vmatprep.subr.bf16.mxu0 %v2837
          %3226 = vmatpush1.bf16.msra.mxu0 %v2836
          %3227 = vmatprep.subr.bf16.mxu0 %v2845
          %3228 = vmatpush1.bf16.msra.mxu0 %v2844
          %3229 = vmatprep.subr.bf16.mxu0 %v2853
          %3230 = vmatpush1.bf16.msra.mxu0 %v2852
          %3231 = vmatprep.subr.bf16.mxu0 %v2861
          %3232 = vmatpush1.bf16.msra.mxu0 %v2860
          %3233 = vmatprep.subr.bf16.mxu0 %v2869
          %3234 = vmatpush1.bf16.msra.mxu0 %v2868
          %3235 = vmatprep.subr.bf16.mxu0 %v2877
          %3236 = vmatpush1.bf16.msra.mxu0 %v2876
          %3237 = vmatprep.subr.bf16.mxu0 %v2885
          %3238 = vmatpush1.bf16.msra.mxu0 %v2884
          %3239 = vmatprep.subr.bf16.mxu0 %v2893
          %3240 = vmatpush1.bf16.msra.mxu0 %v2892
          %3241 = vmatprep.subr.bf16.mxu0 %v2901
          %3242 = vmatpush1.bf16.msra.mxu0 %v2900
          %3243 = vmatprep.subr.bf16.mxu0 %v2909
          %3244 = vmatpush1.bf16.msra.mxu0 %v2908
          %3245 = vmatprep.mubr.bf16.mxu0 %v1593
          %3246 = vmatmul.mubr.bf16.gmra.mrb[0].mxu0 %v1592
          %v3247 = vpop.f32.mrb[0].mxu0
          %v3248 = vadd.f32 %v3207, %v3247
          %v3249 = vpop.f32.mrb[0].mxu0
          %v3250 = vadd.f32 %v3209, %v3249
          %v3251 = vpop.f32.mrb[0].mxu0
          %v3252 = vpop.f32.mrb[0].mxu0
          %3253 = vdwg.mxu0
          %3254 = vmatprep.subr.bf16.mxu0 %v2663
          %3255 = vmatpush1.bf16.msra.mxu0 %v2662
          %3256 = vmatprep.subr.bf16.mxu0 %v2671
          %3257 = vmatpush1.bf16.msra.mxu0 %v2670
          %3258 = vmatprep.subr.bf16.mxu0 %v2679
          %3259 = vmatpush1.bf16.msra.mxu0 %v2678
          %3260 = vmatprep.subr.bf16.mxu0 %v2687
          %3261 = vmatpush1.bf16.msra.mxu0 %v2686
          %3262 = vmatprep.subr.bf16.mxu0 %v2695
          %3263 = vmatpush1.bf16.msra.mxu0 %v2694
          %3264 = vmatprep.subr.bf16.mxu0 %v2703
          %3265 = vmatpush1.bf16.msra.mxu0 %v2702
          %3266 = vmatprep.subr.bf16.mxu0 %v2711
          %3267 = vmatpush1.bf16.msra.mxu0 %v2710
          %3268 = vmatprep.subr.bf16.mxu0 %v2719
          %3269 = vmatpush1.bf16.msra.mxu0 %v2718
          %3270 = vmatprep.subr.bf16.mxu0 %v2727
          %3271 = vmatpush1.bf16.msra.mxu0 %v2726
          %3272 = vmatprep.subr.bf16.mxu0 %v2735
          %3273 = vmatpush1.bf16.msra.mxu0 %v2734
          %3274 = vmatprep.subr.bf16.mxu0 %v2743
          %3275 = vmatpush1.bf16.msra.mxu0 %v2742
          %3276 = vmatprep.subr.bf16.mxu0 %v2751
          %3277 = vmatpush1.bf16.msra.mxu0 %v2750
          %3278 = vmatprep.subr.bf16.mxu0 %v2759
          %3279 = vmatpush1.bf16.msra.mxu0 %v2758
          %3280 = vmatprep.subr.bf16.mxu0 %v2767
          %3281 = vmatpush1.bf16.msra.mxu0 %v2766
          %3282 = vmatprep.subr.bf16.mxu0 %v2775
          %3283 = vmatpush1.bf16.msra.mxu0 %v2774
          %3284 = vmatprep.subr.bf16.mxu0 %v2783
          %3285 = vmatpush1.bf16.msra.mxu0 %v2782
          %3286 = vmatprep.mubr.bf16.mxu0 %v1591
          %3287 = vmatmul.mubr.bf16.gmra.mrb[0].mxu0 %v1590
          %v3288 = vpop.f32.mrb[0].mxu0
          %v3289 = vadd.f32 %v1863, %v3288
          %v3290 = vpop.f32.mrb[0].mxu0
          %v3291 = vadd.f32 %v1867, %v3290
          %v3292 = vpop.f32.mrb[0].mxu0
          %v3293 = vpop.f32.mrb[0].mxu0
          %3294 = vdwg.mxu0
          %3295 = vmatprep.subr.bf16.mxu0 %v2791
          %3296 = vmatpush1.bf16.msra.mxu0 %v2790
          %3297 = vmatprep.subr.bf16.mxu0 %v2799
          %3298 = vmatpush1.bf16.msra.mxu0 %v2798
          %3299 = vmatprep.subr.bf16.mxu0 %v2807
          %3300 = vmatpush1.bf16.msra.mxu0 %v2806
          %3301 = vmatprep.subr.bf16.mxu0 %v2815
          %3302 = vmatpush1.bf16.msra.mxu0 %v2814
          %3303 = vmatprep.subr.bf16.mxu0 %v2823
          %3304 = vmatpush1.bf16.msra.mxu0 %v2822
          %3305 = vmatprep.subr.bf16.mxu0 %v2831
          %3306 = vmatpush1.bf16.msra.mxu0 %v2830
          %3307 = vmatprep.subr.bf16.mxu0 %v2839
          %3308 = vmatpush1.bf16.msra.mxu0 %v2838
          %3309 = vmatprep.subr.bf16.mxu0 %v2847
          %3310 = vmatpush1.bf16.msra.mxu0 %v2846
          %3311 = vmatprep.subr.bf16.mxu0 %v2855
          %3312 = vmatpush1.bf16.msra.mxu0 %v2854
          %3313 = vmatprep.subr.bf16.mxu0 %v2863
          %3314 = vmatpush1.bf16.msra.mxu0 %v2862
          %3315 = vmatprep.subr.bf16.mxu0 %v2871
          %3316 = vmatpush1.bf16.msra.mxu0 %v2870
          %3317 = vmatprep.subr.bf16.mxu0 %v2879
          %3318 = vmatpush1.bf16.msra.mxu0 %v2878
          %3319 = vmatprep.subr.bf16.mxu0 %v2887
          %3320 = vmatpush1.bf16.msra.mxu0 %v2886
          %3321 = vmatprep.subr.bf16.mxu0 %v2895
          %3322 = vmatpush1.bf16.msra.mxu0 %v2894
          %3323 = vmatprep.subr.bf16.mxu0 %v2903
          %3324 = vmatpush1.bf16.msra.mxu0 %v2902
          %3325 = vmatprep.subr.bf16.mxu0 %v2911
          %3326 = vmatpush1.bf16.msra.mxu0 %v2910
          %3327 = vmatprep.mubr.bf16.mxu0 %v1593
          %3328 = vmatmul.mubr.bf16.gmra.mrb[0].mxu0 %v1592
          %v3329 = vpop.f32.mrb[0].mxu0
          %v3330 = vadd.f32 %v3289, %v3329
          %v3331 = vpop.f32.mrb[0].mxu0
          %v3332 = vadd.f32 %v3291, %v3331
          %v3333 = vpop.f32.mrb[0].mxu0
          %v3334 = vpop.f32.mrb[0].mxu0
          %3335 = vdwg.mxu0
          %3336 = vmatprep.subr.bf16.mxu0 %v2665
          %3337 = vmatpush1.bf16.msra.mxu0 %v2664
          %3338 = vmatprep.subr.bf16.mxu0 %v2673
          %3339 = vmatpush1.bf16.msra.mxu0 %v2672
          %3340 = vmatprep.subr.bf16.mxu0 %v2681
          %3341 = vmatpush1.bf16.msra.mxu0 %v2680
          %3342 = vmatprep.subr.bf16.mxu0 %v2689
          %3343 = vmatpush1.bf16.msra.mxu0 %v2688
          %3344 = vmatprep.subr.bf16.mxu0 %v2697
          %3345 = vmatpush1.bf16.msra.mxu0 %v2696
          %3346 = vmatprep.subr.bf16.mxu0 %v2705
          %3347 = vmatpush1.bf16.msra.mxu0 %v2704
          %3348 = vmatprep.subr.bf16.mxu0 %v2713
          %3349 = vmatpush1.bf16.msra.mxu0 %v2712
          %3350 = vmatprep.subr.bf16.mxu0 %v2721
          %3351 = vmatpush1.bf16.msra.mxu0 %v2720
          %3352 = vmatprep.subr.bf16.mxu0 %v2729
          %3353 = vmatpush1.bf16.msra.mxu0 %v2728
          %3354 = vmatprep.subr.bf16.mxu0 %v2737
          %3355 = vmatpush1.bf16.msra.mxu0 %v2736
          %3356 = vmatprep.subr.bf16.mxu0 %v2745
          %3357 = vmatpush1.bf16.msra.mxu0 %v2744
          %3358 = vmatprep.subr.bf16.mxu0 %v2753
          %3359 = vmatpush1.bf16.msra.mxu0 %v2752
          %3360 = vmatprep.subr.bf16.mxu0 %v2761
          %3361 = vmatpush1.bf16.msra.mxu0 %v2760
          %3362 = vmatprep.subr.bf16.mxu0 %v2769
          %3363 = vmatpush1.bf16.msra.mxu0 %v2768
          %3364 = vmatprep.subr.bf16.mxu0 %v2777
          %3365 = vmatpush1.bf16.msra.mxu0 %v2776
          %3366 = vmatprep.subr.bf16.mxu0 %v2785
          %3367 = vmatpush1.bf16.msra.mxu0 %v2784
          %3368 = vmatprep.mubr.bf16.mxu0 %v1591
          %3369 = vmatmul.mubr.bf16.gmra.mrb[0].mxu0 %v1590
          %v3370 = vpop.f32.mrb[0].mxu0
          %v3371 = vadd.f32 %v1871, %v3370
          %v3372 = vpop.f32.mrb[0].mxu0
          %v3373 = vadd.f32 %v1875, %v3372
          %v3374 = vpop.f32.mrb[0].mxu0
          %v3375 = vpop.f32.mrb[0].mxu0
          %3376 = vdwg.mxu0
          %3377 = vmatprep.subr.bf16.mxu0 %v2793
          %3378 = vmatpush1.bf16.msra.mxu0 %v2792
          %3379 = vmatprep.subr.bf16.mxu0 %v2801
          %3380 = vmatpush1.bf16.msra.mxu0 %v2800
          %3381 = vmatprep.subr.bf16.mxu0 %v2809
          %3382 = vmatpush1.bf16.msra.mxu0 %v2808
          %3383 = vmatprep.subr.bf16.mxu0 %v2817
          %3384 = vmatpush1.bf16.msra.mxu0 %v2816
          %3385 = vmatprep.subr.bf16.mxu0 %v2825
          %3386 = vmatpush1.bf16.msra.mxu0 %v2824
          %3387 = vmatprep.subr.bf16.mxu0 %v2833
          %3388 = vmatpush1.bf16.msra.mxu0 %v2832
          %3389 = vmatprep.subr.bf16.mxu0 %v2841
          %3390 = vmatpush1.bf16.msra.mxu0 %v2840
          %3391 = vmatprep.subr.bf16.mxu0 %v2849
          %3392 = vmatpush1.bf16.msra.mxu0 %v2848
          %3393 = vmatprep.subr.bf16.mxu0 %v2857
          %3394 = vmatpush1.bf16.msra.mxu0 %v2856
          %3395 = vmatprep.subr.bf16.mxu0 %v2865
          %3396 = vmatpush1.bf16.msra.mxu0 %v2864
          %3397 = vmatprep.subr.bf16.mxu0 %v2873
          %3398 = vmatpush1.bf16.msra.mxu0 %v2872
          %3399 = vmatprep.subr.bf16.mxu0 %v2881
          %3400 = vmatpush1.bf16.msra.mxu0 %v2880
          %3401 = vmatprep.subr.bf16.mxu0 %v2889
          %3402 = vmatpush1.bf16.msra.mxu0 %v2888
          %3403 = vmatprep.subr.bf16.mxu0 %v2897
          %3404 = vmatpush1.bf16.msra.mxu0 %v2896
          %3405 = vmatprep.subr.bf16.mxu0 %v2905
          %3406 = vmatpush1.bf16.msra.mxu0 %v2904
          %3407 = vmatprep.subr.bf16.mxu0 %v2913
          %3408 = vmatpush1.bf16.msra.mxu0 %v2912
          %3409 = vmatprep.mubr.bf16.mxu0 %v1593
          %3410 = vmatmul.mubr.bf16.gmra.mrb[0].mxu0 %v1592
          %v3411 = vpop.f32.mrb[0].mxu0
          %v3412 = vadd.f32 %v3371, %v3411
          %v3413 = vpop.f32.mrb[0].mxu0
          %v3414 = vadd.f32 %v3373, %v3413
          %v3415 = vpop.f32.mrb[0].mxu0
          %v3416 = vpop.f32.mrb[0].mxu0
          %3417 = vdwg.mxu0
          %3418 = vmatprep.subr.bf16.mxu0 %v2667
          %3419 = vmatpush1.bf16.msra.mxu0 %v2666
          %3420 = vmatprep.subr.bf16.mxu0 %v2675
          %3421 = vmatpush1.bf16.msra.mxu0 %v2674
          %3422 = vmatprep.subr.bf16.mxu0 %v2683
          %3423 = vmatpush1.bf16.msra.mxu0 %v2682
          %3424 = vmatprep.subr.bf16.mxu0 %v2691
          %3425 = vmatpush1.bf16.msra.mxu0 %v2690
          %3426 = vmatprep.subr.bf16.mxu0 %v2699
          %3427 = vmatpush1.bf16.msra.mxu0 %v2698
          %3428 = vmatprep.subr.bf16.mxu0 %v2707
          %3429 = vmatpush1.bf16.msra.mxu0 %v2706
          %3430 = vmatprep.subr.bf16.mxu0 %v2715
          %3431 = vmatpush1.bf16.msra.mxu0 %v2714
          %3432 = vmatprep.subr.bf16.mxu0 %v2723
          %3433 = vmatpush1.bf16.msra.mxu0 %v2722
          %3434 = vmatprep.subr.bf16.mxu0 %v2731
          %3435 = vmatpush1.bf16.msra.mxu0 %v2730
          %3436 = vmatprep.subr.bf16.mxu0 %v2739
          %3437 = vmatpush1.bf16.msra.mxu0 %v2738
          %3438 = vmatprep.subr.bf16.mxu0 %v2747
          %3439 = vmatpush1.bf16.msra.mxu0 %v2746
          %3440 = vmatprep.subr.bf16.mxu0 %v2755
          %3441 = vmatpush1.bf16.msra.mxu0 %v2754
          %3442 = vmatprep.subr.bf16.mxu0 %v2763
          %3443 = vmatpush1.bf16.msra.mxu0 %v2762
          %3444 = vmatprep.subr.bf16.mxu0 %v2771
          %3445 = vmatpush1.bf16.msra.mxu0 %v2770
          %3446 = vmatprep.subr.bf16.mxu0 %v2779
          %3447 = vmatpush1.bf16.msra.mxu0 %v2778
          %3448 = vmatprep.subr.bf16.mxu0 %v2787
          %3449 = vmatpush1.bf16.msra.mxu0 %v2786
          %3450 = vmatprep.mubr.bf16.mxu0 %v1591
          %3451 = vmatmul.mubr.bf16.gmra.mrb[0].mxu0 %v1590
          %v3452 = vpop.f32.mrb[0].mxu0
          %v3453 = vadd.f32 %v1879, %v3452
          %v3454 = vpop.f32.mrb[0].mxu0
          %v3455 = vadd.f32 %v1883, %v3454
          %v3456 = vpop.f32.mrb[0].mxu0
          %v3457 = vpop.f32.mrb[0].mxu0
          %3458 = vdwg.mxu0
          %3459 = vmatprep.subr.bf16.mxu0 %v2795
          %3460 = vmatpush1.bf16.msra.mxu0 %v2794
          %3461 = vmatprep.subr.bf16.mxu0 %v2803
          %3462 = vmatpush1.bf16.msra.mxu0 %v2802
          %3463 = vmatprep.subr.bf16.mxu0 %v2811
          %3464 = vmatpush1.bf16.msra.mxu0 %v2810
          %3465 = vmatprep.subr.bf16.mxu0 %v2819
          %3466 = vmatpush1.bf16.msra.mxu0 %v2818
          %3467 = vmatprep.subr.bf16.mxu0 %v2827
          %3468 = vmatpush1.bf16.msra.mxu0 %v2826
          %3469 = vmatprep.subr.bf16.mxu0 %v2835
          %3470 = vmatpush1.bf16.msra.mxu0 %v2834
          %3471 = vmatprep.subr.bf16.mxu0 %v2843
          %3472 = vmatpush1.bf16.msra.mxu0 %v2842
          %3473 = vmatprep.subr.bf16.mxu0 %v2851
          %3474 = vmatpush1.bf16.msra.mxu0 %v2850
          %3475 = vmatprep.subr.bf16.mxu0 %v2859
          %3476 = vmatpush1.bf16.msra.mxu0 %v2858
          %3477 = vmatprep.subr.bf16.mxu0 %v2867
          %3478 = vmatpush1.bf16.msra.mxu0 %v2866
          %3479 = vmatprep.subr.bf16.mxu0 %v2875
          %3480 = vmatpush1.bf16.msra.mxu0 %v2874
          %3481 = vmatprep.subr.bf16.mxu0 %v2883
          %3482 = vmatpush1.bf16.msra.mxu0 %v2882
          %3483 = vmatprep.subr.bf16.mxu0 %v2891
          %3484 = vmatpush1.bf16.msra.mxu0 %v2890
          %3485 = vmatprep.subr.bf16.mxu0 %v2899
          %3486 = vmatpush1.bf16.msra.mxu0 %v2898
          %3487 = vmatprep.subr.bf16.mxu0 %v2907
          %3488 = vmatpush1.bf16.msra.mxu0 %v2906
          %3489 = vmatprep.subr.bf16.mxu0 %v2915
          %3490 = vmatpush1.bf16.msra.mxu0 %v2914
          %3491 = vmatprep.mubr.bf16.mxu0 %v1593
          %3492 = vmatmul.mubr.bf16.gmra.mrb[0].mxu0 %v1592
          %v3493 = vpop.f32.mrb[0].mxu0
          %v3494 = vadd.f32 %v3453, %v3493
          %v3495 = vpop.f32.mrb[0].mxu0
          %v3496 = vadd.f32 %v3455, %v3495
          %v3497 = vpop.f32.mrb[0].mxu0
          %v3498 = vpop.f32.mrb[0].mxu0
          %3499 = vdwg.mxu0
          %v3500 = vmul.f32 %v3248, 0.2
          %v3501 = vmul.f32 %v3250, 0.2
          %v3502 = vmul.f32 %v3330, 0.2
          %v3503 = vmul.f32 %v3332, 0.2
          %v3504 = vmul.f32 %v3412, 0.2
          %v3505 = vmul.f32 %v3414, 0.2
          %v3506 = vmul.f32 %v3494, 0.2
          %v3507 = vmul.f32 %v3496, 0.2
          %v3508 = vmax.f32 %v3248, %v3500
          %v3509 = vmax.f32 %v3250, %v3501
          %v3510 = vmax.f32 %v3330, %v3502
          %v3511 = vmax.f32 %v3332, %v3503
          %v3512 = vmax.f32 %v3412, %v3504
          %v3513 = vmax.f32 %v3414, %v3505
          %v3514 = vmax.f32 %v3494, %v3506
          %v3515 = vmax.f32 %v3496, %v3507
          %v3516 = vpack.c.bf16 %v3508, %v3508
          %v3517 = vpack.c.bf16 %v3509, %v3509
          %v3518 = vpack.c.bf16 %v3510, %v3510
          %v3519 = vpack.c.bf16 %v3511, %v3511
          %v3520 = vpack.c.bf16 %v3512, %v3512
          %v3521 = vpack.c.bf16 %v3513, %v3513
          %v3522 = vpack.c.bf16 %v3514, %v3514
          %v3523 = vpack.c.bf16 %v3515, %v3515
          %v3532 = vunpack.c.l.b16 %v3516
          %v3533 = vunpack.c.l.b16 %v3517
          %v3534 = vunpack.c.l.b16 %v3518
          %v3535 = vunpack.c.l.b16 %v3519
          %v3536 = vunpack.c.l.b16 %v3520
          %v3537 = vunpack.c.l.b16 %v3521
          %v3538 = vunpack.c.l.b16 %v3522
          %v3539 = vunpack.c.l.b16 %v3523
          %v3540 = vpack.c.b16 %v3533, %v3532
          %v3541 = vpack.c.b16 %v3535, %v3534
          %v3542 = vpack.c.b16 %v3537, %v3536
          %v3543 = vpack.c.b16 %v3539, %v3538
          %3548 = vst [vmem:[#allocation2] sm:$0xff] %v3540
          %3549 = vst [vmem:[#allocation2 + $0x8] sm:$0xff] %v3541
          %3550 = vst [vmem:[#allocation2 + $0x10] sm:$0xff] %v3542
          %3551 = vst [vmem:[#allocation2 + $0x18] sm:$0xff] %v3543
        $region101: #{generator_forward.1} parent=92 // pred_fallthru
          _
        %v3552 = vld [vmem:[#allocation2] sm:$0xff]
        %v3553 = vld [vmem:[#allocation2 + $0x8] sm:$0xff]
        %v3554 = vld [vmem:[#allocation2 + $0x10] sm:$0xff]
        %v3555 = vld [vmem:[#allocation2 + $0x18] sm:$0xff]
        %v3556 = vld [vmem:[%s875] sm:$0xf]
        %v3557 = vld [vmem:[%s875 + $0x4] sm:$0xf]
        %v3558 = vld [vmem:[%s875 + $0x8] sm:$0xf]
        %v3559 = vld [vmem:[%s875 + $0xc] sm:$0xf]
        %v3560 = vld [vmem:[%s875 + $0x10] sm:$0xf]
        %v3561 = vld [vmem:[%s875 + $0x14] sm:$0xf]
        %v3562 = vld [vmem:[%s875 + $0x18] sm:$0xf]
        %v3563 = vld [vmem:[%s875 + $0x1c] sm:$0xf]
        %v3564 = vld [vmem:[%s875 + $0x20] sm:$0xf]
        %v3565 = vld [vmem:[%s875 + $0x24] sm:$0xf]
        %v3566 = vld [vmem:[%s875 + $0x28] sm:$0xf]
        %v3567 = vld [vmem:[%s875 + $0x2c] sm:$0xf]
        %v3568 = vld [vmem:[%s875 + $0x30] sm:$0xf]
        %v3569 = vld [vmem:[%s875 + $0x34] sm:$0xf]
        %v3570 = vld [vmem:[%s875 + $0x38] sm:$0xf]
        %v3571 = vld [vmem:[%s875 + $0x3c] sm:$0xf]
        %v3572 = vld [vmem:[%s875 + $0x40] sm:$0xf]
        %v3573 = vld [vmem:[%s875 + $0x44] sm:$0xf]
        %v3574 = vld [vmem:[%s875 + $0x48] sm:$0xf]
        %v3575 = vld [vmem:[%s875 + $0x4c] sm:$0xf]
        %v3576 = vld [vmem:[%s875 + $0x50] sm:$0xf]
        %v3577 = vld [vmem:[%s875 + $0x54] sm:$0xf]
        %v3578 = vld [vmem:[%s875 + $0x58] sm:$0xf]
        %v3579 = vld [vmem:[%s875 + $0x5c] sm:$0xf]
        %v3580 = vld [vmem:[%s875 + $0x60] sm:$0xf]
        %v3581 = vld [vmem:[%s875 + $0x64] sm:$0xf]
        %v3582 = vld [vmem:[%s875 + $0x68] sm:$0xf]
        %v3583 = vld [vmem:[%s875 + $0x6c] sm:$0xf]
        %v3584 = vld [vmem:[%s875 + $0x70] sm:$0xf]
        %v3585 = vld [vmem:[%s875 + $0x74] sm:$0xf]
        %v3586 = vld [vmem:[%s875 + $0x78] sm:$0xf]
        %v3587 = vld [vmem:[%s875 + $0x7c] sm:$0xf]
        %v3588 = vld [vmem:[%s875 + $0x80] sm:$0xf]
        %v3589 = vld [vmem:[%s875 + $0x84] sm:$0xf]
        %v3590 = vld [vmem:[%s875 + $0x88] sm:$0xf]
        %v3591 = vld [vmem:[%s875 + $0x8c] sm:$0xf]
        %v3592 = vld [vmem:[%s875 + $0x90] sm:$0xf]
        %v3593 = vld [vmem:[%s875 + $0x94] sm:$0xf]
        %v3594 = vld [vmem:[%s875 + $0x98] sm:$0xf]
        %v3595 = vld [vmem:[%s875 + $0x9c] sm:$0xf]
        %v3596 = vld [vmem:[%s875 + $0xa0] sm:$0xf]
        %v3597 = vld [vmem:[%s875 + $0xa4] sm:$0xf]
        %v3598 = vld [vmem:[%s875 + $0xa8] sm:$0xf]
        %v3599 = vld [vmem:[%s875 + $0xac] sm:$0xf]
        %v3600 = vld [vmem:[%s875 + $0xb0] sm:$0xf]
        %v3601 = vld [vmem:[%s875 + $0xb4] sm:$0xf]
        %v3602 = vld [vmem:[%s875 + $0xb8] sm:$0xf]
        %v3603 = vld [vmem:[%s875 + $0xbc] sm:$0xf]
        %v3604 = vld [vmem:[%s875 + $0xc0] sm:$0xf]
        %v3605 = vld [vmem:[%s875 + $0xc4] sm:$0xf]
        %v3606 = vld [vmem:[%s875 + $0xc8] sm:$0xf]
        %v3607 = vld [vmem:[%s875 + $0xcc] sm:$0xf]
        %v3608 = vld [vmem:[%s875 + $0xd0] sm:$0xf]
        %v3609 = vld [vmem:[%s875 + $0xd4] sm:$0xf]
        %v3610 = vld [vmem:[%s875 + $0xd8] sm:$0xf]
        %v3611 = vld [vmem:[%s875 + $0xdc] sm:$0xf]
        %v3612 = vld [vmem:[%s875 + $0xe0] sm:$0xf]
        %v3613 = vld [vmem:[%s875 + $0xe4] sm:$0xf]
        %v3614 = vld [vmem:[%s875 + $0xe8] sm:$0xf]
        %v3615 = vld [vmem:[%s875 + $0xec] sm:$0xf]
        %v3616 = vld [vmem:[%s875 + $0xf0] sm:$0xf]
        %v3617 = vld [vmem:[%s875 + $0xf4] sm:$0xf]
        %v3618 = vld [vmem:[%s875 + $0xf8] sm:$0xf]
        %v3619 = vld [vmem:[%s875 + $0xfc] sm:$0xf]
        %v3620 = vld [vmem:[%s875 + $0x100] sm:$0xf]
        %v3621 = vld [vmem:[%s875 + $0x104] sm:$0xf]
        %v3622 = vld [vmem:[%s875 + $0x108] sm:$0xf]
        %v3623 = vld [vmem:[%s875 + $0x10c] sm:$0xf]
        %v3624 = vld [vmem:[%s875 + $0x110] sm:$0xf]
        %v3625 = vld [vmem:[%s875 + $0x114] sm:$0xf]
        %v3626 = vld [vmem:[%s875 + $0x118] sm:$0xf]
        %v3627 = vld [vmem:[%s875 + $0x11c] sm:$0xf]
        %v3628 = vld [vmem:[%s875 + $0x120] sm:$0xf]
        %v3629 = vld [vmem:[%s875 + $0x124] sm:$0xf]
        %v3630 = vld [vmem:[%s875 + $0x128] sm:$0xf]
        %v3631 = vld [vmem:[%s875 + $0x12c] sm:$0xf]
        %v3632 = vld [vmem:[%s875 + $0x130] sm:$0xf]
        %v3633 = vld [vmem:[%s875 + $0x134] sm:$0xf]
        %v3634 = vld [vmem:[%s875 + $0x138] sm:$0xf]
        %v3635 = vld [vmem:[%s875 + $0x13c] sm:$0xf]
        %v3636 = vld [vmem:[%s875 + $0x140] sm:$0xf]
        %v3637 = vld [vmem:[%s875 + $0x144] sm:$0xf]
        %v3638 = vld [vmem:[%s875 + $0x148] sm:$0xf]
        %v3639 = vld [vmem:[%s875 + $0x14c] sm:$0xf]
        %v3640 = vld [vmem:[%s875 + $0x150] sm:$0xf]
        %v3641 = vld [vmem:[%s875 + $0x154] sm:$0xf]
        %v3642 = vld [vmem:[%s875 + $0x158] sm:$0xf]
        %v3643 = vld [vmem:[%s875 + $0x15c] sm:$0xf]
        %v3644 = vld [vmem:[%s875 + $0x160] sm:$0xf]
        %v3645 = vld [vmem:[%s875 + $0x164] sm:$0xf]
        %v3646 = vld [vmem:[%s875 + $0x168] sm:$0xf]
        %v3647 = vld [vmem:[%s875 + $0x16c] sm:$0xf]
        %v3648 = vld [vmem:[%s875 + $0x170] sm:$0xf]
        %v3649 = vld [vmem:[%s875 + $0x174] sm:$0xf]
        %v3650 = vld [vmem:[%s875 + $0x178] sm:$0xf]
        %v3651 = vld [vmem:[%s875 + $0x17c] sm:$0xf]
        %v3652 = vld [vmem:[%s875 + $0x180] sm:$0xf]
        %v3653 = vld [vmem:[%s875 + $0x184] sm:$0xf]
        %v3654 = vld [vmem:[%s875 + $0x188] sm:$0xf]
        %v3655 = vld [vmem:[%s875 + $0x18c] sm:$0xf]
        %v3656 = vld [vmem:[%s875 + $0x190] sm:$0xf]
        %v3657 = vld [vmem:[%s875 + $0x194] sm:$0xf]
        %v3658 = vld [vmem:[%s875 + $0x198] sm:$0xf]
        %v3659 = vld [vmem:[%s875 + $0x19c] sm:$0xf]
        %v3660 = vld [vmem:[%s875 + $0x1a0] sm:$0xf]
        %v3661 = vld [vmem:[%s875 + $0x1a4] sm:$0xf]
        %v3662 = vld [vmem:[%s875 + $0x1a8] sm:$0xf]
        %v3663 = vld [vmem:[%s875 + $0x1ac] sm:$0xf]
        %v3664 = vld [vmem:[%s875 + $0x1b0] sm:$0xf]
        %v3665 = vld [vmem:[%s875 + $0x1b4] sm:$0xf]
        %v3666 = vld [vmem:[%s875 + $0x1b8] sm:$0xf]
        %v3667 = vld [vmem:[%s875 + $0x1bc] sm:$0xf]
        %v3668 = vld [vmem:[%s875 + $0x1c0] sm:$0xf]
        %v3669 = vld [vmem:[%s875 + $0x1c4] sm:$0xf]
        %v3670 = vld [vmem:[%s875 + $0x1c8] sm:$0xf]
        %v3671 = vld [vmem:[%s875 + $0x1cc] sm:$0xf]
        %v3672 = vld [vmem:[%s875 + $0x1d0] sm:$0xf]
        %v3673 = vld [vmem:[%s875 + $0x1d4] sm:$0xf]
        %v3674 = vld [vmem:[%s875 + $0x1d8] sm:$0xf]
        %v3675 = vld [vmem:[%s875 + $0x1dc] sm:$0xf]
        %v3676 = vld [vmem:[%s875 + $0x1e0] sm:$0xf]
        %v3677 = vld [vmem:[%s875 + $0x1e4] sm:$0xf]
        %v3678 = vld [vmem:[%s875 + $0x1e8] sm:$0xf]
        %v3679 = vld [vmem:[%s875 + $0x1ec] sm:$0xf]
        %v3680 = vld [vmem:[%s875 + $0x1f0] sm:$0xf]
        %v3681 = vld [vmem:[%s875 + $0x1f4] sm:$0xf]
        %v3682 = vld [vmem:[%s875 + $0x1f8] sm:$0xf]
        %v3683 = vld [vmem:[%s875 + $0x1fc] sm:$0xf]
        %v3684 = vld [vmem:[%s924] sm:$0x1]
        %v3686 = vlaneseq
        %v3687 = vshrl.u32 %v3686, 7
        %v3688 = vsub.s32 0, %v3687
        %v3689 = vrot.slane %v3684, %v3688
        %v3695 = vunpack.c.l.b16 %v3552
        %v3696 = vunpack.c.h.b16 %v3552
        %v3697 = vunpack.c.l.b16 %v3553
        %v3698 = vunpack.c.h.b16 %v3553
        %v3699 = vunpack.c.l.b16 %v3554
        %v3700 = vunpack.c.h.b16 %v3554
        %v3701 = vunpack.c.l.b16 %v3555
        %v3702 = vunpack.c.h.b16 %v3555
        %v3703 = vpack.c.b16 %v3695, %v3695
        %v3704 = vpack.c.b16 %v3696, %v3696
        %v3705 = vpack.c.b16 %v3697, %v3697
        %v3706 = vpack.c.b16 %v3698, %v3698
        %v3707 = vpack.c.b16 %v3699, %v3699
        %v3708 = vpack.c.b16 %v3700, %v3700
        %v3709 = vpack.c.b16 %v3701, %v3701
        %v3710 = vpack.c.b16 %v3702, %v3702
        %v3847 = vunpack.c.l.b16 %v3556
        %v3848 = vunpack.c.l.b16 %v3557
        %v3849 = vunpack.c.l.b16 %v3558
        %v3850 = vunpack.c.l.b16 %v3559
        %v3851 = vunpack.c.l.b16 %v3560
        %v3852 = vunpack.c.l.b16 %v3561
        %v3853 = vunpack.c.l.b16 %v3562
        %v3854 = vunpack.c.l.b16 %v3563
        %v3855 = vunpack.c.l.b16 %v3564
        %v3856 = vunpack.c.l.b16 %v3565
        %v3857 = vunpack.c.l.b16 %v3566
        %v3858 = vunpack.c.l.b16 %v3567
        %v3859 = vunpack.c.l.b16 %v3568
        %v3860 = vunpack.c.l.b16 %v3569
        %v3861 = vunpack.c.l.b16 %v3570
        %v3862 = vunpack.c.l.b16 %v3571
        %v3863 = vunpack.c.l.b16 %v3572
        %v3864 = vunpack.c.l.b16 %v3573
        %v3865 = vunpack.c.l.b16 %v3574
        %v3866 = vunpack.c.l.b16 %v3575
        %v3867 = vunpack.c.l.b16 %v3576
        %v3868 = vunpack.c.l.b16 %v3577
        %v3869 = vunpack.c.l.b16 %v3578
        %v3870 = vunpack.c.l.b16 %v3579
        %v3871 = vunpack.c.l.b16 %v3580
        %v3872 = vunpack.c.l.b16 %v3581
        %v3873 = vunpack.c.l.b16 %v3582
        %v3874 = vunpack.c.l.b16 %v3583
        %v3875 = vunpack.c.l.b16 %v3584
        %v3876 = vunpack.c.l.b16 %v3585
        %v3877 = vunpack.c.l.b16 %v3586
        %v3878 = vunpack.c.l.b16 %v3587
        %v3879 = vunpack.c.l.b16 %v3588
        %v3880 = vunpack.c.l.b16 %v3589
        %v3881 = vunpack.c.l.b16 %v3590
        %v3882 = vunpack.c.l.b16 %v3591
        %v3883 = vunpack.c.l.b16 %v3592
        %v3884 = vunpack.c.l.b16 %v3593
        %v3885 = vunpack.c.l.b16 %v3594
        %v3886 = vunpack.c.l.b16 %v3595
        %v3887 = vunpack.c.l.b16 %v3596
        %v3888 = vunpack.c.l.b16 %v3597
        %v3889 = vunpack.c.l.b16 %v3598
        %v3890 = vunpack.c.l.b16 %v3599
        %v3891 = vunpack.c.l.b16 %v3600
        %v3892 = vunpack.c.l.b16 %v3601
        %v3893 = vunpack.c.l.b16 %v3602
        %v3894 = vunpack.c.l.b16 %v3603
        %v3895 = vunpack.c.l.b16 %v3604
        %v3896 = vunpack.c.l.b16 %v3605
        %v3897 = vunpack.c.l.b16 %v3606
        %v3898 = vunpack.c.l.b16 %v3607
        %v3899 = vunpack.c.l.b16 %v3608
        %v3900 = vunpack.c.l.b16 %v3609
        %v3901 = vunpack.c.l.b16 %v3610
        %v3902 = vunpack.c.l.b16 %v3611
        %v3903 = vunpack.c.l.b16 %v3612
        %v3904 = vunpack.c.l.b16 %v3613
        %v3905 = vunpack.c.l.b16 %v3614
        %v3906 = vunpack.c.l.b16 %v3615
        %v3907 = vunpack.c.l.b16 %v3616
        %v3908 = vunpack.c.l.b16 %v3617
        %v3909 = vunpack.c.l.b16 %v3618
        %v3910 = vunpack.c.l.b16 %v3619
        %v3911 = vunpack.c.l.b16 %v3620
        %v3912 = vunpack.c.l.b16 %v3621
        %v3913 = vunpack.c.l.b16 %v3622
        %v3914 = vunpack.c.l.b16 %v3623
        %v3915 = vunpack.c.l.b16 %v3624
        %v3916 = vunpack.c.l.b16 %v3625
        %v3917 = vunpack.c.l.b16 %v3626
        %v3918 = vunpack.c.l.b16 %v3627
        %v3919 = vunpack.c.l.b16 %v3628
        %v3920 = vunpack.c.l.b16 %v3629
        %v3921 = vunpack.c.l.b16 %v3630
        %v3922 = vunpack.c.l.b16 %v3631
        %v3923 = vunpack.c.l.b16 %v3632
        %v3924 = vunpack.c.l.b16 %v3633
        %v3925 = vunpack.c.l.b16 %v3634
        %v3926 = vunpack.c.l.b16 %v3635
        %v3927 = vunpack.c.l.b16 %v3636
        %v3928 = vunpack.c.l.b16 %v3637
        %v3929 = vunpack.c.l.b16 %v3638
        %v3930 = vunpack.c.l.b16 %v3639
        %v3931 = vunpack.c.l.b16 %v3640
        %v3932 = vunpack.c.l.b16 %v3641
        %v3933 = vunpack.c.l.b16 %v3642
        %v3934 = vunpack.c.l.b16 %v3643
        %v3935 = vunpack.c.l.b16 %v3644
        %v3936 = vunpack.c.l.b16 %v3645
        %v3937 = vunpack.c.l.b16 %v3646
        %v3938 = vunpack.c.l.b16 %v3647
        %v3939 = vunpack.c.l.b16 %v3648
        %v3940 = vunpack.c.l.b16 %v3649
        %v3941 = vunpack.c.l.b16 %v3650
        %v3942 = vunpack.c.l.b16 %v3651
        %v3943 = vunpack.c.l.b16 %v3652
        %v3944 = vunpack.c.l.b16 %v3653
        %v3945 = vunpack.c.l.b16 %v3654
        %v3946 = vunpack.c.l.b16 %v3655
        %v3947 = vunpack.c.l.b16 %v3656
        %v3948 = vunpack.c.l.b16 %v3657
        %v3949 = vunpack.c.l.b16 %v3658
        %v3950 = vunpack.c.l.b16 %v3659
        %v3951 = vunpack.c.l.b16 %v3660
        %v3952 = vunpack.c.l.b16 %v3661
        %v3953 = vunpack.c.l.b16 %v3662
        %v3954 = vunpack.c.l.b16 %v3663
        %v3955 = vunpack.c.l.b16 %v3664
        %v3956 = vunpack.c.l.b16 %v3665
        %v3957 = vunpack.c.l.b16 %v3666
        %v3958 = vunpack.c.l.b16 %v3667
        %v3959 = vunpack.c.l.b16 %v3668
        %v3960 = vunpack.c.l.b16 %v3669
        %v3961 = vunpack.c.l.b16 %v3670
        %v3962 = vunpack.c.l.b16 %v3671
        %v3963 = vunpack.c.l.b16 %v3672
        %v3964 = vunpack.c.l.b16 %v3673
        %v3965 = vunpack.c.l.b16 %v3674
        %v3966 = vunpack.c.l.b16 %v3675
        %v3967 = vunpack.c.l.b16 %v3676
        %v3968 = vunpack.c.l.b16 %v3677
        %v3969 = vunpack.c.l.b16 %v3678
        %v3970 = vunpack.c.l.b16 %v3679
        %v3971 = vunpack.c.l.b16 %v3680
        %v3972 = vunpack.c.l.b16 %v3681
        %v3973 = vunpack.c.l.b16 %v3682
        %v3974 = vunpack.c.l.b16 %v3683
        %v3975 = vpack.c.b16 %v3848, %v3847
        %v3976 = vpack.c.b16 %v3850, %v3849
        %v3977 = vpack.c.b16 %v3852, %v3851
        %v3978 = vpack.c.b16 %v3854, %v3853
        %v3979 = vpack.c.b16 %v3856, %v3855
        %v3980 = vpack.c.b16 %v3858, %v3857
        %v3981 = vpack.c.b16 %v3860, %v3859
        %v3982 = vpack.c.b16 %v3862, %v3861
        %v3983 = vpack.c.b16 %v3864, %v3863
        %v3984 = vpack.c.b16 %v3866, %v3865
        %v3985 = vpack.c.b16 %v3868, %v3867
        %v3986 = vpack.c.b16 %v3870, %v3869
        %v3987 = vpack.c.b16 %v3872, %v3871
        %v3988 = vpack.c.b16 %v3874, %v3873
        %v3989 = vpack.c.b16 %v3876, %v3875
        %v3990 = vpack.c.b16 %v3878, %v3877
        %v3991 = vpack.c.b16 %v3880, %v3879
        %v3992 = vpack.c.b16 %v3882, %v3881
        %v3993 = vpack.c.b16 %v3884, %v3883
        %v3994 = vpack.c.b16 %v3886, %v3885
        %v3995 = vpack.c.b16 %v3888, %v3887
        %v3996 = vpack.c.b16 %v3890, %v3889
        %v3997 = vpack.c.b16 %v3892, %v3891
        %v3998 = vpack.c.b16 %v3894, %v3893
        %v3999 = vpack.c.b16 %v3896, %v3895
        %v4000 = vpack.c.b16 %v3898, %v3897
        %v4001 = vpack.c.b16 %v3900, %v3899
        %v4002 = vpack.c.b16 %v3902, %v3901
        %v4003 = vpack.c.b16 %v3904, %v3903
        %v4004 = vpack.c.b16 %v3906, %v3905
        %v4005 = vpack.c.b16 %v3908, %v3907
        %v4006 = vpack.c.b16 %v3910, %v3909
        %v4007 = vpack.c.b16 %v3912, %v3911
        %v4008 = vpack.c.b16 %v3914, %v3913
        %v4009 = vpack.c.b16 %v3916, %v3915
        %v4010 = vpack.c.b16 %v3918, %v3917
        %v4011 = vpack.c.b16 %v3920, %v3919
        %v4012 = vpack.c.b16 %v3922, %v3921
        %v4013 = vpack.c.b16 %v3924, %v3923
        %v4014 = vpack.c.b16 %v3926, %v3925
        %v4015 = vpack.c.b16 %v3928, %v3927
        %v4016 = vpack.c.b16 %v3930, %v3929
        %v4017 = vpack.c.b16 %v3932, %v3931
        %v4018 = vpack.c.b16 %v3934, %v3933
        %v4019 = vpack.c.b16 %v3936, %v3935
        %v4020 = vpack.c.b16 %v3938, %v3937
        %v4021 = vpack.c.b16 %v3940, %v3939
        %v4022 = vpack.c.b16 %v3942, %v3941
        %v4023 = vpack.c.b16 %v3944, %v3943
        %v4024 = vpack.c.b16 %v3946, %v3945
        %v4025 = vpack.c.b16 %v3948, %v3947
        %v4026 = vpack.c.b16 %v3950, %v3949
        %v4027 = vpack.c.b16 %v3952, %v3951
        %v4028 = vpack.c.b16 %v3954, %v3953
        %v4029 = vpack.c.b16 %v3956, %v3955
        %v4030 = vpack.c.b16 %v3958, %v3957
        %v4031 = vpack.c.b16 %v3960, %v3959
        %v4032 = vpack.c.b16 %v3962, %v3961
        %v4033 = vpack.c.b16 %v3964, %v3963
        %v4034 = vpack.c.b16 %v3966, %v3965
        %v4035 = vpack.c.b16 %v3968, %v3967
        %v4036 = vpack.c.b16 %v3970, %v3969
        %v4037 = vpack.c.b16 %v3972, %v3971
        %v4038 = vpack.c.b16 %v3974, %v3973
        %4103 = vmatprep.subr.bf16.mxu0 0
        %4104 = vmatpush1.bf16.msra.mxu0 %v3975
        %4105 = vmatprep.subr.bf16.mxu0 0
        %4106 = vmatpush1.bf16.msra.mxu0 %v3976
        %4107 = vmatprep.subr.bf16.mxu0 0
        %4108 = vmatpush1.bf16.msra.mxu0 %v3977
        %4109 = vmatprep.subr.bf16.mxu0 0
        %4110 = vmatpush1.bf16.msra.mxu0 %v3978
        %4111 = vmatprep.subr.bf16.mxu0 0
        %4112 = vmatpush1.bf16.msra.mxu0 %v3979
        %4113 = vmatprep.subr.bf16.mxu0 0
        %4114 = vmatpush1.bf16.msra.mxu0 %v3980
        %4115 = vmatprep.subr.bf16.mxu0 0
        %4116 = vmatpush1.bf16.msra.mxu0 %v3981
        %4117 = vmatprep.subr.bf16.mxu0 0
        %4118 = vmatpush1.bf16.msra.mxu0 %v3982
        %4119 = vmatprep.subr.bf16.mxu0 0
        %4120 = vmatpush1.bf16.msra.mxu0 %v3983
        %4121 = vmatprep.subr.bf16.mxu0 0
        %4122 = vmatpush1.bf16.msra.mxu0 %v3984
        %4123 = vmatprep.subr.bf16.mxu0 0
        %4124 = vmatpush1.bf16.msra.mxu0 %v3985
        %4125 = vmatprep.subr.bf16.mxu0 0
        %4126 = vmatpush1.bf16.msra.mxu0 %v3986
        %4127 = vmatprep.subr.bf16.mxu0 0
        %4128 = vmatpush1.bf16.msra.mxu0 %v3987
        %4129 = vmatprep.subr.bf16.mxu0 0
        %4130 = vmatpush1.bf16.msra.mxu0 %v3988
        %4131 = vmatprep.subr.bf16.mxu0 0
        %4132 = vmatpush1.bf16.msra.mxu0 %v3989
        %4133 = vmatprep.subr.bf16.mxu0 0
        %4134 = vmatpush1.bf16.msra.mxu0 %v3990
        %4135 = vmatprep.mubr.bf16.mxu0 %v3704
        %4136 = vmatmul.mubr.bf16.gmra.mrb[0].mxu0 %v3703
        %v4137 = vpop.f32.mrb[0].mxu0
        %v4138 = vadd.f32 %v3689, %v4137
        %v4139 = vpop.f32.mrb[0].mxu0
        %v4140 = vpop.f32.mrb[0].mxu0
        %v4141 = vpop.f32.mrb[0].mxu0
        %4142 = vdwg.mxu0
        %4143 = vmatprep.subr.bf16.mxu0 0
        %4144 = vmatpush1.bf16.msra.mxu0 %v3991
        %4145 = vmatprep.subr.bf16.mxu0 0
        %4146 = vmatpush1.bf16.msra.mxu0 %v3992
        %4147 = vmatprep.subr.bf16.mxu0 0
        %4148 = vmatpush1.bf16.msra.mxu0 %v3993
        %4149 = vmatprep.subr.bf16.mxu0 0
        %4150 = vmatpush1.bf16.msra.mxu0 %v3994
        %4151 = vmatprep.subr.bf16.mxu0 0
        %4152 = vmatpush1.bf16.msra.mxu0 %v3995
        %4153 = vmatprep.subr.bf16.mxu0 0
        %4154 = vmatpush1.bf16.msra.mxu0 %v3996
        %4155 = vmatprep.subr.bf16.mxu0 0
        %4156 = vmatpush1.bf16.msra.mxu0 %v3997
        %4157 = vmatprep.subr.bf16.mxu0 0
        %4158 = vmatpush1.bf16.msra.mxu0 %v3998
        %4159 = vmatprep.subr.bf16.mxu0 0
        %4160 = vmatpush1.bf16.msra.mxu0 %v3999
        %4161 = vmatprep.subr.bf16.mxu0 0
        %4162 = vmatpush1.bf16.msra.mxu0 %v4000
        %4163 = vmatprep.subr.bf16.mxu0 0
        %4164 = vmatpush1.bf16.msra.mxu0 %v4001
        %4165 = vmatprep.subr.bf16.mxu0 0
        %4166 = vmatpush1.bf16.msra.mxu0 %v4002
        %4167 = vmatprep.subr.bf16.mxu0 0
        %4168 = vmatpush1.bf16.msra.mxu0 %v4003
        %4169 = vmatprep.subr.bf16.mxu0 0
        %4170 = vmatpush1.bf16.msra.mxu0 %v4004
        %4171 = vmatprep.subr.bf16.mxu0 0
        %4172 = vmatpush1.bf16.msra.mxu0 %v4005
        %4173 = vmatprep.subr.bf16.mxu0 0
        %4174 = vmatpush1.bf16.msra.mxu0 %v4006
        %4175 = vmatprep.mubr.bf16.mxu0 %v3706
        %4176 = vmatmul.mubr.bf16.gmra.mrb[0].mxu0 %v3705
        %v4177 = vpop.f32.mrb[0].mxu0
        %v4178 = vadd.f32 %v4138, %v4177
        %v4179 = vpop.f32.mrb[0].mxu0
        %v4180 = vpop.f32.mrb[0].mxu0
        %v4181 = vpop.f32.mrb[0].mxu0
        %4182 = vdwg.mxu0
        %4183 = vmatprep.subr.bf16.mxu0 0
        %4184 = vmatpush1.bf16.msra.mxu0 %v4007
        %4185 = vmatprep.subr.bf16.mxu0 0
        %4186 = vmatpush1.bf16.msra.mxu0 %v4008
        %4187 = vmatprep.subr.bf16.mxu0 0
        %4188 = vmatpush1.bf16.msra.mxu0 %v4009
        %4189 = vmatprep.subr.bf16.mxu0 0
        %4190 = vmatpush1.bf16.msra.mxu0 %v4010
        %4191 = vmatprep.subr.bf16.mxu0 0
        %4192 = vmatpush1.bf16.msra.mxu0 %v4011
        %4193 = vmatprep.subr.bf16.mxu0 0
        %4194 = vmatpush1.bf16.msra.mxu0 %v4012
        %4195 = vmatprep.subr.bf16.mxu0 0
        %4196 = vmatpush1.bf16.msra.mxu0 %v4013
        %4197 = vmatprep.subr.bf16.mxu0 0
        %4198 = vmatpush1.bf16.msra.mxu0 %v4014
        %4199 = vmatprep.subr.bf16.mxu0 0
        %4200 = vmatpush1.bf16.msra.mxu0 %v4015
        %4201 = vmatprep.subr.bf16.mxu0 0
        %4202 = vmatpush1.bf16.msra.mxu0 %v4016
        %4203 = vmatprep.subr.bf16.mxu0 0
        %4204 = vmatpush1.bf16.msra.mxu0 %v4017
        %4205 = vmatprep.subr.bf16.mxu0 0
        %4206 = vmatpush1.bf16.msra.mxu0 %v4018
        %4207 = vmatprep.subr.bf16.mxu0 0
        %4208 = vmatpush1.bf16.msra.mxu0 %v4019
        %4209 = vmatprep.subr.bf16.mxu0 0
        %4210 = vmatpush1.bf16.msra.mxu0 %v4020
        %4211 = vmatprep.subr.bf16.mxu0 0
        %4212 = vmatpush1.bf16.msra.mxu0 %v4021
        %4213 = vmatprep.subr.bf16.mxu0 0
        %4214 = vmatpush1.bf16.msra.mxu0 %v4022
        %4215 = vmatprep.mubr.bf16.mxu0 %v3708
        %4216 = vmatmul.mubr.bf16.gmra.mrb[0].mxu0 %v3707
        %v4217 = vpop.f32.mrb[0].mxu0
        %v4218 = vadd.f32 %v4178, %v4217
        %v4219 = vpop.f32.mrb[0].mxu0
        %v4220 = vpop.f32.mrb[0].mxu0
        %v4221 = vpop.f32.mrb[0].mxu0
        %4222 = vdwg.mxu0
        %4223 = vmatprep.subr.bf16.mxu0 0
        %4224 = vmatpush1.bf16.msra.mxu0 %v4023
        %4225 = vmatprep.subr.bf16.mxu0 0
        %4226 = vmatpush1.bf16.msra.mxu0 %v4024
        %4227 = vmatprep.subr.bf16.mxu0 0
        %4228 = vmatpush1.bf16.msra.mxu0 %v4025
        %4229 = vmatprep.subr.bf16.mxu0 0
        %4230 = vmatpush1.bf16.msra.mxu0 %v4026
        %4231 = vmatprep.subr.bf16.mxu0 0
        %4232 = vmatpush1.bf16.msra.mxu0 %v4027
        %4233 = vmatprep.subr.bf16.mxu0 0
        %4234 = vmatpush1.bf16.msra.mxu0 %v4028
        %4235 = vmatprep.subr.bf16.mxu0 0
        %4236 = vmatpush1.bf16.msra.mxu0 %v4029
        %4237 = vmatprep.subr.bf16.mxu0 0
        %4238 = vmatpush1.bf16.msra.mxu0 %v4030
        %4239 = vmatprep.subr.bf16.mxu0 0
        %4240 = vmatpush1.bf16.msra.mxu0 %v4031
        %4241 = vmatprep.subr.bf16.mxu0 0
        %4242 = vmatpush1.bf16.msra.mxu0 %v4032
        %4243 = vmatprep.subr.bf16.mxu0 0
        %4244 = vmatpush1.bf16.msra.mxu0 %v4033
        %4245 = vmatprep.subr.bf16.mxu0 0
        %4246 = vmatpush1.bf16.msra.mxu0 %v4034
        %4247 = vmatprep.subr.bf16.mxu0 0
        %4248 = vmatpush1.bf16.msra.mxu0 %v4035
        %4249 = vmatprep.subr.bf16.mxu0 0
        %4250 = vmatpush1.bf16.msra.mxu0 %v4036
        %4251 = vmatprep.subr.bf16.mxu0 0
        %4252 = vmatpush1.bf16.msra.mxu0 %v4037
        %4253 = vmatprep.subr.bf16.mxu0 0
        %4254 = vmatpush1.bf16.msra.mxu0 %v4038
        %4255 = vmatprep.mubr.bf16.mxu0 %v3710
        %4256 = vmatmul.mubr.bf16.gmra.mrb[0].mxu0 %v3709
        %v4257 = vpop.f32.mrb[0].mxu0
        %v4258 = vadd.f32 %v4218, %v4257
        %v4259 = vpop.f32.mrb[0].mxu0
        %v4260 = vpop.f32.mrb[0].mxu0
        %v4261 = vpop.f32.mrb[0].mxu0
        %4262 = vdwg.mxu0
        %v4263 = vtanh.pop %v4258
        %4264 = vst [vmem:[%s932] sm:$0xff] %v4263
        %p4265 = scmp.lt.s32.totalorder %s24, 0
        %s4266 = scalar_select %p4265, %s24, 0
        %p4267 = scmp.lt.s32.totalorder %s25, 4
        %s4268 = scalar_select %p4267, %s25, 4
        %s4269 = smul.addr %s4266, 5
        %s4270 = sadd.s32 %s4268, %s4269
        %s4271 = smul.addr %s4270, 8
        %s4272 = scalar_lea.vmem %s9, %s4271
        // Predicated region
        $region102: #{generator_forward.1} parent=92 // pred_check
          %p4273 = pneg %p256
        $region103: #{generator_forward.1} parent=92 // pred_check_branch
          %4275 = sbr.rel (%p4273) target = $region105
        $region104: #{generator_forward.1} parent=92 // pred_region
          _
        $region105: #{generator_forward.1} parent=92 // pred_fallthru
          _
      $region93: #{generator_forward.1} parent=5 // pred_fallthru
        _
      %p4276 = scmp.le.s32.totalorder 2, %s15
      // Predicated region
      $region106: #{generator_forward.1} parent=5 // pred_check
        %p4277 = pneg %p4276
      $region107: #{generator_forward.1} parent=5 // pred_check_branch
        %4279 = sbr.rel (%p4277) target = $region109
      $region108: #{generator_forward.1} parent=5 // pred_region
        %s4280 = ssub.s32 %s15, 2
        // Predicated region
        $region110: #{generator_forward.1} parent=108 // pred_check
          %p4281 = pneg %p262
        $region111: #{generator_forward.1} parent=108 // pred_check_branch
          %4283 = sbr.rel (%p4281) target = $region113
        $region112: #{generator_forward.1} parent=108 // pred_region
          %p4284 = scmp.lt.s32.totalorder %s26, 0
          %s4285 = scalar_select %p4284, %s26, 0
          %p4286 = scmp.lt.s32.totalorder %s27, 4
          %s4287 = scalar_select %p4286, %s27, 4
          %s4288 = smul.addr %s4285, 5
          %s4289 = sadd.s32 %s4287, %s4288
          %s4290 = smul.addr %s4289, 8
          %s4291 = scalar_lea.vmem %s9, %s4290
        $region113: #{generator_forward.1} parent=108 // pred_fallthru
          _
      $region109: #{generator_forward.1} parent=5 // pred_fallthru
        _
    $region6: #{generator_forward.1} parent=1 // loop_footer
      %s19 = sadd.s32 1, %s15
    $region7: #{generator_forward.1} parent=1 // loop_footer_branch
      %14 = sbr.rel target = $region3
    $region8: #{generator_forward.1} parent=1 // loop_exit
      _

</llo_original>
